<compile_context>
chip_gen: v7x
topology: tpu7x:2x2x1
jax: 0.10.0
libtpu: 0.0.40
codegen_flags: <defaults>
</compile_context>

<pallas_src>
import functools

import jax
import jax.numpy as jnp
from jax.experimental import pallas as pl
from jax.experimental.pallas import tpu as pltpu

KSIZE = 7
PAD = (KSIZE - 1) // 2  # 3


def _spatial_gate_kernel(x_ref, w_ref, bn_ref, o_ref,
                         pad_ref, shift_ref, gate_ref, *, C, H, W):
    """One batch element per grid step.

    x_ref    : VMEM (1, C, H*W)    f32  -- lane-dense input block
    w_ref    : SMEM (2*7*7,)       f32  -- conv weight, flattened (cin, kh, kw)
    bn_ref   : SMEM (2,)           f32  -- [bn_scale, bn_bias] (folded BN)
    o_ref    : VMEM (1, C, H*W)    f32  -- lane-dense output block
    pad_ref  : VMEM (2, H+6, W+6)  f32  -- zero-padded pooled maps (scratch)
    shift_ref: VMEM (2, 7, H+6, W) f32  -- kx-shifted padded maps (scratch)
    gate_ref : VMEM (1, H*W)       f32  -- flattened sigmoid gate (scratch)
    """
    HP = H + 2 * PAD
    WP = W + 2 * PAD

    # --- ChannelPool: max & mean over channels (vector tree reduce) --------
    xin = x_ref[0]                                   # (C, H*W), lane-dense
    mx = jnp.max(xin, axis=0)                        # (H*W,)
    mean = jnp.sum(xin, axis=0) * (1.0 / C)          # (H*W,)

    # --- zero only the PAD border of the padded scratch (every step, so the
    #     kernel stays correct when the parallel batch axis is split across
    #     TensorCores; the interior is fully rewritten below) ---------------
    zrow = jnp.zeros((PAD, WP), jnp.float32)
    zcol = jnp.zeros((HP, PAD), jnp.float32)
    for c in range(2):
        pad_ref[c, :PAD, :] = zrow
        pad_ref[c, PAD + H:, :] = zrow
        pad_ref[c, :, :PAD] = zcol
        pad_ref[c, :, PAD + W:] = zcol

    # --- scatter the flat pooled maps into the (H, W) interior -------------
    for h in range(H):
        sl = slice(h * W, (h + 1) * W)
        pad_ref[0, PAD + h, PAD:PAD + W] = mx[sl]
        pad_ref[1, PAD + h, PAD:PAD + W] = mean[sl]

    # --- hoist the kx lane shifts: 14 shifted copies instead of 98
    #     lane-misaligned per-tap slices (~7x less XLU / load traffic) ------
    for c in range(2):
        for kx in range(KSIZE):
            shift_ref[c, kx] = pad_ref[c, :, kx:kx + W]

    # --- 7x7 conv (2 -> 1), stride 1, 'same': lane-aligned loads only ------
    # Scalar weight reads hoisted out of the tap loop; 7 independent,
    # lazily-initialized accumulators break the long add dependence chain.
    w_vals = [w_ref[i] for i in range(2 * KSIZE * KSIZE)]
    parts = [None] * KSIZE
    for c in range(2):
        for ky in range(KSIZE):
            for kx in range(KSIZE):
                wv = w_vals[(c * KSIZE + ky) * KSIZE + kx]
                term = wv * shift_ref[c, kx, ky:ky + H, :]
                parts[kx] = term if parts[kx] is None else parts[kx] + term
    acc = ((parts[0] + parts[1]) + (parts[2] + parts[3])
           + ((parts[4] + parts[5]) + parts[6]))

    # --- folded BatchNorm (affine) + sigmoid (exp & reciprocal on the EUP) -
    acc = acc * bn_ref[0] + bn_ref[1]
    gate2d = pl.reciprocal(1.0 + jnp.exp(-acc), approx=True)    # (H, W)

    # --- gather gate rows back to the lane-dense flat layout ---------------
    for h in range(H):
        gate_ref[0, h * W:(h + 1) * W] = gate2d[h]

    # --- broadcast-multiply over channels (dense, unmasked stores);
    #     x is re-read from VMEM here rather than held live since pooling ---
    o_ref[0] = (x_ref[0] * gate_ref[...]).astype(o_ref.dtype)


def spatial_gate(x, conv_w, bn_scale_bias):
    """x: (N, C, H, W) f32.  conv_w: any shape with 2*7*7 elements (OIHW).
    bn_scale_bias: (2,) f32 = [gamma/sqrt(var+eps), beta - mean*gamma/sqrt(var+eps)].
    """
    N, C, H, W = x.shape
    HW = H * W
    HP, WP = H + 2 * PAD, W + 2 * PAD

    # Free, metadata-only reshape: present a lane-dense (C, H*W) slab so the
    # memory-bound elementwise path uses full 128-lane vregs + dense stores.
    x_flat = x.reshape(N, C, HW)
    w_flat = conv_w.reshape(-1).astype(jnp.float32)
    bn = bn_scale_bias.astype(jnp.float32)

    kernel = functools.partial(_spatial_gate_kernel, C=C, H=H, W=W)

    # VMEM budget: double-buffered input+output blocks plus conv scratch.
    # Raise the scoped limit above the 32 MiB default when big blocks need
    # it, but never above v7x's 64 MiB physical VMEM.  (For very large C*H*W
    # the block should additionally be halo-tiled along H.)
    block_bytes = C * HW * 4
    scratch_bytes = 4 * (2 * HP * WP + 2 * KSIZE * HP * W + HW)
    need = 2 * 2 * block_bytes + scratch_bytes
    vmem_limit = int(min(max(need * 5 // 4, 32 * 1024 * 1024),
                         64 * 1024 * 1024))

    out_flat = pl.pallas_call(
        kernel,
        out_shape=jax.ShapeDtypeStruct((N, C, HW), x.dtype),
        grid_spec=pltpu.PrefetchScalarGridSpec(
            num_scalar_prefetch=0,
            grid=(N,),
            in_specs=[
                pl.BlockSpec((1, C, HW), lambda n: (n, 0, 0)),
                pl.BlockSpec(memory_space=pltpu.SMEM),
                pl.BlockSpec(memory_space=pltpu.SMEM),
            ],
            out_specs=pl.BlockSpec((1, C, HW), lambda n: (n, 0, 0)),
            scratch_shapes=[
                pltpu.VMEM((2, HP, WP), jnp.float32),
                pltpu.VMEM((2, KSIZE, HP, W), jnp.float32),
                pltpu.VMEM((1, HW), jnp.float32),
            ],
        ),
        compiler_params=pltpu.CompilerParams(
            dimension_semantics=("parallel",),
            vmem_limit_bytes=vmem_limit,
        ),
    )(x_flat, w_flat, bn)
    return out_flat.reshape(N, C, H, W)


def _reference(x, conv_w, bn_scale, bn_bias):
    """Pure-JAX reference (for verification)."""
    mx = jnp.max(x, axis=1, keepdims=True)
    mean = jnp.mean(x, axis=1, keepdims=True)
    pool = jnp.concatenate([mx, mean], axis=1)               # (N, 2, H, W)
    conv = jax.lax.conv_general_dilated(
        pool, conv_w, window_strides=(1, 1), padding=((PAD, PAD), (PAD, PAD)),
        dimension_numbers=("NCHW", "OIHW", "NCHW"))
    bn = conv * bn_scale + bn_bias
    gate = jax.nn.sigmoid(bn)
    return x * gate


if __name__ == "__main__":
    key = jax.random.PRNGKey(0)
    k_x, k_w = jax.random.split(key)

    N, C, H, W = 2, 4, 16, 16
    x = jax.random.normal(k_x, (N, C, H, W), dtype=jnp.float32)

    # Conv2d(in=2, out=1, k=7, bias=False) weight, deterministic init.
    conv_w = jax.random.normal(k_w, (1, 2, KSIZE, KSIZE), dtype=jnp.float32) * 0.1

    # BatchNorm2d(1), inference: gamma=1, beta=0, running_mean=0, running_var=1.
    gamma, beta, run_mean, run_var, eps = 1.0, 0.0, 0.0, 1.0, 1e-5
    bn_scale = gamma / jnp.sqrt(run_var + eps)
    bn_bias = beta - run_mean * bn_scale
    bn_scale_bias = jnp.array([bn_scale, bn_bias], dtype=jnp.float32)

    out = spatial_gate(x, conv_w, bn_scale_bias)
    out = jax.block_until_ready(out)

    ref = _reference(x, conv_w, bn_scale, bn_bias)
    assert out.shape == (N, C, H, W)
    # Tolerance accommodates the EUP approximate-reciprocal sigmoid
    # (pl.reciprocal(approx=True)); real pooling/conv/indexing bugs produce
    # O(0.1+) errors, far above this threshold.
    max_err = jnp.max(jnp.abs(out - ref))
    assert jnp.allclose(out, ref, rtol=1e-2, atol=1e-2), (
        f"mismatch vs reference (max abs err {max_err})")

    print("KERNEL_OK")
</pallas_src>

<mosaic_0001>
module attributes {stable_mosaic.version = 11 : i64} {
  func.func @_spatial_gate_kernel(%arg0: i32, %arg1: memref<1x4x256xf32, #tpu.memory_space<vmem>>, %arg2: memref<98xf32, #tpu.memory_space<smem>>, %arg3: memref<2xf32, #tpu.memory_space<smem>>, %arg4: memref<1x4x256xf32, #tpu.memory_space<vmem>>, %arg5: memref<2x22x22xf32, #tpu.memory_space<vmem>>, %arg6: memref<2x7x22x16xf32, #tpu.memory_space<vmem>>, %arg7: memref<1x256xf32, #tpu.memory_space<vmem>>) attributes {dimension_semantics = [#tpu.dimension_semantics<parallel>], iteration_bounds = array<i64: 2>, scalar_prefetch = 0 : i64, scratch_operands = 3 : i64, tpu.core_type = #tpu.core_type<tc>, window_params = [{transform_indices = @transform_0, window_bounds = array<i64: 1, 4, 256>}, {transform_indices = @transform_1, window_bounds = array<i64: 98>}, {transform_indices = @transform_2, window_bounds = array<i64: 2>}, {transform_indices = @transform_3, window_bounds = array<i64: 1, 4, 256>}]} {
    %c0 = arith.constant 0 : index
    %c0_0 = arith.constant 0 : index
    %c0_1 = arith.constant 0 : index
    %0 = vector.load %arg1[%c0, %c0_0, %c0_1] : memref<1x4x256xf32, #tpu.memory_space<vmem>>, vector<1x4x256xf32>
    %1 = vector.shape_cast %0 : vector<1x4x256xf32> to vector<4x256xf32>
    %cst = arith.constant dense<0xFF800000> : vector<256xf32>
    %2 = vector.multi_reduction <maximumf>, %1, %cst [0] : vector<4x256xf32> to vector<256xf32>
    %cst_2 = arith.constant dense<0.000000e+00> : vector<256xf32>
    %3 = vector.multi_reduction <add>, %1, %cst_2 [0] : vector<4x256xf32> to vector<256xf32>
    %cst_3 = arith.constant 2.500000e-01 : f32
    %4 = vector.broadcast %cst_3 : f32 to vector<256xf32>
    %5 = arith.mulf %3, %4 : vector<256xf32>
    %cst_4 = arith.constant 0.000000e+00 : f32
    %6 = vector.broadcast %cst_4 : f32 to vector<3x22xf32>
    %cst_5 = arith.constant 0.000000e+00 : f32
    %7 = vector.broadcast %cst_5 : f32 to vector<22x3xf32>
    %c0_6 = arith.constant 0 : index
    %c0_7 = arith.constant 0 : index
    %c0_8 = arith.constant 0 : index
    %8 = vector.load %arg5[%c0_6, %c0_7, %c0_8] : memref<2x22x22xf32, #tpu.memory_space<vmem>>, vector<1x3x22xf32>
    %9 = vector.shape_cast %8 : vector<1x3x22xf32> to vector<3x22xf32>
    %10 = vector.shape_cast %6 : vector<3x22xf32> to vector<1x3x22xf32>
    tpu.vector_store %arg5[%c0_6, %c0_7, %c0_8], %10 {strides = array<i32>} : memref<2x22x22xf32, #tpu.memory_space<vmem>>, vector<1x3x22xf32>,
    %c0_9 = arith.constant 0 : index
    %c19 = arith.constant 19 : index
    %c0_10 = arith.constant 0 : index
    %11 = vector.load %arg5[%c0_9, %c19, %c0_10] : memref<2x22x22xf32, #tpu.memory_space<vmem>>, vector<1x3x22xf32>
    %12 = vector.shape_cast %11 : vector<1x3x22xf32> to vector<3x22xf32>
    %13 = vector.shape_cast %6 : vector<3x22xf32> to vector<1x3x22xf32>
    tpu.vector_store %arg5[%c0_9, %c19, %c0_10], %13 {strides = array<i32>} : memref<2x22x22xf32, #tpu.memory_space<vmem>>, vector<1x3x22xf32>,
    %c0_11 = arith.constant 0 : index
    %c0_12 = arith.constant 0 : index
    %c0_13 = arith.constant 0 : index
    %14 = vector.load %arg5[%c0_11, %c0_12, %c0_13] : memref<2x22x22xf32, #tpu.memory_space<vmem>>, vector<1x22x3xf32>
    %15 = vector.shape_cast %14 : vector<1x22x3xf32> to vector<22x3xf32>
    %16 = vector.shape_cast %7 : vector<22x3xf32> to vector<1x22x3xf32>
    tpu.vector_store %arg5[%c0_11, %c0_12, %c0_13], %16 {strides = array<i32>} : memref<2x22x22xf32, #tpu.memory_space<vmem>>, vector<1x22x3xf32>,
    %c0_14 = arith.constant 0 : index
    %c0_15 = arith.constant 0 : index
    %c19_16 = arith.constant 19 : index
    %17 = vector.load %arg5[%c0_14, %c0_15, %c19_16] : memref<2x22x22xf32, #tpu.memory_space<vmem>>, vector<1x22x3xf32>
    %18 = vector.shape_cast %17 : vector<1x22x3xf32> to vector<22x3xf32>
    %19 = vector.shape_cast %7 : vector<22x3xf32> to vector<1x22x3xf32>
    tpu.vector_store %arg5[%c0_14, %c0_15, %c19_16], %19 {strides = array<i32>} : memref<2x22x22xf32, #tpu.memory_space<vmem>>, vector<1x22x3xf32>,
    %c1 = arith.constant 1 : index
    %c0_17 = arith.constant 0 : index
    %c0_18 = arith.constant 0 : index
    %20 = vector.load %arg5[%c1, %c0_17, %c0_18] : memref<2x22x22xf32, #tpu.memory_space<vmem>>, vector<1x3x22xf32>
    %21 = vector.shape_cast %20 : vector<1x3x22xf32> to vector<3x22xf32>
    %22 = vector.shape_cast %6 : vector<3x22xf32> to vector<1x3x22xf32>
    tpu.vector_store %arg5[%c1, %c0_17, %c0_18], %22 {strides = array<i32>} : memref<2x22x22xf32, #tpu.memory_space<vmem>>, vector<1x3x22xf32>,
    %c1_19 = arith.constant 1 : index
    %c19_20 = arith.constant 19 : index
    %c0_21 = arith.constant 0 : index
    %23 = vector.load %arg5[%c1_19, %c19_20, %c0_21] : memref<2x22x22xf32, #tpu.memory_space<vmem>>, vector<1x3x22xf32>
    %24 = vector.shape_cast %23 : vector<1x3x22xf32> to vector<3x22xf32>
    %25 = vector.shape_cast %6 : vector<3x22xf32> to vector<1x3x22xf32>
    tpu.vector_store %arg5[%c1_19, %c19_20, %c0_21], %25 {strides = array<i32>} : memref<2x22x22xf32, #tpu.memory_space<vmem>>, vector<1x3x22xf32>,
    %c1_22 = arith.constant 1 : index
    %c0_23 = arith.constant 0 : index
    %c0_24 = arith.constant 0 : index
    %26 = vector.load %arg5[%c1_22, %c0_23, %c0_24] : memref<2x22x22xf32, #tpu.memory_space<vmem>>, vector<1x22x3xf32>
    %27 = vector.shape_cast %26 : vector<1x22x3xf32> to vector<22x3xf32>
    %28 = vector.shape_cast %7 : vector<22x3xf32> to vector<1x22x3xf32>
    tpu.vector_store %arg5[%c1_22, %c0_23, %c0_24], %28 {strides = array<i32>} : memref<2x22x22xf32, #tpu.memory_space<vmem>>, vector<1x22x3xf32>,
    %c1_25 = arith.constant 1 : index
    %c0_26 = arith.constant 0 : index
    %c19_27 = arith.constant 19 : index
    %29 = vector.load %arg5[%c1_25, %c0_26, %c19_27] : memref<2x22x22xf32, #tpu.memory_space<vmem>>, vector<1x22x3xf32>
    %30 = vector.shape_cast %29 : vector<1x22x3xf32> to vector<22x3xf32>
    %31 = vector.shape_cast %7 : vector<22x3xf32> to vector<1x22x3xf32>
    tpu.vector_store %arg5[%c1_25, %c0_26, %c19_27], %31 {strides = array<i32>} : memref<2x22x22xf32, #tpu.memory_space<vmem>>, vector<1x22x3xf32>,
    %32 = vector.extract_strided_slice %2 {offsets = [0], sizes = [16], strides = [1]} : vector<256xf32> to vector<16xf32>
    %c0_28 = arith.constant 0 : index
    %c3 = arith.constant 3 : index
    %c3_29 = arith.constant 3 : index
    %33 = vector.load %arg5[%c0_28, %c3, %c3_29] : memref<2x22x22xf32, #tpu.memory_space<vmem>>, vector<1x1x16xf32>
    %34 = vector.shape_cast %33 : vector<1x1x16xf32> to vector<16xf32>
    %35 = vector.shape_cast %32 : vector<16xf32> to vector<1x1x16xf32>
    tpu.vector_store %arg5[%c0_28, %c3, %c3_29], %35 {strides = array<i32>} : memref<2x22x22xf32, #tpu.memory_space<vmem>>, vector<1x1x16xf32>,
    %36 = vector.extract_strided_slice %5 {offsets = [0], sizes = [16], strides = [1]} : vector<256xf32> to vector<16xf32>
    %c1_30 = arith.constant 1 : index
    %c3_31 = arith.constant 3 : index
    %c3_32 = arith.constant 3 : index
    %37 = vector.load %arg5[%c1_30, %c3_31, %c3_32] : memref<2x22x22xf32, #tpu.memory_space<vmem>>, vector<1x1x16xf32>
    %38 = vector.shape_cast %37 : vector<1x1x16xf32> to vector<16xf32>
    %39 = vector.shape_cast %36 : vector<16xf32> to vector<1x1x16xf32>
    tpu.vector_store %arg5[%c1_30, %c3_31, %c3_32], %39 {strides = array<i32>} : memref<2x22x22xf32, #tpu.memory_space<vmem>>, vector<1x1x16xf32>,
    %40 = vector.extract_strided_slice %2 {offsets = [16], sizes = [16], strides = [1]} : vector<256xf32> to vector<16xf32>
    %c0_33 = arith.constant 0 : index
    %c4 = arith.constant 4 : index
    %c3_34 = arith.constant 3 : index
    %41 = vector.load %arg5[%c0_33, %c4, %c3_34] : memref<2x22x22xf32, #tpu.memory_space<vmem>>, vector<1x1x16xf32>
    %42 = vector.shape_cast %41 : vector<1x1x16xf32> to vector<16xf32>
    %43 = vector.shape_cast %40 : vector<16xf32> to vector<1x1x16xf32>
    tpu.vector_store %arg5[%c0_33, %c4, %c3_34], %43 {strides = array<i32>} : memref<2x22x22xf32, #tpu.memory_space<vmem>>, vector<1x1x16xf32>,
    %44 = vector.extract_strided_slice %5 {offsets = [16], sizes = [16], strides = [1]} : vector<256xf32> to vector<16xf32>
    %c1_35 = arith.constant 1 : index
    %c4_36 = arith.constant 4 : index
    %c3_37 = arith.constant 3 : index
    %45 = vector.load %arg5[%c1_35, %c4_36, %c3_37] : memref<2x22x22xf32, #tpu.memory_space<vmem>>, vector<1x1x16xf32>
    %46 = vector.shape_cast %45 : vector<1x1x16xf32> to vector<16xf32>
    %47 = vector.shape_cast %44 : vector<16xf32> to vector<1x1x16xf32>
    tpu.vector_store %arg5[%c1_35, %c4_36, %c3_37], %47 {strides = array<i32>} : memref<2x22x22xf32, #tpu.memory_space<vmem>>, vector<1x1x16xf32>,
    %48 = vector.extract_strided_slice %2 {offsets = [32], sizes = [16], strides = [1]} : vector<256xf32> to vector<16xf32>
    %c0_38 = arith.constant 0 : index
    %c5 = arith.constant 5 : index
    %c3_39 = arith.constant 3 : index
    %49 = vector.load %arg5[%c0_38, %c5, %c3_39] : memref<2x22x22xf32, #tpu.memory_space<vmem>>, vector<1x1x16xf32>
    %50 = vector.shape_cast %49 : vector<1x1x16xf32> to vector<16xf32>
    %51 = vector.shape_cast %48 : vector<16xf32> to vector<1x1x16xf32>
    tpu.vector_store %arg5[%c0_38, %c5, %c3_39], %51 {strides = array<i32>} : memref<2x22x22xf32, #tpu.memory_space<vmem>>, vector<1x1x16xf32>,
    %52 = vector.extract_strided_slice %5 {offsets = [32], sizes = [16], strides = [1]} : vector<256xf32> to vector<16xf32>
    %c1_40 = arith.constant 1 : index
    %c5_41 = arith.constant 5 : index
    %c3_42 = arith.constant 3 : index
    %53 = vector.load %arg5[%c1_40, %c5_41, %c3_42] : memref<2x22x22xf32, #tpu.memory_space<vmem>>, vector<1x1x16xf32>
    %54 = vector.shape_cast %53 : vector<1x1x16xf32> to vector<16xf32>
    %55 = vector.shape_cast %52 : vector<16xf32> to vector<1x1x16xf32>
    tpu.vector_store %arg5[%c1_40, %c5_41, %c3_42], %55 {strides = array<i32>} : memref<2x22x22xf32, #tpu.memory_space<vmem>>, vector<1x1x16xf32>,
    %56 = vector.extract_strided_slice %2 {offsets = [48], sizes = [16], strides = [1]} : vector<256xf32> to vector<16xf32>
    %c0_43 = arith.constant 0 : index
    %c6 = arith.constant 6 : index
    %c3_44 = arith.constant 3 : index
    %57 = vector.load %arg5[%c0_43, %c6, %c3_44] : memref<2x22x22xf32, #tpu.memory_space<vmem>>, vector<1x1x16xf32>
    %58 = vector.shape_cast %57 : vector<1x1x16xf32> to vector<16xf32>
    %59 = vector.shape_cast %56 : vector<16xf32> to vector<1x1x16xf32>
    tpu.vector_store %arg5[%c0_43, %c6, %c3_44], %59 {strides = array<i32>} : memref<2x22x22xf32, #tpu.memory_space<vmem>>, vector<1x1x16xf32>,
    %60 = vector.extract_strided_slice %5 {offsets = [48], sizes = [16], strides = [1]} : vector<256xf32> to vector<16xf32>
    %c1_45 = arith.constant 1 : index
    %c6_46 = arith.constant 6 : index
    %c3_47 = arith.constant 3 : index
    %61 = vector.load %arg5[%c1_45, %c6_46, %c3_47] : memref<2x22x22xf32, #tpu.memory_space<vmem>>, vector<1x1x16xf32>
    %62 = vector.shape_cast %61 : vector<1x1x16xf32> to vector<16xf32>
    %63 = vector.shape_cast %60 : vector<16xf32> to vector<1x1x16xf32>
    tpu.vector_store %arg5[%c1_45, %c6_46, %c3_47], %63 {strides = array<i32>} : memref<2x22x22xf32, #tpu.memory_space<vmem>>, vector<1x1x16xf32>,
    %64 = vector.extract_strided_slice %2 {offsets = [64], sizes = [16], strides = [1]} : vector<256xf32> to vector<16xf32>
    %c0_48 = arith.constant 0 : index
    %c7 = arith.constant 7 : index
    %c3_49 = arith.constant 3 : index
    %65 = vector.load %arg5[%c0_48, %c7, %c3_49] : memref<2x22x22xf32, #tpu.memory_space<vmem>>, vector<1x1x16xf32>
    %66 = vector.shape_cast %65 : vector<1x1x16xf32> to vector<16xf32>
    %67 = vector.shape_cast %64 : vector<16xf32> to vector<1x1x16xf32>
    tpu.vector_store %arg5[%c0_48, %c7, %c3_49], %67 {strides = array<i32>} : memref<2x22x22xf32, #tpu.memory_space<vmem>>, vector<1x1x16xf32>,
    %68 = vector.extract_strided_slice %5 {offsets = [64], sizes = [16], strides = [1]} : vector<256xf32> to vector<16xf32>
    %c1_50 = arith.constant 1 : index
    %c7_51 = arith.constant 7 : index
    %c3_52 = arith.constant 3 : index
    %69 = vector.load %arg5[%c1_50, %c7_51, %c3_52] : memref<2x22x22xf32, #tpu.memory_space<vmem>>, vector<1x1x16xf32>
    %70 = vector.shape_cast %69 : vector<1x1x16xf32> to vector<16xf32>
    %71 = vector.shape_cast %68 : vector<16xf32> to vector<1x1x16xf32>
    tpu.vector_store %arg5[%c1_50, %c7_51, %c3_52], %71 {strides = array<i32>} : memref<2x22x22xf32, #tpu.memory_space<vmem>>, vector<1x1x16xf32>,
    %72 = vector.extract_strided_slice %2 {offsets = [80], sizes = [16], strides = [1]} : vector<256xf32> to vector<16xf32>
    %c0_53 = arith.constant 0 : index
    %c8 = arith.constant 8 : index
    %c3_54 = arith.constant 3 : index
    %73 = vector.load %arg5[%c0_53, %c8, %c3_54] : memref<2x22x22xf32, #tpu.memory_space<vmem>>, vector<1x1x16xf32>
    %74 = vector.shape_cast %73 : vector<1x1x16xf32> to vector<16xf32>
    %75 = vector.shape_cast %72 : vector<16xf32> to vector<1x1x16xf32>
    tpu.vector_store %arg5[%c0_53, %c8, %c3_54], %75 {strides = array<i32>} : memref<2x22x22xf32, #tpu.memory_space<vmem>>, vector<1x1x16xf32>,
    %76 = vector.extract_strided_slice %5 {offsets = [80], sizes = [16], strides = [1]} : vector<256xf32> to vector<16xf32>
    %c1_55 = arith.constant 1 : index
    %c8_56 = arith.constant 8 : index
    %c3_57 = arith.constant 3 : index
    %77 = vector.load %arg5[%c1_55, %c8_56, %c3_57] : memref<2x22x22xf32, #tpu.memory_space<vmem>>, vector<1x1x16xf32>
    %78 = vector.shape_cast %77 : vector<1x1x16xf32> to vector<16xf32>
    %79 = vector.shape_cast %76 : vector<16xf32> to vector<1x1x16xf32>
    tpu.vector_store %arg5[%c1_55, %c8_56, %c3_57], %79 {strides = array<i32>} : memref<2x22x22xf32, #tpu.memory_space<vmem>>, vector<1x1x16xf32>,
    %80 = vector.extract_strided_slice %2 {offsets = [96], sizes = [16], strides = [1]} : vector<256xf32> to vector<16xf32>
    %c0_58 = arith.constant 0 : index
    %c9 = arith.constant 9 : index
    %c3_59 = arith.constant 3 : index
    %81 = vector.load %arg5[%c0_58, %c9, %c3_59] : memref<2x22x22xf32, #tpu.memory_space<vmem>>, vector<1x1x16xf32>
    %82 = vector.shape_cast %81 : vector<1x1x16xf32> to vector<16xf32>
    %83 = vector.shape_cast %80 : vector<16xf32> to vector<1x1x16xf32>
    tpu.vector_store %arg5[%c0_58, %c9, %c3_59], %83 {strides = array<i32>} : memref<2x22x22xf32, #tpu.memory_space<vmem>>, vector<1x1x16xf32>,
    %84 = vector.extract_strided_slice %5 {offsets = [96], sizes = [16], strides = [1]} : vector<256xf32> to vector<16xf32>
    %c1_60 = arith.constant 1 : index
    %c9_61 = arith.constant 9 : index
    %c3_62 = arith.constant 3 : index
    %85 = vector.load %arg5[%c1_60, %c9_61, %c3_62] : memref<2x22x22xf32, #tpu.memory_space<vmem>>, vector<1x1x16xf32>
    %86 = vector.shape_cast %85 : vector<1x1x16xf32> to vector<16xf32>
    %87 = vector.shape_cast %84 : vector<16xf32> to vector<1x1x16xf32>
    tpu.vector_store %arg5[%c1_60, %c9_61, %c3_62], %87 {strides = array<i32>} : memref<2x22x22xf32, #tpu.memory_space<vmem>>, vector<1x1x16xf32>,
    %88 = vector.extract_strided_slice %2 {offsets = [112], sizes = [16], strides = [1]} : vector<256xf32> to vector<16xf32>
    %c0_63 = arith.constant 0 : index
    %c10 = arith.constant 10 : index
    %c3_64 = arith.constant 3 : index
    %89 = vector.load %arg5[%c0_63, %c10, %c3_64] : memref<2x22x22xf32, #tpu.memory_space<vmem>>, vector<1x1x16xf32>
    %90 = vector.shape_cast %89 : vector<1x1x16xf32> to vector<16xf32>
    %91 = vector.shape_cast %88 : vector<16xf32> to vector<1x1x16xf32>
    tpu.vector_store %arg5[%c0_63, %c10, %c3_64], %91 {strides = array<i32>} : memref<2x22x22xf32, #tpu.memory_space<vmem>>, vector<1x1x16xf32>,
    %92 = vector.extract_strided_slice %5 {offsets = [112], sizes = [16], strides = [1]} : vector<256xf32> to vector<16xf32>
    %c1_65 = arith.constant 1 : index
    %c10_66 = arith.constant 10 : index
    %c3_67 = arith.constant 3 : index
    %93 = vector.load %arg5[%c1_65, %c10_66, %c3_67] : memref<2x22x22xf32, #tpu.memory_space<vmem>>, vector<1x1x16xf32>
    %94 = vector.shape_cast %93 : vector<1x1x16xf32> to vector<16xf32>
    %95 = vector.shape_cast %92 : vector<16xf32> to vector<1x1x16xf32>
    tpu.vector_store %arg5[%c1_65, %c10_66, %c3_67], %95 {strides = array<i32>} : memref<2x22x22xf32, #tpu.memory_space<vmem>>, vector<1x1x16xf32>,
    %96 = vector.extract_strided_slice %2 {offsets = [128], sizes = [16], strides = [1]} : vector<256xf32> to vector<16xf32>
    %c0_68 = arith.constant 0 : index
    %c11 = arith.constant 11 : index
    %c3_69 = arith.constant 3 : index
    %97 = vector.load %arg5[%c0_68, %c11, %c3_69] : memref<2x22x22xf32, #tpu.memory_space<vmem>>, vector<1x1x16xf32>
    %98 = vector.shape_cast %97 : vector<1x1x16xf32> to vector<16xf32>
    %99 = vector.shape_cast %96 : vector<16xf32> to vector<1x1x16xf32>
    tpu.vector_store %arg5[%c0_68, %c11, %c3_69], %99 {strides = array<i32>} : memref<2x22x22xf32, #tpu.memory_space<vmem>>, vector<1x1x16xf32>,
    %100 = vector.extract_strided_slice %5 {offsets = [128], sizes = [16], strides = [1]} : vector<256xf32> to vector<16xf32>
    %c1_70 = arith.constant 1 : index
    %c11_71 = arith.constant 11 : index
    %c3_72 = arith.constant 3 : index
    %101 = vector.load %arg5[%c1_70, %c11_71, %c3_72] : memref<2x22x22xf32, #tpu.memory_space<vmem>>, vector<1x1x16xf32>
    %102 = vector.shape_cast %101 : vector<1x1x16xf32> to vector<16xf32>
    %103 = vector.shape_cast %100 : vector<16xf32> to vector<1x1x16xf32>
    tpu.vector_store %arg5[%c1_70, %c11_71, %c3_72], %103 {strides = array<i32>} : memref<2x22x22xf32, #tpu.memory_space<vmem>>, vector<1x1x16xf32>,
    %104 = vector.extract_strided_slice %2 {offsets = [144], sizes = [16], strides = [1]} : vector<256xf32> to vector<16xf32>
    %c0_73 = arith.constant 0 : index
    %c12 = arith.constant 12 : index
    %c3_74 = arith.constant 3 : index
    %105 = vector.load %arg5[%c0_73, %c12, %c3_74] : memref<2x22x22xf32, #tpu.memory_space<vmem>>, vector<1x1x16xf32>
    %106 = vector.shape_cast %105 : vector<1x1x16xf32> to vector<16xf32>
    %107 = vector.shape_cast %104 : vector<16xf32> to vector<1x1x16xf32>
    tpu.vector_store %arg5[%c0_73, %c12, %c3_74], %107 {strides = array<i32>} : memref<2x22x22xf32, #tpu.memory_space<vmem>>, vector<1x1x16xf32>,
    %108 = vector.extract_strided_slice %5 {offsets = [144], sizes = [16], strides = [1]} : vector<256xf32> to vector<16xf32>
    %c1_75 = arith.constant 1 : index
    %c12_76 = arith.constant 12 : index
    %c3_77 = arith.constant 3 : index
    %109 = vector.load %arg5[%c1_75, %c12_76, %c3_77] : memref<2x22x22xf32, #tpu.memory_space<vmem>>, vector<1x1x16xf32>
    %110 = vector.shape_cast %109 : vector<1x1x16xf32> to vector<16xf32>
    %111 = vector.shape_cast %108 : vector<16xf32> to vector<1x1x16xf32>
    tpu.vector_store %arg5[%c1_75, %c12_76, %c3_77], %111 {strides = array<i32>} : memref<2x22x22xf32, #tpu.memory_space<vmem>>, vector<1x1x16xf32>,
    %112 = vector.extract_strided_slice %2 {offsets = [160], sizes = [16], strides = [1]} : vector<256xf32> to vector<16xf32>
    %c0_78 = arith.constant 0 : index
    %c13 = arith.constant 13 : index
    %c3_79 = arith.constant 3 : index
    %113 = vector.load %arg5[%c0_78, %c13, %c3_79] : memref<2x22x22xf32, #tpu.memory_space<vmem>>, vector<1x1x16xf32>
    %114 = vector.shape_cast %113 : vector<1x1x16xf32> to vector<16xf32>
    %115 = vector.shape_cast %112 : vector<16xf32> to vector<1x1x16xf32>
    tpu.vector_store %arg5[%c0_78, %c13, %c3_79], %115 {strides = array<i32>} : memref<2x22x22xf32, #tpu.memory_space<vmem>>, vector<1x1x16xf32>,
    %116 = vector.extract_strided_slice %5 {offsets = [160], sizes = [16], strides = [1]} : vector<256xf32> to vector<16xf32>
    %c1_80 = arith.constant 1 : index
    %c13_81 = arith.constant 13 : index
    %c3_82 = arith.constant 3 : index
    %117 = vector.load %arg5[%c1_80, %c13_81, %c3_82] : memref<2x22x22xf32, #tpu.memory_space<vmem>>, vector<1x1x16xf32>
    %118 = vector.shape_cast %117 : vector<1x1x16xf32> to vector<16xf32>
    %119 = vector.shape_cast %116 : vector<16xf32> to vector<1x1x16xf32>
    tpu.vector_store %arg5[%c1_80, %c13_81, %c3_82], %119 {strides = array<i32>} : memref<2x22x22xf32, #tpu.memory_space<vmem>>, vector<1x1x16xf32>,
    %120 = vector.extract_strided_slice %2 {offsets = [176], sizes = [16], strides = [1]} : vector<256xf32> to vector<16xf32>
    %c0_83 = arith.constant 0 : index
    %c14 = arith.constant 14 : index
    %c3_84 = arith.constant 3 : index
    %121 = vector.load %arg5[%c0_83, %c14, %c3_84] : memref<2x22x22xf32, #tpu.memory_space<vmem>>, vector<1x1x16xf32>
    %122 = vector.shape_cast %121 : vector<1x1x16xf32> to vector<16xf32>
    %123 = vector.shape_cast %120 : vector<16xf32> to vector<1x1x16xf32>
    tpu.vector_store %arg5[%c0_83, %c14, %c3_84], %123 {strides = array<i32>} : memref<2x22x22xf32, #tpu.memory_space<vmem>>, vector<1x1x16xf32>,
    %124 = vector.extract_strided_slice %5 {offsets = [176], sizes = [16], strides = [1]} : vector<256xf32> to vector<16xf32>
    %c1_85 = arith.constant 1 : index
    %c14_86 = arith.constant 14 : index
    %c3_87 = arith.constant 3 : index
    %125 = vector.load %arg5[%c1_85, %c14_86, %c3_87] : memref<2x22x22xf32, #tpu.memory_space<vmem>>, vector<1x1x16xf32>
    %126 = vector.shape_cast %125 : vector<1x1x16xf32> to vector<16xf32>
    %127 = vector.shape_cast %124 : vector<16xf32> to vector<1x1x16xf32>
    tpu.vector_store %arg5[%c1_85, %c14_86, %c3_87], %127 {strides = array<i32>} : memref<2x22x22xf32, #tpu.memory_space<vmem>>, vector<1x1x16xf32>,
    %128 = vector.extract_strided_slice %2 {offsets = [192], sizes = [16], strides = [1]} : vector<256xf32> to vector<16xf32>
    %c0_88 = arith.constant 0 : index
    %c15 = arith.constant 15 : index
    %c3_89 = arith.constant 3 : index
    %129 = vector.load %arg5[%c0_88, %c15, %c3_89] : memref<2x22x22xf32, #tpu.memory_space<vmem>>, vector<1x1x16xf32>
    %130 = vector.shape_cast %129 : vector<1x1x16xf32> to vector<16xf32>
    %131 = vector.shape_cast %128 : vector<16xf32> to vector<1x1x16xf32>
    tpu.vector_store %arg5[%c0_88, %c15, %c3_89], %131 {strides = array<i32>} : memref<2x22x22xf32, #tpu.memory_space<vmem>>, vector<1x1x16xf32>,
    %132 = vector.extract_strided_slice %5 {offsets = [192], sizes = [16], strides = [1]} : vector<256xf32> to vector<16xf32>
    %c1_90 = arith.constant 1 : index
    %c15_91 = arith.constant 15 : index
    %c3_92 = arith.constant 3 : index
    %133 = vector.load %arg5[%c1_90, %c15_91, %c3_92] : memref<2x22x22xf32, #tpu.memory_space<vmem>>, vector<1x1x16xf32>
    %134 = vector.shape_cast %133 : vector<1x1x16xf32> to vector<16xf32>
    %135 = vector.shape_cast %132 : vector<16xf32> to vector<1x1x16xf32>
    tpu.vector_store %arg5[%c1_90, %c15_91, %c3_92], %135 {strides = array<i32>} : memref<2x22x22xf32, #tpu.memory_space<vmem>>, vector<1x1x16xf32>,
    %136 = vector.extract_strided_slice %2 {offsets = [208], sizes = [16], strides = [1]} : vector<256xf32> to vector<16xf32>
    %c0_93 = arith.constant 0 : index
    %c16 = arith.constant 16 : index
    %c3_94 = arith.constant 3 : index
    %137 = vector.load %arg5[%c0_93, %c16, %c3_94] : memref<2x22x22xf32, #tpu.memory_space<vmem>>, vector<1x1x16xf32>
    %138 = vector.shape_cast %137 : vector<1x1x16xf32> to vector<16xf32>
    %139 = vector.shape_cast %136 : vector<16xf32> to vector<1x1x16xf32>
    tpu.vector_store %arg5[%c0_93, %c16, %c3_94], %139 {strides = array<i32>} : memref<2x22x22xf32, #tpu.memory_space<vmem>>, vector<1x1x16xf32>,
    %140 = vector.extract_strided_slice %5 {offsets = [208], sizes = [16], strides = [1]} : vector<256xf32> to vector<16xf32>
    %c1_95 = arith.constant 1 : index
    %c16_96 = arith.constant 16 : index
    %c3_97 = arith.constant 3 : index
    %141 = vector.load %arg5[%c1_95, %c16_96, %c3_97] : memref<2x22x22xf32, #tpu.memory_space<vmem>>, vector<1x1x16xf32>
    %142 = vector.shape_cast %141 : vector<1x1x16xf32> to vector<16xf32>
    %143 = vector.shape_cast %140 : vector<16xf32> to vector<1x1x16xf32>
    tpu.vector_store %arg5[%c1_95, %c16_96, %c3_97], %143 {strides = array<i32>} : memref<2x22x22xf32, #tpu.memory_space<vmem>>, vector<1x1x16xf32>,
    %144 = vector.extract_strided_slice %2 {offsets = [224], sizes = [16], strides = [1]} : vector<256xf32> to vector<16xf32>
    %c0_98 = arith.constant 0 : index
    %c17 = arith.constant 17 : index
    %c3_99 = arith.constant 3 : index
    %145 = vector.load %arg5[%c0_98, %c17, %c3_99] : memref<2x22x22xf32, #tpu.memory_space<vmem>>, vector<1x1x16xf32>
    %146 = vector.shape_cast %145 : vector<1x1x16xf32> to vector<16xf32>
    %147 = vector.shape_cast %144 : vector<16xf32> to vector<1x1x16xf32>
    tpu.vector_store %arg5[%c0_98, %c17, %c3_99], %147 {strides = array<i32>} : memref<2x22x22xf32, #tpu.memory_space<vmem>>, vector<1x1x16xf32>,
    %148 = vector.extract_strided_slice %5 {offsets = [224], sizes = [16], strides = [1]} : vector<256xf32> to vector<16xf32>
    %c1_100 = arith.constant 1 : index
    %c17_101 = arith.constant 17 : index
    %c3_102 = arith.constant 3 : index
    %149 = vector.load %arg5[%c1_100, %c17_101, %c3_102] : memref<2x22x22xf32, #tpu.memory_space<vmem>>, vector<1x1x16xf32>
    %150 = vector.shape_cast %149 : vector<1x1x16xf32> to vector<16xf32>
    %151 = vector.shape_cast %148 : vector<16xf32> to vector<1x1x16xf32>
    tpu.vector_store %arg5[%c1_100, %c17_101, %c3_102], %151 {strides = array<i32>} : memref<2x22x22xf32, #tpu.memory_space<vmem>>, vector<1x1x16xf32>,
    %152 = vector.extract_strided_slice %2 {offsets = [240], sizes = [16], strides = [1]} : vector<256xf32> to vector<16xf32>
    %c0_103 = arith.constant 0 : index
    %c18 = arith.constant 18 : index
    %c3_104 = arith.constant 3 : index
    %153 = vector.load %arg5[%c0_103, %c18, %c3_104] : memref<2x22x22xf32, #tpu.memory_space<vmem>>, vector<1x1x16xf32>
    %154 = vector.shape_cast %153 : vector<1x1x16xf32> to vector<16xf32>
    %155 = vector.shape_cast %152 : vector<16xf32> to vector<1x1x16xf32>
    tpu.vector_store %arg5[%c0_103, %c18, %c3_104], %155 {strides = array<i32>} : memref<2x22x22xf32, #tpu.memory_space<vmem>>, vector<1x1x16xf32>,
    %156 = vector.extract_strided_slice %5 {offsets = [240], sizes = [16], strides = [1]} : vector<256xf32> to vector<16xf32>
    %c1_105 = arith.constant 1 : index
    %c18_106 = arith.constant 18 : index
    %c3_107 = arith.constant 3 : index
    %157 = vector.load %arg5[%c1_105, %c18_106, %c3_107] : memref<2x22x22xf32, #tpu.memory_space<vmem>>, vector<1x1x16xf32>
    %158 = vector.shape_cast %157 : vector<1x1x16xf32> to vector<16xf32>
    %159 = vector.shape_cast %156 : vector<16xf32> to vector<1x1x16xf32>
    tpu.vector_store %arg5[%c1_105, %c18_106, %c3_107], %159 {strides = array<i32>} : memref<2x22x22xf32, #tpu.memory_space<vmem>>, vector<1x1x16xf32>,
    %c0_108 = arith.constant 0 : index
    %c0_109 = arith.constant 0 : index
    %c0_110 = arith.constant 0 : index
    %160 = vector.load %arg5[%c0_108, %c0_109, %c0_110] : memref<2x22x22xf32, #tpu.memory_space<vmem>>, vector<1x22x16xf32>
    %161 = vector.shape_cast %160 : vector<1x22x16xf32> to vector<22x16xf32>
    %c0_111 = arith.constant 0 : index
    %c0_112 = arith.constant 0 : index
    %c0_113 = arith.constant 0 : index
    %c0_114 = arith.constant 0 : index
    %162 = vector.load %arg6[%c0_111, %c0_112, %c0_113, %c0_114] : memref<2x7x22x16xf32, #tpu.memory_space<vmem>>, vector<1x1x22x16xf32>
    %163 = vector.shape_cast %162 : vector<1x1x22x16xf32> to vector<22x16xf32>
    %164 = vector.shape_cast %161 : vector<22x16xf32> to vector<1x1x22x16xf32>
    tpu.vector_store %arg6[%c0_111, %c0_112, %c0_113, %c0_114], %164 {strides = array<i32>} : memref<2x7x22x16xf32, #tpu.memory_space<vmem>>, vector<1x1x22x16xf32>,
    %c0_115 = arith.constant 0 : index
    %c0_116 = arith.constant 0 : index
    %c1_117 = arith.constant 1 : index
    %165 = vector.load %arg5[%c0_115, %c0_116, %c1_117] : memref<2x22x22xf32, #tpu.memory_space<vmem>>, vector<1x22x16xf32>
    %166 = vector.shape_cast %165 : vector<1x22x16xf32> to vector<22x16xf32>
    %c0_118 = arith.constant 0 : index
    %c1_119 = arith.constant 1 : index
    %c0_120 = arith.constant 0 : index
    %c0_121 = arith.constant 0 : index
    %167 = vector.load %arg6[%c0_118, %c1_119, %c0_120, %c0_121] : memref<2x7x22x16xf32, #tpu.memory_space<vmem>>, vector<1x1x22x16xf32>
    %168 = vector.shape_cast %167 : vector<1x1x22x16xf32> to vector<22x16xf32>
    %169 = vector.shape_cast %166 : vector<22x16xf32> to vector<1x1x22x16xf32>
    tpu.vector_store %arg6[%c0_118, %c1_119, %c0_120, %c0_121], %169 {strides = array<i32>} : memref<2x7x22x16xf32, #tpu.memory_space<vmem>>, vector<1x1x22x16xf32>,
    %c0_122 = arith.constant 0 : index
    %c0_123 = arith.constant 0 : index
    %c2 = arith.constant 2 : index
    %170 = vector.load %arg5[%c0_122, %c0_123, %c2] : memref<2x22x22xf32, #tpu.memory_space<vmem>>, vector<1x22x16xf32>
    %171 = vector.shape_cast %170 : vector<1x22x16xf32> to vector<22x16xf32>
    %c0_124 = arith.constant 0 : index
    %c2_125 = arith.constant 2 : index
    %c0_126 = arith.constant 0 : index
    %c0_127 = arith.constant 0 : index
    %172 = vector.load %arg6[%c0_124, %c2_125, %c0_126, %c0_127] : memref<2x7x22x16xf32, #tpu.memory_space<vmem>>, vector<1x1x22x16xf32>
    %173 = vector.shape_cast %172 : vector<1x1x22x16xf32> to vector<22x16xf32>
    %174 = vector.shape_cast %171 : vector<22x16xf32> to vector<1x1x22x16xf32>
    tpu.vector_store %arg6[%c0_124, %c2_125, %c0_126, %c0_127], %174 {strides = array<i32>} : memref<2x7x22x16xf32, #tpu.memory_space<vmem>>, vector<1x1x22x16xf32>,
    %c0_128 = arith.constant 0 : index
    %c0_129 = arith.constant 0 : index
    %c3_130 = arith.constant 3 : index
    %175 = vector.load %arg5[%c0_128, %c0_129, %c3_130] : memref<2x22x22xf32, #tpu.memory_space<vmem>>, vector<1x22x16xf32>
    %176 = vector.shape_cast %175 : vector<1x22x16xf32> to vector<22x16xf32>
    %c0_131 = arith.constant 0 : index
    %c3_132 = arith.constant 3 : index
    %c0_133 = arith.constant 0 : index
    %c0_134 = arith.constant 0 : index
    %177 = vector.load %arg6[%c0_131, %c3_132, %c0_133, %c0_134] : memref<2x7x22x16xf32, #tpu.memory_space<vmem>>, vector<1x1x22x16xf32>
    %178 = vector.shape_cast %177 : vector<1x1x22x16xf32> to vector<22x16xf32>
    %179 = vector.shape_cast %176 : vector<22x16xf32> to vector<1x1x22x16xf32>
    tpu.vector_store %arg6[%c0_131, %c3_132, %c0_133, %c0_134], %179 {strides = array<i32>} : memref<2x7x22x16xf32, #tpu.memory_space<vmem>>, vector<1x1x22x16xf32>,
    %c0_135 = arith.constant 0 : index
    %c0_136 = arith.constant 0 : index
    %c4_137 = arith.constant 4 : index
    %180 = vector.load %arg5[%c0_135, %c0_136, %c4_137] : memref<2x22x22xf32, #tpu.memory_space<vmem>>, vector<1x22x16xf32>
    %181 = vector.shape_cast %180 : vector<1x22x16xf32> to vector<22x16xf32>
    %c0_138 = arith.constant 0 : index
    %c4_139 = arith.constant 4 : index
    %c0_140 = arith.constant 0 : index
    %c0_141 = arith.constant 0 : index
    %182 = vector.load %arg6[%c0_138, %c4_139, %c0_140, %c0_141] : memref<2x7x22x16xf32, #tpu.memory_space<vmem>>, vector<1x1x22x16xf32>
    %183 = vector.shape_cast %182 : vector<1x1x22x16xf32> to vector<22x16xf32>
    %184 = vector.shape_cast %181 : vector<22x16xf32> to vector<1x1x22x16xf32>
    tpu.vector_store %arg6[%c0_138, %c4_139, %c0_140, %c0_141], %184 {strides = array<i32>} : memref<2x7x22x16xf32, #tpu.memory_space<vmem>>, vector<1x1x22x16xf32>,
    %c0_142 = arith.constant 0 : index
    %c0_143 = arith.constant 0 : index
    %c5_144 = arith.constant 5 : index
    %185 = vector.load %arg5[%c0_142, %c0_143, %c5_144] : memref<2x22x22xf32, #tpu.memory_space<vmem>>, vector<1x22x16xf32>
    %186 = vector.shape_cast %185 : vector<1x22x16xf32> to vector<22x16xf32>
    %c0_145 = arith.constant 0 : index
    %c5_146 = arith.constant 5 : index
    %c0_147 = arith.constant 0 : index
    %c0_148 = arith.constant 0 : index
    %187 = vector.load %arg6[%c0_145, %c5_146, %c0_147, %c0_148] : memref<2x7x22x16xf32, #tpu.memory_space<vmem>>, vector<1x1x22x16xf32>
    %188 = vector.shape_cast %187 : vector<1x1x22x16xf32> to vector<22x16xf32>
    %189 = vector.shape_cast %186 : vector<22x16xf32> to vector<1x1x22x16xf32>
    tpu.vector_store %arg6[%c0_145, %c5_146, %c0_147, %c0_148], %189 {strides = array<i32>} : memref<2x7x22x16xf32, #tpu.memory_space<vmem>>, vector<1x1x22x16xf32>,
    %c0_149 = arith.constant 0 : index
    %c0_150 = arith.constant 0 : index
    %c6_151 = arith.constant 6 : index
    %190 = vector.load %arg5[%c0_149, %c0_150, %c6_151] : memref<2x22x22xf32, #tpu.memory_space<vmem>>, vector<1x22x16xf32>
    %191 = vector.shape_cast %190 : vector<1x22x16xf32> to vector<22x16xf32>
    %c0_152 = arith.constant 0 : index
    %c6_153 = arith.constant 6 : index
    %c0_154 = arith.constant 0 : index
    %c0_155 = arith.constant 0 : index
    %192 = vector.load %arg6[%c0_152, %c6_153, %c0_154, %c0_155] : memref<2x7x22x16xf32, #tpu.memory_space<vmem>>, vector<1x1x22x16xf32>
    %193 = vector.shape_cast %192 : vector<1x1x22x16xf32> to vector<22x16xf32>
    %194 = vector.shape_cast %191 : vector<22x16xf32> to vector<1x1x22x16xf32>
    tpu.vector_store %arg6[%c0_152, %c6_153, %c0_154, %c0_155], %194 {strides = array<i32>} : memref<2x7x22x16xf32, #tpu.memory_space<vmem>>, vector<1x1x22x16xf32>,
    %c1_156 = arith.constant 1 : index
    %c0_157 = arith.constant 0 : index
    %c0_158 = arith.constant 0 : index
    %195 = vector.load %arg5[%c1_156, %c0_157, %c0_158] : memref<2x22x22xf32, #tpu.memory_space<vmem>>, vector<1x22x16xf32>
    %196 = vector.shape_cast %195 : vector<1x22x16xf32> to vector<22x16xf32>
    %c1_159 = arith.constant 1 : index
    %c0_160 = arith.constant 0 : index
    %c0_161 = arith.constant 0 : index
    %c0_162 = arith.constant 0 : index
    %197 = vector.load %arg6[%c1_159, %c0_160, %c0_161, %c0_162] : memref<2x7x22x16xf32, #tpu.memory_space<vmem>>, vector<1x1x22x16xf32>
    %198 = vector.shape_cast %197 : vector<1x1x22x16xf32> to vector<22x16xf32>
    %199 = vector.shape_cast %196 : vector<22x16xf32> to vector<1x1x22x16xf32>
    tpu.vector_store %arg6[%c1_159, %c0_160, %c0_161, %c0_162], %199 {strides = array<i32>} : memref<2x7x22x16xf32, #tpu.memory_space<vmem>>, vector<1x1x22x16xf32>,
    %c1_163 = arith.constant 1 : index
    %c0_164 = arith.constant 0 : index
    %c1_165 = arith.constant 1 : index
    %200 = vector.load %arg5[%c1_163, %c0_164, %c1_165] : memref<2x22x22xf32, #tpu.memory_space<vmem>>, vector<1x22x16xf32>
    %201 = vector.shape_cast %200 : vector<1x22x16xf32> to vector<22x16xf32>
    %c1_166 = arith.constant 1 : index
    %c1_167 = arith.constant 1 : index
    %c0_168 = arith.constant 0 : index
    %c0_169 = arith.constant 0 : index
    %202 = vector.load %arg6[%c1_166, %c1_167, %c0_168, %c0_169] : memref<2x7x22x16xf32, #tpu.memory_space<vmem>>, vector<1x1x22x16xf32>
    %203 = vector.shape_cast %202 : vector<1x1x22x16xf32> to vector<22x16xf32>
    %204 = vector.shape_cast %201 : vector<22x16xf32> to vector<1x1x22x16xf32>
    tpu.vector_store %arg6[%c1_166, %c1_167, %c0_168, %c0_169], %204 {strides = array<i32>} : memref<2x7x22x16xf32, #tpu.memory_space<vmem>>, vector<1x1x22x16xf32>,
    %c1_170 = arith.constant 1 : index
    %c0_171 = arith.constant 0 : index
    %c2_172 = arith.constant 2 : index
    %205 = vector.load %arg5[%c1_170, %c0_171, %c2_172] : memref<2x22x22xf32, #tpu.memory_space<vmem>>, vector<1x22x16xf32>
    %206 = vector.shape_cast %205 : vector<1x22x16xf32> to vector<22x16xf32>
    %c1_173 = arith.constant 1 : index
    %c2_174 = arith.constant 2 : index
    %c0_175 = arith.constant 0 : index
    %c0_176 = arith.constant 0 : index
    %207 = vector.load %arg6[%c1_173, %c2_174, %c0_175, %c0_176] : memref<2x7x22x16xf32, #tpu.memory_space<vmem>>, vector<1x1x22x16xf32>
    %208 = vector.shape_cast %207 : vector<1x1x22x16xf32> to vector<22x16xf32>
    %209 = vector.shape_cast %206 : vector<22x16xf32> to vector<1x1x22x16xf32>
    tpu.vector_store %arg6[%c1_173, %c2_174, %c0_175, %c0_176], %209 {strides = array<i32>} : memref<2x7x22x16xf32, #tpu.memory_space<vmem>>, vector<1x1x22x16xf32>,
    %c1_177 = arith.constant 1 : index
    %c0_178 = arith.constant 0 : index
    %c3_179 = arith.constant 3 : index
    %210 = vector.load %arg5[%c1_177, %c0_178, %c3_179] : memref<2x22x22xf32, #tpu.memory_space<vmem>>, vector<1x22x16xf32>
    %211 = vector.shape_cast %210 : vector<1x22x16xf32> to vector<22x16xf32>
    %c1_180 = arith.constant 1 : index
    %c3_181 = arith.constant 3 : index
    %c0_182 = arith.constant 0 : index
    %c0_183 = arith.constant 0 : index
    %212 = vector.load %arg6[%c1_180, %c3_181, %c0_182, %c0_183] : memref<2x7x22x16xf32, #tpu.memory_space<vmem>>, vector<1x1x22x16xf32>
    %213 = vector.shape_cast %212 : vector<1x1x22x16xf32> to vector<22x16xf32>
    %214 = vector.shape_cast %211 : vector<22x16xf32> to vector<1x1x22x16xf32>
    tpu.vector_store %arg6[%c1_180, %c3_181, %c0_182, %c0_183], %214 {strides = array<i32>} : memref<2x7x22x16xf32, #tpu.memory_space<vmem>>, vector<1x1x22x16xf32>,
    %c1_184 = arith.constant 1 : index
    %c0_185 = arith.constant 0 : index
    %c4_186 = arith.constant 4 : index
    %215 = vector.load %arg5[%c1_184, %c0_185, %c4_186] : memref<2x22x22xf32, #tpu.memory_space<vmem>>, vector<1x22x16xf32>
    %216 = vector.shape_cast %215 : vector<1x22x16xf32> to vector<22x16xf32>
    %c1_187 = arith.constant 1 : index
    %c4_188 = arith.constant 4 : index
    %c0_189 = arith.constant 0 : index
    %c0_190 = arith.constant 0 : index
    %217 = vector.load %arg6[%c1_187, %c4_188, %c0_189, %c0_190] : memref<2x7x22x16xf32, #tpu.memory_space<vmem>>, vector<1x1x22x16xf32>
    %218 = vector.shape_cast %217 : vector<1x1x22x16xf32> to vector<22x16xf32>
    %219 = vector.shape_cast %216 : vector<22x16xf32> to vector<1x1x22x16xf32>
    tpu.vector_store %arg6[%c1_187, %c4_188, %c0_189, %c0_190], %219 {strides = array<i32>} : memref<2x7x22x16xf32, #tpu.memory_space<vmem>>, vector<1x1x22x16xf32>,
    %c1_191 = arith.constant 1 : index
    %c0_192 = arith.constant 0 : index
    %c5_193 = arith.constant 5 : index
    %220 = vector.load %arg5[%c1_191, %c0_192, %c5_193] : memref<2x22x22xf32, #tpu.memory_space<vmem>>, vector<1x22x16xf32>
    %221 = vector.shape_cast %220 : vector<1x22x16xf32> to vector<22x16xf32>
    %c1_194 = arith.constant 1 : index
    %c5_195 = arith.constant 5 : index
    %c0_196 = arith.constant 0 : index
    %c0_197 = arith.constant 0 : index
    %222 = vector.load %arg6[%c1_194, %c5_195, %c0_196, %c0_197] : memref<2x7x22x16xf32, #tpu.memory_space<vmem>>, vector<1x1x22x16xf32>
    %223 = vector.shape_cast %222 : vector<1x1x22x16xf32> to vector<22x16xf32>
    %224 = vector.shape_cast %221 : vector<22x16xf32> to vector<1x1x22x16xf32>
    tpu.vector_store %arg6[%c1_194, %c5_195, %c0_196, %c0_197], %224 {strides = array<i32>} : memref<2x7x22x16xf32, #tpu.memory_space<vmem>>, vector<1x1x22x16xf32>,
    %c1_198 = arith.constant 1 : index
    %c0_199 = arith.constant 0 : index
    %c6_200 = arith.constant 6 : index
    %225 = vector.load %arg5[%c1_198, %c0_199, %c6_200] : memref<2x22x22xf32, #tpu.memory_space<vmem>>, vector<1x22x16xf32>
    %226 = vector.shape_cast %225 : vector<1x22x16xf32> to vector<22x16xf32>
    %c1_201 = arith.constant 1 : index
    %c6_202 = arith.constant 6 : index
    %c0_203 = arith.constant 0 : index
    %c0_204 = arith.constant 0 : index
    %227 = vector.load %arg6[%c1_201, %c6_202, %c0_203, %c0_204] : memref<2x7x22x16xf32, #tpu.memory_space<vmem>>, vector<1x1x22x16xf32>
    %228 = vector.shape_cast %227 : vector<1x1x22x16xf32> to vector<22x16xf32>
    %229 = vector.shape_cast %226 : vector<22x16xf32> to vector<1x1x22x16xf32>
    tpu.vector_store %arg6[%c1_201, %c6_202, %c0_203, %c0_204], %229 {strides = array<i32>} : memref<2x7x22x16xf32, #tpu.memory_space<vmem>>, vector<1x1x22x16xf32>,
    %c0_205 = arith.constant 0 : index
    %230 = memref.load %arg2[%c0_205] : memref<98xf32, #tpu.memory_space<smem>>
    %c1_206 = arith.constant 1 : index
    %231 = memref.load %arg2[%c1_206] : memref<98xf32, #tpu.memory_space<smem>>
    %c2_207 = arith.constant 2 : index
    %232 = memref.load %arg2[%c2_207] : memref<98xf32, #tpu.memory_space<smem>>
    %c3_208 = arith.constant 3 : index
    %233 = memref.load %arg2[%c3_208] : memref<98xf32, #tpu.memory_space<smem>>
    %c4_209 = arith.constant 4 : index
    %234 = memref.load %arg2[%c4_209] : memref<98xf32, #tpu.memory_space<smem>>
    %c5_210 = arith.constant 5 : index
    %235 = memref.load %arg2[%c5_210] : memref<98xf32, #tpu.memory_space<smem>>
    %c6_211 = arith.constant 6 : index
    %236 = memref.load %arg2[%c6_211] : memref<98xf32, #tpu.memory_space<smem>>
    %c7_212 = arith.constant 7 : index
    %237 = memref.load %arg2[%c7_212] : memref<98xf32, #tpu.memory_space<smem>>
    %c8_213 = arith.constant 8 : index
    %238 = memref.load %arg2[%c8_213] : memref<98xf32, #tpu.memory_space<smem>>
    %c9_214 = arith.constant 9 : index
    %239 = memref.load %arg2[%c9_214] : memref<98xf32, #tpu.memory_space<smem>>
    %c10_215 = arith.constant 10 : index
    %240 = memref.load %arg2[%c10_215] : memref<98xf32, #tpu.memory_space<smem>>
    %c11_216 = arith.constant 11 : index
    %241 = memref.load %arg2[%c11_216] : memref<98xf32, #tpu.memory_space<smem>>
    %c12_217 = arith.constant 12 : index
    %242 = memref.load %arg2[%c12_217] : memref<98xf32, #tpu.memory_space<smem>>
    %c13_218 = arith.constant 13 : index
    %243 = memref.load %arg2[%c13_218] : memref<98xf32, #tpu.memory_space<smem>>
    %c14_219 = arith.constant 14 : index
    %244 = memref.load %arg2[%c14_219] : memref<98xf32, #tpu.memory_space<smem>>
    %c15_220 = arith.constant 15 : index
    %245 = memref.load %arg2[%c15_220] : memref<98xf32, #tpu.memory_space<smem>>
    %c16_221 = arith.constant 16 : index
    %246 = memref.load %arg2[%c16_221] : memref<98xf32, #tpu.memory_space<smem>>
    %c17_222 = arith.constant 17 : index
    %247 = memref.load %arg2[%c17_222] : memref<98xf32, #tpu.memory_space<smem>>
    %c18_223 = arith.constant 18 : index
    %248 = memref.load %arg2[%c18_223] : memref<98xf32, #tpu.memory_space<smem>>
    %c19_224 = arith.constant 19 : index
    %249 = memref.load %arg2[%c19_224] : memref<98xf32, #tpu.memory_space<smem>>
    %c20 = arith.constant 20 : index
    %250 = memref.load %arg2[%c20] : memref<98xf32, #tpu.memory_space<smem>>
    %c21 = arith.constant 21 : index
    %251 = memref.load %arg2[%c21] : memref<98xf32, #tpu.memory_space<smem>>
    %c22 = arith.constant 22 : index
    %252 = memref.load %arg2[%c22] : memref<98xf32, #tpu.memory_space<smem>>
    %c23 = arith.constant 23 : index
    %253 = memref.load %arg2[%c23] : memref<98xf32, #tpu.memory_space<smem>>
    %c24 = arith.constant 24 : index
    %254 = memref.load %arg2[%c24] : memref<98xf32, #tpu.memory_space<smem>>
    %c25 = arith.constant 25 : index
    %255 = memref.load %arg2[%c25] : memref<98xf32, #tpu.memory_space<smem>>
    %c26 = arith.constant 26 : index
    %256 = memref.load %arg2[%c26] : memref<98xf32, #tpu.memory_space<smem>>
    %c27 = arith.constant 27 : index
    %257 = memref.load %arg2[%c27] : memref<98xf32, #tpu.memory_space<smem>>
    %c28 = arith.constant 28 : index
    %258 = memref.load %arg2[%c28] : memref<98xf32, #tpu.memory_space<smem>>
    %c29 = arith.constant 29 : index
    %259 = memref.load %arg2[%c29] : memref<98xf32, #tpu.memory_space<smem>>
    %c30 = arith.constant 30 : index
    %260 = memref.load %arg2[%c30] : memref<98xf32, #tpu.memory_space<smem>>
    %c31 = arith.constant 31 : index
    %261 = memref.load %arg2[%c31] : memref<98xf32, #tpu.memory_space<smem>>
    %c32 = arith.constant 32 : index
    %262 = memref.load %arg2[%c32] : memref<98xf32, #tpu.memory_space<smem>>
    %c33 = arith.constant 33 : index
    %263 = memref.load %arg2[%c33] : memref<98xf32, #tpu.memory_space<smem>>
    %c34 = arith.constant 34 : index
    %264 = memref.load %arg2[%c34] : memref<98xf32, #tpu.memory_space<smem>>
    %c35 = arith.constant 35 : index
    %265 = memref.load %arg2[%c35] : memref<98xf32, #tpu.memory_space<smem>>
    %c36 = arith.constant 36 : index
    %266 = memref.load %arg2[%c36] : memref<98xf32, #tpu.memory_space<smem>>
    %c37 = arith.constant 37 : index
    %267 = memref.load %arg2[%c37] : memref<98xf32, #tpu.memory_space<smem>>
    %c38 = arith.constant 38 : index
    %268 = memref.load %arg2[%c38] : memref<98xf32, #tpu.memory_space<smem>>
    %c39 = arith.constant 39 : index
    %269 = memref.load %arg2[%c39] : memref<98xf32, #tpu.memory_space<smem>>
    %c40 = arith.constant 40 : index
    %270 = memref.load %arg2[%c40] : memref<98xf32, #tpu.memory_space<smem>>
    %c41 = arith.constant 41 : index
    %271 = memref.load %arg2[%c41] : memref<98xf32, #tpu.memory_space<smem>>
    %c42 = arith.constant 42 : index
    %272 = memref.load %arg2[%c42] : memref<98xf32, #tpu.memory_space<smem>>
    %c43 = arith.constant 43 : index
    %273 = memref.load %arg2[%c43] : memref<98xf32, #tpu.memory_space<smem>>
    %c44 = arith.constant 44 : index
    %274 = memref.load %arg2[%c44] : memref<98xf32, #tpu.memory_space<smem>>
    %c45 = arith.constant 45 : index
    %275 = memref.load %arg2[%c45] : memref<98xf32, #tpu.memory_space<smem>>
    %c46 = arith.constant 46 : index
    %276 = memref.load %arg2[%c46] : memref<98xf32, #tpu.memory_space<smem>>
    %c47 = arith.constant 47 : index
    %277 = memref.load %arg2[%c47] : memref<98xf32, #tpu.memory_space<smem>>
    %c48 = arith.constant 48 : index
    %278 = memref.load %arg2[%c48] : memref<98xf32, #tpu.memory_space<smem>>
    %c49 = arith.constant 49 : index
    %279 = memref.load %arg2[%c49] : memref<98xf32, #tpu.memory_space<smem>>
    %c50 = arith.constant 50 : index
    %280 = memref.load %arg2[%c50] : memref<98xf32, #tpu.memory_space<smem>>
    %c51 = arith.constant 51 : index
    %281 = memref.load %arg2[%c51] : memref<98xf32, #tpu.memory_space<smem>>
    %c52 = arith.constant 52 : index
    %282 = memref.load %arg2[%c52] : memref<98xf32, #tpu.memory_space<smem>>
    %c53 = arith.constant 53 : index
    %283 = memref.load %arg2[%c53] : memref<98xf32, #tpu.memory_space<smem>>
    %c54 = arith.constant 54 : index
    %284 = memref.load %arg2[%c54] : memref<98xf32, #tpu.memory_space<smem>>
    %c55 = arith.constant 55 : index
    %285 = memref.load %arg2[%c55] : memref<98xf32, #tpu.memory_space<smem>>
    %c56 = arith.constant 56 : index
    %286 = memref.load %arg2[%c56] : memref<98xf32, #tpu.memory_space<smem>>
    %c57 = arith.constant 57 : index
    %287 = memref.load %arg2[%c57] : memref<98xf32, #tpu.memory_space<smem>>
    %c58 = arith.constant 58 : index
    %288 = memref.load %arg2[%c58] : memref<98xf32, #tpu.memory_space<smem>>
    %c59 = arith.constant 59 : index
    %289 = memref.load %arg2[%c59] : memref<98xf32, #tpu.memory_space<smem>>
    %c60 = arith.constant 60 : index
    %290 = memref.load %arg2[%c60] : memref<98xf32, #tpu.memory_space<smem>>
    %c61 = arith.constant 61 : index
    %291 = memref.load %arg2[%c61] : memref<98xf32, #tpu.memory_space<smem>>
    %c62 = arith.constant 62 : index
    %292 = memref.load %arg2[%c62] : memref<98xf32, #tpu.memory_space<smem>>
    %c63 = arith.constant 63 : index
    %293 = memref.load %arg2[%c63] : memref<98xf32, #tpu.memory_space<smem>>
    %c64 = arith.constant 64 : index
    %294 = memref.load %arg2[%c64] : memref<98xf32, #tpu.memory_space<smem>>
    %c65 = arith.constant 65 : index
    %295 = memref.load %arg2[%c65] : memref<98xf32, #tpu.memory_space<smem>>
    %c66 = arith.constant 66 : index
    %296 = memref.load %arg2[%c66] : memref<98xf32, #tpu.memory_space<smem>>
    %c67 = arith.constant 67 : index
    %297 = memref.load %arg2[%c67] : memref<98xf32, #tpu.memory_space<smem>>
    %c68 = arith.constant 68 : index
    %298 = memref.load %arg2[%c68] : memref<98xf32, #tpu.memory_space<smem>>
    %c69 = arith.constant 69 : index
    %299 = memref.load %arg2[%c69] : memref<98xf32, #tpu.memory_space<smem>>
    %c70 = arith.constant 70 : index
    %300 = memref.load %arg2[%c70] : memref<98xf32, #tpu.memory_space<smem>>
    %c71 = arith.constant 71 : index
    %301 = memref.load %arg2[%c71] : memref<98xf32, #tpu.memory_space<smem>>
    %c72 = arith.constant 72 : index
    %302 = memref.load %arg2[%c72] : memref<98xf32, #tpu.memory_space<smem>>
    %c73 = arith.constant 73 : index
    %303 = memref.load %arg2[%c73] : memref<98xf32, #tpu.memory_space<smem>>
    %c74 = arith.constant 74 : index
    %304 = memref.load %arg2[%c74] : memref<98xf32, #tpu.memory_space<smem>>
    %c75 = arith.constant 75 : index
    %305 = memref.load %arg2[%c75] : memref<98xf32, #tpu.memory_space<smem>>
    %c76 = arith.constant 76 : index
    %306 = memref.load %arg2[%c76] : memref<98xf32, #tpu.memory_space<smem>>
    %c77 = arith.constant 77 : index
    %307 = memref.load %arg2[%c77] : memref<98xf32, #tpu.memory_space<smem>>
    %c78 = arith.constant 78 : index
    %308 = memref.load %arg2[%c78] : memref<98xf32, #tpu.memory_space<smem>>
    %c79 = arith.constant 79 : index
    %309 = memref.load %arg2[%c79] : memref<98xf32, #tpu.memory_space<smem>>
    %c80 = arith.constant 80 : index
    %310 = memref.load %arg2[%c80] : memref<98xf32, #tpu.memory_space<smem>>
    %c81 = arith.constant 81 : index
    %311 = memref.load %arg2[%c81] : memref<98xf32, #tpu.memory_space<smem>>
    %c82 = arith.constant 82 : index
    %312 = memref.load %arg2[%c82] : memref<98xf32, #tpu.memory_space<smem>>
    %c83 = arith.constant 83 : index
    %313 = memref.load %arg2[%c83] : memref<98xf32, #tpu.memory_space<smem>>
    %c84 = arith.constant 84 : index
    %314 = memref.load %arg2[%c84] : memref<98xf32, #tpu.memory_space<smem>>
    %c85 = arith.constant 85 : index
    %315 = memref.load %arg2[%c85] : memref<98xf32, #tpu.memory_space<smem>>
    %c86 = arith.constant 86 : index
    %316 = memref.load %arg2[%c86] : memref<98xf32, #tpu.memory_space<smem>>
    %c87 = arith.constant 87 : index
    %317 = memref.load %arg2[%c87] : memref<98xf32, #tpu.memory_space<smem>>
    %c88 = arith.constant 88 : index
    %318 = memref.load %arg2[%c88] : memref<98xf32, #tpu.memory_space<smem>>
    %c89 = arith.constant 89 : index
    %319 = memref.load %arg2[%c89] : memref<98xf32, #tpu.memory_space<smem>>
    %c90 = arith.constant 90 : index
    %320 = memref.load %arg2[%c90] : memref<98xf32, #tpu.memory_space<smem>>
    %c91 = arith.constant 91 : index
    %321 = memref.load %arg2[%c91] : memref<98xf32, #tpu.memory_space<smem>>
    %c92 = arith.constant 92 : index
    %322 = memref.load %arg2[%c92] : memref<98xf32, #tpu.memory_space<smem>>
    %c93 = arith.constant 93 : index
    %323 = memref.load %arg2[%c93] : memref<98xf32, #tpu.memory_space<smem>>
    %c94 = arith.constant 94 : index
    %324 = memref.load %arg2[%c94] : memref<98xf32, #tpu.memory_space<smem>>
    %c95 = arith.constant 95 : index
    %325 = memref.load %arg2[%c95] : memref<98xf32, #tpu.memory_space<smem>>
    %c96 = arith.constant 96 : index
    %326 = memref.load %arg2[%c96] : memref<98xf32, #tpu.memory_space<smem>>
    %c97 = arith.constant 97 : index
    %327 = memref.load %arg2[%c97] : memref<98xf32, #tpu.memory_space<smem>>
    %c0_225 = arith.constant 0 : index
    %c0_226 = arith.constant 0 : index
    %c0_227 = arith.constant 0 : index
    %c0_228 = arith.constant 0 : index
    %328 = vector.load %arg6[%c0_225, %c0_226, %c0_227, %c0_228] : memref<2x7x22x16xf32, #tpu.memory_space<vmem>>, vector<1x1x16x16xf32>
    %329 = vector.shape_cast %328 : vector<1x1x16x16xf32> to vector<16x16xf32>
    %330 = vector.broadcast %230 : f32 to vector<16x16xf32>
    %331 = arith.mulf %330, %329 : vector<16x16xf32>
    %c0_229 = arith.constant 0 : index
    %c1_230 = arith.constant 1 : index
    %c0_231 = arith.constant 0 : index
    %c0_232 = arith.constant 0 : index
    %332 = vector.load %arg6[%c0_229, %c1_230, %c0_231, %c0_232] : memref<2x7x22x16xf32, #tpu.memory_space<vmem>>, vector<1x1x16x16xf32>
    %333 = vector.shape_cast %332 : vector<1x1x16x16xf32> to vector<16x16xf32>
    %334 = vector.broadcast %231 : f32 to vector<16x16xf32>
    %335 = arith.mulf %334, %333 : vector<16x16xf32>
    %c0_233 = arith.constant 0 : index
    %c2_234 = arith.constant 2 : index
    %c0_235 = arith.constant 0 : index
    %c0_236 = arith.constant 0 : index
    %336 = vector.load %arg6[%c0_233, %c2_234, %c0_235, %c0_236] : memref<2x7x22x16xf32, #tpu.memory_space<vmem>>, vector<1x1x16x16xf32>
    %337 = vector.shape_cast %336 : vector<1x1x16x16xf32> to vector<16x16xf32>
    %338 = vector.broadcast %232 : f32 to vector<16x16xf32>
    %339 = arith.mulf %338, %337 : vector<16x16xf32>
    %c0_237 = arith.constant 0 : index
    %c3_238 = arith.constant 3 : index
    %c0_239 = arith.constant 0 : index
    %c0_240 = arith.constant 0 : index
    %340 = vector.load %arg6[%c0_237, %c3_238, %c0_239, %c0_240] : memref<2x7x22x16xf32, #tpu.memory_space<vmem>>, vector<1x1x16x16xf32>
    %341 = vector.shape_cast %340 : vector<1x1x16x16xf32> to vector<16x16xf32>
    %342 = vector.broadcast %233 : f32 to vector<16x16xf32>
    %343 = arith.mulf %342, %341 : vector<16x16xf32>
    %c0_241 = arith.constant 0 : index
    %c4_242 = arith.constant 4 : index
    %c0_243 = arith.constant 0 : index
    %c0_244 = arith.constant 0 : index
    %344 = vector.load %arg6[%c0_241, %c4_242, %c0_243, %c0_244] : memref<2x7x22x16xf32, #tpu.memory_space<vmem>>, vector<1x1x16x16xf32>
    %345 = vector.shape_cast %344 : vector<1x1x16x16xf32> to vector<16x16xf32>
    %346 = vector.broadcast %234 : f32 to vector<16x16xf32>
    %347 = arith.mulf %346, %345 : vector<16x16xf32>
    %c0_245 = arith.constant 0 : index
    %c5_246 = arith.constant 5 : index
    %c0_247 = arith.constant 0 : index
    %c0_248 = arith.constant 0 : index
    %348 = vector.load %arg6[%c0_245, %c5_246, %c0_247, %c0_248] : memref<2x7x22x16xf32, #tpu.memory_space<vmem>>, vector<1x1x16x16xf32>
    %349 = vector.shape_cast %348 : vector<1x1x16x16xf32> to vector<16x16xf32>
    %350 = vector.broadcast %235 : f32 to vector<16x16xf32>
    %351 = arith.mulf %350, %349 : vector<16x16xf32>
    %c0_249 = arith.constant 0 : index
    %c6_250 = arith.constant 6 : index
    %c0_251 = arith.constant 0 : index
    %c0_252 = arith.constant 0 : index
    %352 = vector.load %arg6[%c0_249, %c6_250, %c0_251, %c0_252] : memref<2x7x22x16xf32, #tpu.memory_space<vmem>>, vector<1x1x16x16xf32>
    %353 = vector.shape_cast %352 : vector<1x1x16x16xf32> to vector<16x16xf32>
    %354 = vector.broadcast %236 : f32 to vector<16x16xf32>
    %355 = arith.mulf %354, %353 : vector<16x16xf32>
    %c0_253 = arith.constant 0 : index
    %c0_254 = arith.constant 0 : index
    %c1_255 = arith.constant 1 : index
    %c0_256 = arith.constant 0 : index
    %356 = vector.load %arg6[%c0_253, %c0_254, %c1_255, %c0_256] : memref<2x7x22x16xf32, #tpu.memory_space<vmem>>, vector<1x1x16x16xf32>
    %357 = vector.shape_cast %356 : vector<1x1x16x16xf32> to vector<16x16xf32>
    %358 = vector.broadcast %237 : f32 to vector<16x16xf32>
    %359 = arith.mulf %358, %357 : vector<16x16xf32>
    %360 = arith.addf %331, %359 : vector<16x16xf32>
    %c0_257 = arith.constant 0 : index
    %c1_258 = arith.constant 1 : index
    %c1_259 = arith.constant 1 : index
    %c0_260 = arith.constant 0 : index
    %361 = vector.load %arg6[%c0_257, %c1_258, %c1_259, %c0_260] : memref<2x7x22x16xf32, #tpu.memory_space<vmem>>, vector<1x1x16x16xf32>
    %362 = vector.shape_cast %361 : vector<1x1x16x16xf32> to vector<16x16xf32>
    %363 = vector.broadcast %238 : f32 to vector<16x16xf32>
    %364 = arith.mulf %363, %362 : vector<16x16xf32>
    %365 = arith.addf %335, %364 : vector<16x16xf32>
    %c0_261 = arith.constant 0 : index
    %c2_262 = arith.constant 2 : index
    %c1_263 = arith.constant 1 : index
    %c0_264 = arith.constant 0 : index
    %366 = vector.load %arg6[%c0_261, %c2_262, %c1_263, %c0_264] : memref<2x7x22x16xf32, #tpu.memory_space<vmem>>, vector<1x1x16x16xf32>
    %367 = vector.shape_cast %366 : vector<1x1x16x16xf32> to vector<16x16xf32>
    %368 = vector.broadcast %239 : f32 to vector<16x16xf32>
    %369 = arith.mulf %368, %367 : vector<16x16xf32>
    %370 = arith.addf %339, %369 : vector<16x16xf32>
    %c0_265 = arith.constant 0 : index
    %c3_266 = arith.constant 3 : index
    %c1_267 = arith.constant 1 : index
    %c0_268 = arith.constant 0 : index
    %371 = vector.load %arg6[%c0_265, %c3_266, %c1_267, %c0_268] : memref<2x7x22x16xf32, #tpu.memory_space<vmem>>, vector<1x1x16x16xf32>
    %372 = vector.shape_cast %371 : vector<1x1x16x16xf32> to vector<16x16xf32>
    %373 = vector.broadcast %240 : f32 to vector<16x16xf32>
    %374 = arith.mulf %373, %372 : vector<16x16xf32>
    %375 = arith.addf %343, %374 : vector<16x16xf32>
    %c0_269 = arith.constant 0 : index
    %c4_270 = arith.constant 4 : index
    %c1_271 = arith.constant 1 : index
    %c0_272 = arith.constant 0 : index
    %376 = vector.load %arg6[%c0_269, %c4_270, %c1_271, %c0_272] : memref<2x7x22x16xf32, #tpu.memory_space<vmem>>, vector<1x1x16x16xf32>
    %377 = vector.shape_cast %376 : vector<1x1x16x16xf32> to vector<16x16xf32>
    %378 = vector.broadcast %241 : f32 to vector<16x16xf32>
    %379 = arith.mulf %378, %377 : vector<16x16xf32>
    %380 = arith.addf %347, %379 : vector<16x16xf32>
    %c0_273 = arith.constant 0 : index
    %c5_274 = arith.constant 5 : index
    %c1_275 = arith.constant 1 : index
    %c0_276 = arith.constant 0 : index
    %381 = vector.load %arg6[%c0_273, %c5_274, %c1_275, %c0_276] : memref<2x7x22x16xf32, #tpu.memory_space<vmem>>, vector<1x1x16x16xf32>
    %382 = vector.shape_cast %381 : vector<1x1x16x16xf32> to vector<16x16xf32>
    %383 = vector.broadcast %242 : f32 to vector<16x16xf32>
    %384 = arith.mulf %383, %382 : vector<16x16xf32>
    %385 = arith.addf %351, %384 : vector<16x16xf32>
    %c0_277 = arith.constant 0 : index
    %c6_278 = arith.constant 6 : index
    %c1_279 = arith.constant 1 : index
    %c0_280 = arith.constant 0 : index
    %386 = vector.load %arg6[%c0_277, %c6_278, %c1_279, %c0_280] : memref<2x7x22x16xf32, #tpu.memory_space<vmem>>, vector<1x1x16x16xf32>
    %387 = vector.shape_cast %386 : vector<1x1x16x16xf32> to vector<16x16xf32>
    %388 = vector.broadcast %243 : f32 to vector<16x16xf32>
    %389 = arith.mulf %388, %387 : vector<16x16xf32>
    %390 = arith.addf %355, %389 : vector<16x16xf32>
    %c0_281 = arith.constant 0 : index
    %c0_282 = arith.constant 0 : index
    %c2_283 = arith.constant 2 : index
    %c0_284 = arith.constant 0 : index
    %391 = vector.load %arg6[%c0_281, %c0_282, %c2_283, %c0_284] : memref<2x7x22x16xf32, #tpu.memory_space<vmem>>, vector<1x1x16x16xf32>
    %392 = vector.shape_cast %391 : vector<1x1x16x16xf32> to vector<16x16xf32>
    %393 = vector.broadcast %244 : f32 to vector<16x16xf32>
    %394 = arith.mulf %393, %392 : vector<16x16xf32>
    %395 = arith.addf %360, %394 : vector<16x16xf32>
    %c0_285 = arith.constant 0 : index
    %c1_286 = arith.constant 1 : index
    %c2_287 = arith.constant 2 : index
    %c0_288 = arith.constant 0 : index
    %396 = vector.load %arg6[%c0_285, %c1_286, %c2_287, %c0_288] : memref<2x7x22x16xf32, #tpu.memory_space<vmem>>, vector<1x1x16x16xf32>
    %397 = vector.shape_cast %396 : vector<1x1x16x16xf32> to vector<16x16xf32>
    %398 = vector.broadcast %245 : f32 to vector<16x16xf32>
    %399 = arith.mulf %398, %397 : vector<16x16xf32>
    %400 = arith.addf %365, %399 : vector<16x16xf32>
    %c0_289 = arith.constant 0 : index
    %c2_290 = arith.constant 2 : index
    %c2_291 = arith.constant 2 : index
    %c0_292 = arith.constant 0 : index
    %401 = vector.load %arg6[%c0_289, %c2_290, %c2_291, %c0_292] : memref<2x7x22x16xf32, #tpu.memory_space<vmem>>, vector<1x1x16x16xf32>
    %402 = vector.shape_cast %401 : vector<1x1x16x16xf32> to vector<16x16xf32>
    %403 = vector.broadcast %246 : f32 to vector<16x16xf32>
    %404 = arith.mulf %403, %402 : vector<16x16xf32>
    %405 = arith.addf %370, %404 : vector<16x16xf32>
    %c0_293 = arith.constant 0 : index
    %c3_294 = arith.constant 3 : index
    %c2_295 = arith.constant 2 : index
    %c0_296 = arith.constant 0 : index
    %406 = vector.load %arg6[%c0_293, %c3_294, %c2_295, %c0_296] : memref<2x7x22x16xf32, #tpu.memory_space<vmem>>, vector<1x1x16x16xf32>
    %407 = vector.shape_cast %406 : vector<1x1x16x16xf32> to vector<16x16xf32>
    %408 = vector.broadcast %247 : f32 to vector<16x16xf32>
    %409 = arith.mulf %408, %407 : vector<16x16xf32>
    %410 = arith.addf %375, %409 : vector<16x16xf32>
    %c0_297 = arith.constant 0 : index
    %c4_298 = arith.constant 4 : index
    %c2_299 = arith.constant 2 : index
    %c0_300 = arith.constant 0 : index
    %411 = vector.load %arg6[%c0_297, %c4_298, %c2_299, %c0_300] : memref<2x7x22x16xf32, #tpu.memory_space<vmem>>, vector<1x1x16x16xf32>
    %412 = vector.shape_cast %411 : vector<1x1x16x16xf32> to vector<16x16xf32>
    %413 = vector.broadcast %248 : f32 to vector<16x16xf32>
    %414 = arith.mulf %413, %412 : vector<16x16xf32>
    %415 = arith.addf %380, %414 : vector<16x16xf32>
    %c0_301 = arith.constant 0 : index
    %c5_302 = arith.constant 5 : index
    %c2_303 = arith.constant 2 : index
    %c0_304 = arith.constant 0 : index
    %416 = vector.load %arg6[%c0_301, %c5_302, %c2_303, %c0_304] : memref<2x7x22x16xf32, #tpu.memory_space<vmem>>, vector<1x1x16x16xf32>
    %417 = vector.shape_cast %416 : vector<1x1x16x16xf32> to vector<16x16xf32>
    %418 = vector.broadcast %249 : f32 to vector<16x16xf32>
    %419 = arith.mulf %418, %417 : vector<16x16xf32>
    %420 = arith.addf %385, %419 : vector<16x16xf32>
    %c0_305 = arith.constant 0 : index
    %c6_306 = arith.constant 6 : index
    %c2_307 = arith.constant 2 : index
    %c0_308 = arith.constant 0 : index
    %421 = vector.load %arg6[%c0_305, %c6_306, %c2_307, %c0_308] : memref<2x7x22x16xf32, #tpu.memory_space<vmem>>, vector<1x1x16x16xf32>
    %422 = vector.shape_cast %421 : vector<1x1x16x16xf32> to vector<16x16xf32>
    %423 = vector.broadcast %250 : f32 to vector<16x16xf32>
    %424 = arith.mulf %423, %422 : vector<16x16xf32>
    %425 = arith.addf %390, %424 : vector<16x16xf32>
    %c0_309 = arith.constant 0 : index
    %c0_310 = arith.constant 0 : index
    %c3_311 = arith.constant 3 : index
    %c0_312 = arith.constant 0 : index
    %426 = vector.load %arg6[%c0_309, %c0_310, %c3_311, %c0_312] : memref<2x7x22x16xf32, #tpu.memory_space<vmem>>, vector<1x1x16x16xf32>
    %427 = vector.shape_cast %426 : vector<1x1x16x16xf32> to vector<16x16xf32>
    %428 = vector.broadcast %251 : f32 to vector<16x16xf32>
    %429 = arith.mulf %428, %427 : vector<16x16xf32>
    %430 = arith.addf %395, %429 : vector<16x16xf32>
    %c0_313 = arith.constant 0 : index
    %c1_314 = arith.constant 1 : index
    %c3_315 = arith.constant 3 : index
    %c0_316 = arith.constant 0 : index
    %431 = vector.load %arg6[%c0_313, %c1_314, %c3_315, %c0_316] : memref<2x7x22x16xf32, #tpu.memory_space<vmem>>, vector<1x1x16x16xf32>
    %432 = vector.shape_cast %431 : vector<1x1x16x16xf32> to vector<16x16xf32>
    %433 = vector.broadcast %252 : f32 to vector<16x16xf32>
    %434 = arith.mulf %433, %432 : vector<16x16xf32>
    %435 = arith.addf %400, %434 : vector<16x16xf32>
    %c0_317 = arith.constant 0 : index
    %c2_318 = arith.constant 2 : index
    %c3_319 = arith.constant 3 : index
    %c0_320 = arith.constant 0 : index
    %436 = vector.load %arg6[%c0_317, %c2_318, %c3_319, %c0_320] : memref<2x7x22x16xf32, #tpu.memory_space<vmem>>, vector<1x1x16x16xf32>
    %437 = vector.shape_cast %436 : vector<1x1x16x16xf32> to vector<16x16xf32>
    %438 = vector.broadcast %253 : f32 to vector<16x16xf32>
    %439 = arith.mulf %438, %437 : vector<16x16xf32>
    %440 = arith.addf %405, %439 : vector<16x16xf32>
    %c0_321 = arith.constant 0 : index
    %c3_322 = arith.constant 3 : index
    %c3_323 = arith.constant 3 : index
    %c0_324 = arith.constant 0 : index
    %441 = vector.load %arg6[%c0_321, %c3_322, %c3_323, %c0_324] : memref<2x7x22x16xf32, #tpu.memory_space<vmem>>, vector<1x1x16x16xf32>
    %442 = vector.shape_cast %441 : vector<1x1x16x16xf32> to vector<16x16xf32>
    %443 = vector.broadcast %254 : f32 to vector<16x16xf32>
    %444 = arith.mulf %443, %442 : vector<16x16xf32>
    %445 = arith.addf %410, %444 : vector<16x16xf32>
    %c0_325 = arith.constant 0 : index
    %c4_326 = arith.constant 4 : index
    %c3_327 = arith.constant 3 : index
    %c0_328 = arith.constant 0 : index
    %446 = vector.load %arg6[%c0_325, %c4_326, %c3_327, %c0_328] : memref<2x7x22x16xf32, #tpu.memory_space<vmem>>, vector<1x1x16x16xf32>
    %447 = vector.shape_cast %446 : vector<1x1x16x16xf32> to vector<16x16xf32>
    %448 = vector.broadcast %255 : f32 to vector<16x16xf32>
    %449 = arith.mulf %448, %447 : vector<16x16xf32>
    %450 = arith.addf %415, %449 : vector<16x16xf32>
    %c0_329 = arith.constant 0 : index
    %c5_330 = arith.constant 5 : index
    %c3_331 = arith.constant 3 : index
    %c0_332 = arith.constant 0 : index
    %451 = vector.load %arg6[%c0_329, %c5_330, %c3_331, %c0_332] : memref<2x7x22x16xf32, #tpu.memory_space<vmem>>, vector<1x1x16x16xf32>
    %452 = vector.shape_cast %451 : vector<1x1x16x16xf32> to vector<16x16xf32>
    %453 = vector.broadcast %256 : f32 to vector<16x16xf32>
    %454 = arith.mulf %453, %452 : vector<16x16xf32>
    %455 = arith.addf %420, %454 : vector<16x16xf32>
    %c0_333 = arith.constant 0 : index
    %c6_334 = arith.constant 6 : index
    %c3_335 = arith.constant 3 : index
    %c0_336 = arith.constant 0 : index
    %456 = vector.load %arg6[%c0_333, %c6_334, %c3_335, %c0_336] : memref<2x7x22x16xf32, #tpu.memory_space<vmem>>, vector<1x1x16x16xf32>
    %457 = vector.shape_cast %456 : vector<1x1x16x16xf32> to vector<16x16xf32>
    %458 = vector.broadcast %257 : f32 to vector<16x16xf32>
    %459 = arith.mulf %458, %457 : vector<16x16xf32>
    %460 = arith.addf %425, %459 : vector<16x16xf32>
    %c0_337 = arith.constant 0 : index
    %c0_338 = arith.constant 0 : index
    %c4_339 = arith.constant 4 : index
    %c0_340 = arith.constant 0 : index
    %461 = vector.load %arg6[%c0_337, %c0_338, %c4_339, %c0_340] : memref<2x7x22x16xf32, #tpu.memory_space<vmem>>, vector<1x1x16x16xf32>
    %462 = vector.shape_cast %461 : vector<1x1x16x16xf32> to vector<16x16xf32>
    %463 = vector.broadcast %258 : f32 to vector<16x16xf32>
    %464 = arith.mulf %463, %462 : vector<16x16xf32>
    %465 = arith.addf %430, %464 : vector<16x16xf32>
    %c0_341 = arith.constant 0 : index
    %c1_342 = arith.constant 1 : index
    %c4_343 = arith.constant 4 : index
    %c0_344 = arith.constant 0 : index
    %466 = vector.load %arg6[%c0_341, %c1_342, %c4_343, %c0_344] : memref<2x7x22x16xf32, #tpu.memory_space<vmem>>, vector<1x1x16x16xf32>
    %467 = vector.shape_cast %466 : vector<1x1x16x16xf32> to vector<16x16xf32>
    %468 = vector.broadcast %259 : f32 to vector<16x16xf32>
    %469 = arith.mulf %468, %467 : vector<16x16xf32>
    %470 = arith.addf %435, %469 : vector<16x16xf32>
    %c0_345 = arith.constant 0 : index
    %c2_346 = arith.constant 2 : index
    %c4_347 = arith.constant 4 : index
    %c0_348 = arith.constant 0 : index
    %471 = vector.load %arg6[%c0_345, %c2_346, %c4_347, %c0_348] : memref<2x7x22x16xf32, #tpu.memory_space<vmem>>, vector<1x1x16x16xf32>
    %472 = vector.shape_cast %471 : vector<1x1x16x16xf32> to vector<16x16xf32>
    %473 = vector.broadcast %260 : f32 to vector<16x16xf32>
    %474 = arith.mulf %473, %472 : vector<16x16xf32>
    %475 = arith.addf %440, %474 : vector<16x16xf32>
    %c0_349 = arith.constant 0 : index
    %c3_350 = arith.constant 3 : index
    %c4_351 = arith.constant 4 : index
    %c0_352 = arith.constant 0 : index
    %476 = vector.load %arg6[%c0_349, %c3_350, %c4_351, %c0_352] : memref<2x7x22x16xf32, #tpu.memory_space<vmem>>, vector<1x1x16x16xf32>
    %477 = vector.shape_cast %476 : vector<1x1x16x16xf32> to vector<16x16xf32>
    %478 = vector.broadcast %261 : f32 to vector<16x16xf32>
    %479 = arith.mulf %478, %477 : vector<16x16xf32>
    %480 = arith.addf %445, %479 : vector<16x16xf32>
    %c0_353 = arith.constant 0 : index
    %c4_354 = arith.constant 4 : index
    %c4_355 = arith.constant 4 : index
    %c0_356 = arith.constant 0 : index
    %481 = vector.load %arg6[%c0_353, %c4_354, %c4_355, %c0_356] : memref<2x7x22x16xf32, #tpu.memory_space<vmem>>, vector<1x1x16x16xf32>
    %482 = vector.shape_cast %481 : vector<1x1x16x16xf32> to vector<16x16xf32>
    %483 = vector.broadcast %262 : f32 to vector<16x16xf32>
    %484 = arith.mulf %483, %482 : vector<16x16xf32>
    %485 = arith.addf %450, %484 : vector<16x16xf32>
    %c0_357 = arith.constant 0 : index
    %c5_358 = arith.constant 5 : index
    %c4_359 = arith.constant 4 : index
    %c0_360 = arith.constant 0 : index
    %486 = vector.load %arg6[%c0_357, %c5_358, %c4_359, %c0_360] : memref<2x7x22x16xf32, #tpu.memory_space<vmem>>, vector<1x1x16x16xf32>
    %487 = vector.shape_cast %486 : vector<1x1x16x16xf32> to vector<16x16xf32>
    %488 = vector.broadcast %263 : f32 to vector<16x16xf32>
    %489 = arith.mulf %488, %487 : vector<16x16xf32>
    %490 = arith.addf %455, %489 : vector<16x16xf32>
    %c0_361 = arith.constant 0 : index
    %c6_362 = arith.constant 6 : index
    %c4_363 = arith.constant 4 : index
    %c0_364 = arith.constant 0 : index
    %491 = vector.load %arg6[%c0_361, %c6_362, %c4_363, %c0_364] : memref<2x7x22x16xf32, #tpu.memory_space<vmem>>, vector<1x1x16x16xf32>
    %492 = vector.shape_cast %491 : vector<1x1x16x16xf32> to vector<16x16xf32>
    %493 = vector.broadcast %264 : f32 to vector<16x16xf32>
    %494 = arith.mulf %493, %492 : vector<16x16xf32>
    %495 = arith.addf %460, %494 : vector<16x16xf32>
    %c0_365 = arith.constant 0 : index
    %c0_366 = arith.constant 0 : index
    %c5_367 = arith.constant 5 : index
    %c0_368 = arith.constant 0 : index
    %496 = vector.load %arg6[%c0_365, %c0_366, %c5_367, %c0_368] : memref<2x7x22x16xf32, #tpu.memory_space<vmem>>, vector<1x1x16x16xf32>
    %497 = vector.shape_cast %496 : vector<1x1x16x16xf32> to vector<16x16xf32>
    %498 = vector.broadcast %265 : f32 to vector<16x16xf32>
    %499 = arith.mulf %498, %497 : vector<16x16xf32>
    %500 = arith.addf %465, %499 : vector<16x16xf32>
    %c0_369 = arith.constant 0 : index
    %c1_370 = arith.constant 1 : index
    %c5_371 = arith.constant 5 : index
    %c0_372 = arith.constant 0 : index
    %501 = vector.load %arg6[%c0_369, %c1_370, %c5_371, %c0_372] : memref<2x7x22x16xf32, #tpu.memory_space<vmem>>, vector<1x1x16x16xf32>
    %502 = vector.shape_cast %501 : vector<1x1x16x16xf32> to vector<16x16xf32>
    %503 = vector.broadcast %266 : f32 to vector<16x16xf32>
    %504 = arith.mulf %503, %502 : vector<16x16xf32>
    %505 = arith.addf %470, %504 : vector<16x16xf32>
    %c0_373 = arith.constant 0 : index
    %c2_374 = arith.constant 2 : index
    %c5_375 = arith.constant 5 : index
    %c0_376 = arith.constant 0 : index
    %506 = vector.load %arg6[%c0_373, %c2_374, %c5_375, %c0_376] : memref<2x7x22x16xf32, #tpu.memory_space<vmem>>, vector<1x1x16x16xf32>
    %507 = vector.shape_cast %506 : vector<1x1x16x16xf32> to vector<16x16xf32>
    %508 = vector.broadcast %267 : f32 to vector<16x16xf32>
    %509 = arith.mulf %508, %507 : vector<16x16xf32>
    %510 = arith.addf %475, %509 : vector<16x16xf32>
    %c0_377 = arith.constant 0 : index
    %c3_378 = arith.constant 3 : index
    %c5_379 = arith.constant 5 : index
    %c0_380 = arith.constant 0 : index
    %511 = vector.load %arg6[%c0_377, %c3_378, %c5_379, %c0_380] : memref<2x7x22x16xf32, #tpu.memory_space<vmem>>, vector<1x1x16x16xf32>
    %512 = vector.shape_cast %511 : vector<1x1x16x16xf32> to vector<16x16xf32>
    %513 = vector.broadcast %268 : f32 to vector<16x16xf32>
    %514 = arith.mulf %513, %512 : vector<16x16xf32>
    %515 = arith.addf %480, %514 : vector<16x16xf32>
    %c0_381 = arith.constant 0 : index
    %c4_382 = arith.constant 4 : index
    %c5_383 = arith.constant 5 : index
    %c0_384 = arith.constant 0 : index
    %516 = vector.load %arg6[%c0_381, %c4_382, %c5_383, %c0_384] : memref<2x7x22x16xf32, #tpu.memory_space<vmem>>, vector<1x1x16x16xf32>
    %517 = vector.shape_cast %516 : vector<1x1x16x16xf32> to vector<16x16xf32>
    %518 = vector.broadcast %269 : f32 to vector<16x16xf32>
    %519 = arith.mulf %518, %517 : vector<16x16xf32>
    %520 = arith.addf %485, %519 : vector<16x16xf32>
    %c0_385 = arith.constant 0 : index
    %c5_386 = arith.constant 5 : index
    %c5_387 = arith.constant 5 : index
    %c0_388 = arith.constant 0 : index
    %521 = vector.load %arg6[%c0_385, %c5_386, %c5_387, %c0_388] : memref<2x7x22x16xf32, #tpu.memory_space<vmem>>, vector<1x1x16x16xf32>
    %522 = vector.shape_cast %521 : vector<1x1x16x16xf32> to vector<16x16xf32>
    %523 = vector.broadcast %270 : f32 to vector<16x16xf32>
    %524 = arith.mulf %523, %522 : vector<16x16xf32>
    %525 = arith.addf %490, %524 : vector<16x16xf32>
    %c0_389 = arith.constant 0 : index
    %c6_390 = arith.constant 6 : index
    %c5_391 = arith.constant 5 : index
    %c0_392 = arith.constant 0 : index
    %526 = vector.load %arg6[%c0_389, %c6_390, %c5_391, %c0_392] : memref<2x7x22x16xf32, #tpu.memory_space<vmem>>, vector<1x1x16x16xf32>
    %527 = vector.shape_cast %526 : vector<1x1x16x16xf32> to vector<16x16xf32>
    %528 = vector.broadcast %271 : f32 to vector<16x16xf32>
    %529 = arith.mulf %528, %527 : vector<16x16xf32>
    %530 = arith.addf %495, %529 : vector<16x16xf32>
    %c0_393 = arith.constant 0 : index
    %c0_394 = arith.constant 0 : index
    %c6_395 = arith.constant 6 : index
    %c0_396 = arith.constant 0 : index
    %531 = vector.load %arg6[%c0_393, %c0_394, %c6_395, %c0_396] : memref<2x7x22x16xf32, #tpu.memory_space<vmem>>, vector<1x1x16x16xf32>
    %532 = vector.shape_cast %531 : vector<1x1x16x16xf32> to vector<16x16xf32>
    %533 = vector.broadcast %272 : f32 to vector<16x16xf32>
    %534 = arith.mulf %533, %532 : vector<16x16xf32>
    %535 = arith.addf %500, %534 : vector<16x16xf32>
    %c0_397 = arith.constant 0 : index
    %c1_398 = arith.constant 1 : index
    %c6_399 = arith.constant 6 : index
    %c0_400 = arith.constant 0 : index
    %536 = vector.load %arg6[%c0_397, %c1_398, %c6_399, %c0_400] : memref<2x7x22x16xf32, #tpu.memory_space<vmem>>, vector<1x1x16x16xf32>
    %537 = vector.shape_cast %536 : vector<1x1x16x16xf32> to vector<16x16xf32>
    %538 = vector.broadcast %273 : f32 to vector<16x16xf32>
    %539 = arith.mulf %538, %537 : vector<16x16xf32>
    %540 = arith.addf %505, %539 : vector<16x16xf32>
    %c0_401 = arith.constant 0 : index
    %c2_402 = arith.constant 2 : index
    %c6_403 = arith.constant 6 : index
    %c0_404 = arith.constant 0 : index
    %541 = vector.load %arg6[%c0_401, %c2_402, %c6_403, %c0_404] : memref<2x7x22x16xf32, #tpu.memory_space<vmem>>, vector<1x1x16x16xf32>
    %542 = vector.shape_cast %541 : vector<1x1x16x16xf32> to vector<16x16xf32>
    %543 = vector.broadcast %274 : f32 to vector<16x16xf32>
    %544 = arith.mulf %543, %542 : vector<16x16xf32>
    %545 = arith.addf %510, %544 : vector<16x16xf32>
    %c0_405 = arith.constant 0 : index
    %c3_406 = arith.constant 3 : index
    %c6_407 = arith.constant 6 : index
    %c0_408 = arith.constant 0 : index
    %546 = vector.load %arg6[%c0_405, %c3_406, %c6_407, %c0_408] : memref<2x7x22x16xf32, #tpu.memory_space<vmem>>, vector<1x1x16x16xf32>
    %547 = vector.shape_cast %546 : vector<1x1x16x16xf32> to vector<16x16xf32>
    %548 = vector.broadcast %275 : f32 to vector<16x16xf32>
    %549 = arith.mulf %548, %547 : vector<16x16xf32>
    %550 = arith.addf %515, %549 : vector<16x16xf32>
    %c0_409 = arith.constant 0 : index
    %c4_410 = arith.constant 4 : index
    %c6_411 = arith.constant 6 : index
    %c0_412 = arith.constant 0 : index
    %551 = vector.load %arg6[%c0_409, %c4_410, %c6_411, %c0_412] : memref<2x7x22x16xf32, #tpu.memory_space<vmem>>, vector<1x1x16x16xf32>
    %552 = vector.shape_cast %551 : vector<1x1x16x16xf32> to vector<16x16xf32>
    %553 = vector.broadcast %276 : f32 to vector<16x16xf32>
    %554 = arith.mulf %553, %552 : vector<16x16xf32>
    %555 = arith.addf %520, %554 : vector<16x16xf32>
    %c0_413 = arith.constant 0 : index
    %c5_414 = arith.constant 5 : index
    %c6_415 = arith.constant 6 : index
    %c0_416 = arith.constant 0 : index
    %556 = vector.load %arg6[%c0_413, %c5_414, %c6_415, %c0_416] : memref<2x7x22x16xf32, #tpu.memory_space<vmem>>, vector<1x1x16x16xf32>
    %557 = vector.shape_cast %556 : vector<1x1x16x16xf32> to vector<16x16xf32>
    %558 = vector.broadcast %277 : f32 to vector<16x16xf32>
    %559 = arith.mulf %558, %557 : vector<16x16xf32>
    %560 = arith.addf %525, %559 : vector<16x16xf32>
    %c0_417 = arith.constant 0 : index
    %c6_418 = arith.constant 6 : index
    %c6_419 = arith.constant 6 : index
    %c0_420 = arith.constant 0 : index
    %561 = vector.load %arg6[%c0_417, %c6_418, %c6_419, %c0_420] : memref<2x7x22x16xf32, #tpu.memory_space<vmem>>, vector<1x1x16x16xf32>
    %562 = vector.shape_cast %561 : vector<1x1x16x16xf32> to vector<16x16xf32>
    %563 = vector.broadcast %278 : f32 to vector<16x16xf32>
    %564 = arith.mulf %563, %562 : vector<16x16xf32>
    %565 = arith.addf %530, %564 : vector<16x16xf32>
    %c1_421 = arith.constant 1 : index
    %c0_422 = arith.constant 0 : index
    %c0_423 = arith.constant 0 : index
    %c0_424 = arith.constant 0 : index
    %566 = vector.load %arg6[%c1_421, %c0_422, %c0_423, %c0_424] : memref<2x7x22x16xf32, #tpu.memory_space<vmem>>, vector<1x1x16x16xf32>
    %567 = vector.shape_cast %566 : vector<1x1x16x16xf32> to vector<16x16xf32>
    %568 = vector.broadcast %279 : f32 to vector<16x16xf32>
    %569 = arith.mulf %568, %567 : vector<16x16xf32>
    %570 = arith.addf %535, %569 : vector<16x16xf32>
    %c1_425 = arith.constant 1 : index
    %c1_426 = arith.constant 1 : index
    %c0_427 = arith.constant 0 : index
    %c0_428 = arith.constant 0 : index
    %571 = vector.load %arg6[%c1_425, %c1_426, %c0_427, %c0_428] : memref<2x7x22x16xf32, #tpu.memory_space<vmem>>, vector<1x1x16x16xf32>
    %572 = vector.shape_cast %571 : vector<1x1x16x16xf32> to vector<16x16xf32>
    %573 = vector.broadcast %280 : f32 to vector<16x16xf32>
    %574 = arith.mulf %573, %572 : vector<16x16xf32>
    %575 = arith.addf %540, %574 : vector<16x16xf32>
    %c1_429 = arith.constant 1 : index
    %c2_430 = arith.constant 2 : index
    %c0_431 = arith.constant 0 : index
    %c0_432 = arith.constant 0 : index
    %576 = vector.load %arg6[%c1_429, %c2_430, %c0_431, %c0_432] : memref<2x7x22x16xf32, #tpu.memory_space<vmem>>, vector<1x1x16x16xf32>
    %577 = vector.shape_cast %576 : vector<1x1x16x16xf32> to vector<16x16xf32>
    %578 = vector.broadcast %281 : f32 to vector<16x16xf32>
    %579 = arith.mulf %578, %577 : vector<16x16xf32>
    %580 = arith.addf %545, %579 : vector<16x16xf32>
    %c1_433 = arith.constant 1 : index
    %c3_434 = arith.constant 3 : index
    %c0_435 = arith.constant 0 : index
    %c0_436 = arith.constant 0 : index
    %581 = vector.load %arg6[%c1_433, %c3_434, %c0_435, %c0_436] : memref<2x7x22x16xf32, #tpu.memory_space<vmem>>, vector<1x1x16x16xf32>
    %582 = vector.shape_cast %581 : vector<1x1x16x16xf32> to vector<16x16xf32>
    %583 = vector.broadcast %282 : f32 to vector<16x16xf32>
    %584 = arith.mulf %583, %582 : vector<16x16xf32>
    %585 = arith.addf %550, %584 : vector<16x16xf32>
    %c1_437 = arith.constant 1 : index
    %c4_438 = arith.constant 4 : index
    %c0_439 = arith.constant 0 : index
    %c0_440 = arith.constant 0 : index
    %586 = vector.load %arg6[%c1_437, %c4_438, %c0_439, %c0_440] : memref<2x7x22x16xf32, #tpu.memory_space<vmem>>, vector<1x1x16x16xf32>
    %587 = vector.shape_cast %586 : vector<1x1x16x16xf32> to vector<16x16xf32>
    %588 = vector.broadcast %283 : f32 to vector<16x16xf32>
    %589 = arith.mulf %588, %587 : vector<16x16xf32>
    %590 = arith.addf %555, %589 : vector<16x16xf32>
    %c1_441 = arith.constant 1 : index
    %c5_442 = arith.constant 5 : index
    %c0_443 = arith.constant 0 : index
    %c0_444 = arith.constant 0 : index
    %591 = vector.load %arg6[%c1_441, %c5_442, %c0_443, %c0_444] : memref<2x7x22x16xf32, #tpu.memory_space<vmem>>, vector<1x1x16x16xf32>
    %592 = vector.shape_cast %591 : vector<1x1x16x16xf32> to vector<16x16xf32>
    %593 = vector.broadcast %284 : f32 to vector<16x16xf32>
    %594 = arith.mulf %593, %592 : vector<16x16xf32>
    %595 = arith.addf %560, %594 : vector<16x16xf32>
    %c1_445 = arith.constant 1 : index
    %c6_446 = arith.constant 6 : index
    %c0_447 = arith.constant 0 : index
    %c0_448 = arith.constant 0 : index
    %596 = vector.load %arg6[%c1_445, %c6_446, %c0_447, %c0_448] : memref<2x7x22x16xf32, #tpu.memory_space<vmem>>, vector<1x1x16x16xf32>
    %597 = vector.shape_cast %596 : vector<1x1x16x16xf32> to vector<16x16xf32>
    %598 = vector.broadcast %285 : f32 to vector<16x16xf32>
    %599 = arith.mulf %598, %597 : vector<16x16xf32>
    %600 = arith.addf %565, %599 : vector<16x16xf32>
    %c1_449 = arith.constant 1 : index
    %c0_450 = arith.constant 0 : index
    %c1_451 = arith.constant 1 : index
    %c0_452 = arith.constant 0 : index
    %601 = vector.load %arg6[%c1_449, %c0_450, %c1_451, %c0_452] : memref<2x7x22x16xf32, #tpu.memory_space<vmem>>, vector<1x1x16x16xf32>
    %602 = vector.shape_cast %601 : vector<1x1x16x16xf32> to vector<16x16xf32>
    %603 = vector.broadcast %286 : f32 to vector<16x16xf32>
    %604 = arith.mulf %603, %602 : vector<16x16xf32>
    %605 = arith.addf %570, %604 : vector<16x16xf32>
    %c1_453 = arith.constant 1 : index
    %c1_454 = arith.constant 1 : index
    %c1_455 = arith.constant 1 : index
    %c0_456 = arith.constant 0 : index
    %606 = vector.load %arg6[%c1_453, %c1_454, %c1_455, %c0_456] : memref<2x7x22x16xf32, #tpu.memory_space<vmem>>, vector<1x1x16x16xf32>
    %607 = vector.shape_cast %606 : vector<1x1x16x16xf32> to vector<16x16xf32>
    %608 = vector.broadcast %287 : f32 to vector<16x16xf32>
    %609 = arith.mulf %608, %607 : vector<16x16xf32>
    %610 = arith.addf %575, %609 : vector<16x16xf32>
    %c1_457 = arith.constant 1 : index
    %c2_458 = arith.constant 2 : index
    %c1_459 = arith.constant 1 : index
    %c0_460 = arith.constant 0 : index
    %611 = vector.load %arg6[%c1_457, %c2_458, %c1_459, %c0_460] : memref<2x7x22x16xf32, #tpu.memory_space<vmem>>, vector<1x1x16x16xf32>
    %612 = vector.shape_cast %611 : vector<1x1x16x16xf32> to vector<16x16xf32>
    %613 = vector.broadcast %288 : f32 to vector<16x16xf32>
    %614 = arith.mulf %613, %612 : vector<16x16xf32>
    %615 = arith.addf %580, %614 : vector<16x16xf32>
    %c1_461 = arith.constant 1 : index
    %c3_462 = arith.constant 3 : index
    %c1_463 = arith.constant 1 : index
    %c0_464 = arith.constant 0 : index
    %616 = vector.load %arg6[%c1_461, %c3_462, %c1_463, %c0_464] : memref<2x7x22x16xf32, #tpu.memory_space<vmem>>, vector<1x1x16x16xf32>
    %617 = vector.shape_cast %616 : vector<1x1x16x16xf32> to vector<16x16xf32>
    %618 = vector.broadcast %289 : f32 to vector<16x16xf32>
    %619 = arith.mulf %618, %617 : vector<16x16xf32>
    %620 = arith.addf %585, %619 : vector<16x16xf32>
    %c1_465 = arith.constant 1 : index
    %c4_466 = arith.constant 4 : index
    %c1_467 = arith.constant 1 : index
    %c0_468 = arith.constant 0 : index
    %621 = vector.load %arg6[%c1_465, %c4_466, %c1_467, %c0_468] : memref<2x7x22x16xf32, #tpu.memory_space<vmem>>, vector<1x1x16x16xf32>
    %622 = vector.shape_cast %621 : vector<1x1x16x16xf32> to vector<16x16xf32>
    %623 = vector.broadcast %290 : f32 to vector<16x16xf32>
    %624 = arith.mulf %623, %622 : vector<16x16xf32>
    %625 = arith.addf %590, %624 : vector<16x16xf32>
    %c1_469 = arith.constant 1 : index
    %c5_470 = arith.constant 5 : index
    %c1_471 = arith.constant 1 : index
    %c0_472 = arith.constant 0 : index
    %626 = vector.load %arg6[%c1_469, %c5_470, %c1_471, %c0_472] : memref<2x7x22x16xf32, #tpu.memory_space<vmem>>, vector<1x1x16x16xf32>
    %627 = vector.shape_cast %626 : vector<1x1x16x16xf32> to vector<16x16xf32>
    %628 = vector.broadcast %291 : f32 to vector<16x16xf32>
    %629 = arith.mulf %628, %627 : vector<16x16xf32>
    %630 = arith.addf %595, %629 : vector<16x16xf32>
    %c1_473 = arith.constant 1 : index
    %c6_474 = arith.constant 6 : index
    %c1_475 = arith.constant 1 : index
    %c0_476 = arith.constant 0 : index
    %631 = vector.load %arg6[%c1_473, %c6_474, %c1_475, %c0_476] : memref<2x7x22x16xf32, #tpu.memory_space<vmem>>, vector<1x1x16x16xf32>
    %632 = vector.shape_cast %631 : vector<1x1x16x16xf32> to vector<16x16xf32>
    %633 = vector.broadcast %292 : f32 to vector<16x16xf32>
    %634 = arith.mulf %633, %632 : vector<16x16xf32>
    %635 = arith.addf %600, %634 : vector<16x16xf32>
    %c1_477 = arith.constant 1 : index
    %c0_478 = arith.constant 0 : index
    %c2_479 = arith.constant 2 : index
    %c0_480 = arith.constant 0 : index
    %636 = vector.load %arg6[%c1_477, %c0_478, %c2_479, %c0_480] : memref<2x7x22x16xf32, #tpu.memory_space<vmem>>, vector<1x1x16x16xf32>
    %637 = vector.shape_cast %636 : vector<1x1x16x16xf32> to vector<16x16xf32>
    %638 = vector.broadcast %293 : f32 to vector<16x16xf32>
    %639 = arith.mulf %638, %637 : vector<16x16xf32>
    %640 = arith.addf %605, %639 : vector<16x16xf32>
    %c1_481 = arith.constant 1 : index
    %c1_482 = arith.constant 1 : index
    %c2_483 = arith.constant 2 : index
    %c0_484 = arith.constant 0 : index
    %641 = vector.load %arg6[%c1_481, %c1_482, %c2_483, %c0_484] : memref<2x7x22x16xf32, #tpu.memory_space<vmem>>, vector<1x1x16x16xf32>
    %642 = vector.shape_cast %641 : vector<1x1x16x16xf32> to vector<16x16xf32>
    %643 = vector.broadcast %294 : f32 to vector<16x16xf32>
    %644 = arith.mulf %643, %642 : vector<16x16xf32>
    %645 = arith.addf %610, %644 : vector<16x16xf32>
    %c1_485 = arith.constant 1 : index
    %c2_486 = arith.constant 2 : index
    %c2_487 = arith.constant 2 : index
    %c0_488 = arith.constant 0 : index
    %646 = vector.load %arg6[%c1_485, %c2_486, %c2_487, %c0_488] : memref<2x7x22x16xf32, #tpu.memory_space<vmem>>, vector<1x1x16x16xf32>
    %647 = vector.shape_cast %646 : vector<1x1x16x16xf32> to vector<16x16xf32>
    %648 = vector.broadcast %295 : f32 to vector<16x16xf32>
    %649 = arith.mulf %648, %647 : vector<16x16xf32>
    %650 = arith.addf %615, %649 : vector<16x16xf32>
    %c1_489 = arith.constant 1 : index
    %c3_490 = arith.constant 3 : index
    %c2_491 = arith.constant 2 : index
    %c0_492 = arith.constant 0 : index
    %651 = vector.load %arg6[%c1_489, %c3_490, %c2_491, %c0_492] : memref<2x7x22x16xf32, #tpu.memory_space<vmem>>, vector<1x1x16x16xf32>
    %652 = vector.shape_cast %651 : vector<1x1x16x16xf32> to vector<16x16xf32>
    %653 = vector.broadcast %296 : f32 to vector<16x16xf32>
    %654 = arith.mulf %653, %652 : vector<16x16xf32>
    %655 = arith.addf %620, %654 : vector<16x16xf32>
    %c1_493 = arith.constant 1 : index
    %c4_494 = arith.constant 4 : index
    %c2_495 = arith.constant 2 : index
    %c0_496 = arith.constant 0 : index
    %656 = vector.load %arg6[%c1_493, %c4_494, %c2_495, %c0_496] : memref<2x7x22x16xf32, #tpu.memory_space<vmem>>, vector<1x1x16x16xf32>
    %657 = vector.shape_cast %656 : vector<1x1x16x16xf32> to vector<16x16xf32>
    %658 = vector.broadcast %297 : f32 to vector<16x16xf32>
    %659 = arith.mulf %658, %657 : vector<16x16xf32>
    %660 = arith.addf %625, %659 : vector<16x16xf32>
    %c1_497 = arith.constant 1 : index
    %c5_498 = arith.constant 5 : index
    %c2_499 = arith.constant 2 : index
    %c0_500 = arith.constant 0 : index
    %661 = vector.load %arg6[%c1_497, %c5_498, %c2_499, %c0_500] : memref<2x7x22x16xf32, #tpu.memory_space<vmem>>, vector<1x1x16x16xf32>
    %662 = vector.shape_cast %661 : vector<1x1x16x16xf32> to vector<16x16xf32>
    %663 = vector.broadcast %298 : f32 to vector<16x16xf32>
    %664 = arith.mulf %663, %662 : vector<16x16xf32>
    %665 = arith.addf %630, %664 : vector<16x16xf32>
    %c1_501 = arith.constant 1 : index
    %c6_502 = arith.constant 6 : index
    %c2_503 = arith.constant 2 : index
    %c0_504 = arith.constant 0 : index
    %666 = vector.load %arg6[%c1_501, %c6_502, %c2_503, %c0_504] : memref<2x7x22x16xf32, #tpu.memory_space<vmem>>, vector<1x1x16x16xf32>
    %667 = vector.shape_cast %666 : vector<1x1x16x16xf32> to vector<16x16xf32>
    %668 = vector.broadcast %299 : f32 to vector<16x16xf32>
    %669 = arith.mulf %668, %667 : vector<16x16xf32>
    %670 = arith.addf %635, %669 : vector<16x16xf32>
    %c1_505 = arith.constant 1 : index
    %c0_506 = arith.constant 0 : index
    %c3_507 = arith.constant 3 : index
    %c0_508 = arith.constant 0 : index
    %671 = vector.load %arg6[%c1_505, %c0_506, %c3_507, %c0_508] : memref<2x7x22x16xf32, #tpu.memory_space<vmem>>, vector<1x1x16x16xf32>
    %672 = vector.shape_cast %671 : vector<1x1x16x16xf32> to vector<16x16xf32>
    %673 = vector.broadcast %300 : f32 to vector<16x16xf32>
    %674 = arith.mulf %673, %672 : vector<16x16xf32>
    %675 = arith.addf %640, %674 : vector<16x16xf32>
    %c1_509 = arith.constant 1 : index
    %c1_510 = arith.constant 1 : index
    %c3_511 = arith.constant 3 : index
    %c0_512 = arith.constant 0 : index
    %676 = vector.load %arg6[%c1_509, %c1_510, %c3_511, %c0_512] : memref<2x7x22x16xf32, #tpu.memory_space<vmem>>, vector<1x1x16x16xf32>
    %677 = vector.shape_cast %676 : vector<1x1x16x16xf32> to vector<16x16xf32>
    %678 = vector.broadcast %301 : f32 to vector<16x16xf32>
    %679 = arith.mulf %678, %677 : vector<16x16xf32>
    %680 = arith.addf %645, %679 : vector<16x16xf32>
    %c1_513 = arith.constant 1 : index
    %c2_514 = arith.constant 2 : index
    %c3_515 = arith.constant 3 : index
    %c0_516 = arith.constant 0 : index
    %681 = vector.load %arg6[%c1_513, %c2_514, %c3_515, %c0_516] : memref<2x7x22x16xf32, #tpu.memory_space<vmem>>, vector<1x1x16x16xf32>
    %682 = vector.shape_cast %681 : vector<1x1x16x16xf32> to vector<16x16xf32>
    %683 = vector.broadcast %302 : f32 to vector<16x16xf32>
    %684 = arith.mulf %683, %682 : vector<16x16xf32>
    %685 = arith.addf %650, %684 : vector<16x16xf32>
    %c1_517 = arith.constant 1 : index
    %c3_518 = arith.constant 3 : index
    %c3_519 = arith.constant 3 : index
    %c0_520 = arith.constant 0 : index
    %686 = vector.load %arg6[%c1_517, %c3_518, %c3_519, %c0_520] : memref<2x7x22x16xf32, #tpu.memory_space<vmem>>, vector<1x1x16x16xf32>
    %687 = vector.shape_cast %686 : vector<1x1x16x16xf32> to vector<16x16xf32>
    %688 = vector.broadcast %303 : f32 to vector<16x16xf32>
    %689 = arith.mulf %688, %687 : vector<16x16xf32>
    %690 = arith.addf %655, %689 : vector<16x16xf32>
    %c1_521 = arith.constant 1 : index
    %c4_522 = arith.constant 4 : index
    %c3_523 = arith.constant 3 : index
    %c0_524 = arith.constant 0 : index
    %691 = vector.load %arg6[%c1_521, %c4_522, %c3_523, %c0_524] : memref<2x7x22x16xf32, #tpu.memory_space<vmem>>, vector<1x1x16x16xf32>
    %692 = vector.shape_cast %691 : vector<1x1x16x16xf32> to vector<16x16xf32>
    %693 = vector.broadcast %304 : f32 to vector<16x16xf32>
    %694 = arith.mulf %693, %692 : vector<16x16xf32>
    %695 = arith.addf %660, %694 : vector<16x16xf32>
    %c1_525 = arith.constant 1 : index
    %c5_526 = arith.constant 5 : index
    %c3_527 = arith.constant 3 : index
    %c0_528 = arith.constant 0 : index
    %696 = vector.load %arg6[%c1_525, %c5_526, %c3_527, %c0_528] : memref<2x7x22x16xf32, #tpu.memory_space<vmem>>, vector<1x1x16x16xf32>
    %697 = vector.shape_cast %696 : vector<1x1x16x16xf32> to vector<16x16xf32>
    %698 = vector.broadcast %305 : f32 to vector<16x16xf32>
    %699 = arith.mulf %698, %697 : vector<16x16xf32>
    %700 = arith.addf %665, %699 : vector<16x16xf32>
    %c1_529 = arith.constant 1 : index
    %c6_530 = arith.constant 6 : index
    %c3_531 = arith.constant 3 : index
    %c0_532 = arith.constant 0 : index
    %701 = vector.load %arg6[%c1_529, %c6_530, %c3_531, %c0_532] : memref<2x7x22x16xf32, #tpu.memory_space<vmem>>, vector<1x1x16x16xf32>
    %702 = vector.shape_cast %701 : vector<1x1x16x16xf32> to vector<16x16xf32>
    %703 = vector.broadcast %306 : f32 to vector<16x16xf32>
    %704 = arith.mulf %703, %702 : vector<16x16xf32>
    %705 = arith.addf %670, %704 : vector<16x16xf32>
    %c1_533 = arith.constant 1 : index
    %c0_534 = arith.constant 0 : index
    %c4_535 = arith.constant 4 : index
    %c0_536 = arith.constant 0 : index
    %706 = vector.load %arg6[%c1_533, %c0_534, %c4_535, %c0_536] : memref<2x7x22x16xf32, #tpu.memory_space<vmem>>, vector<1x1x16x16xf32>
    %707 = vector.shape_cast %706 : vector<1x1x16x16xf32> to vector<16x16xf32>
    %708 = vector.broadcast %307 : f32 to vector<16x16xf32>
    %709 = arith.mulf %708, %707 : vector<16x16xf32>
    %710 = arith.addf %675, %709 : vector<16x16xf32>
    %c1_537 = arith.constant 1 : index
    %c1_538 = arith.constant 1 : index
    %c4_539 = arith.constant 4 : index
    %c0_540 = arith.constant 0 : index
    %711 = vector.load %arg6[%c1_537, %c1_538, %c4_539, %c0_540] : memref<2x7x22x16xf32, #tpu.memory_space<vmem>>, vector<1x1x16x16xf32>
    %712 = vector.shape_cast %711 : vector<1x1x16x16xf32> to vector<16x16xf32>
    %713 = vector.broadcast %308 : f32 to vector<16x16xf32>
    %714 = arith.mulf %713, %712 : vector<16x16xf32>
    %715 = arith.addf %680, %714 : vector<16x16xf32>
    %c1_541 = arith.constant 1 : index
    %c2_542 = arith.constant 2 : index
    %c4_543 = arith.constant 4 : index
    %c0_544 = arith.constant 0 : index
    %716 = vector.load %arg6[%c1_541, %c2_542, %c4_543, %c0_544] : memref<2x7x22x16xf32, #tpu.memory_space<vmem>>, vector<1x1x16x16xf32>
    %717 = vector.shape_cast %716 : vector<1x1x16x16xf32> to vector<16x16xf32>
    %718 = vector.broadcast %309 : f32 to vector<16x16xf32>
    %719 = arith.mulf %718, %717 : vector<16x16xf32>
    %720 = arith.addf %685, %719 : vector<16x16xf32>
    %c1_545 = arith.constant 1 : index
    %c3_546 = arith.constant 3 : index
    %c4_547 = arith.constant 4 : index
    %c0_548 = arith.constant 0 : index
    %721 = vector.load %arg6[%c1_545, %c3_546, %c4_547, %c0_548] : memref<2x7x22x16xf32, #tpu.memory_space<vmem>>, vector<1x1x16x16xf32>
    %722 = vector.shape_cast %721 : vector<1x1x16x16xf32> to vector<16x16xf32>
    %723 = vector.broadcast %310 : f32 to vector<16x16xf32>
    %724 = arith.mulf %723, %722 : vector<16x16xf32>
    %725 = arith.addf %690, %724 : vector<16x16xf32>
    %c1_549 = arith.constant 1 : index
    %c4_550 = arith.constant 4 : index
    %c4_551 = arith.constant 4 : index
    %c0_552 = arith.constant 0 : index
    %726 = vector.load %arg6[%c1_549, %c4_550, %c4_551, %c0_552] : memref<2x7x22x16xf32, #tpu.memory_space<vmem>>, vector<1x1x16x16xf32>
    %727 = vector.shape_cast %726 : vector<1x1x16x16xf32> to vector<16x16xf32>
    %728 = vector.broadcast %311 : f32 to vector<16x16xf32>
    %729 = arith.mulf %728, %727 : vector<16x16xf32>
    %730 = arith.addf %695, %729 : vector<16x16xf32>
    %c1_553 = arith.constant 1 : index
    %c5_554 = arith.constant 5 : index
    %c4_555 = arith.constant 4 : index
    %c0_556 = arith.constant 0 : index
    %731 = vector.load %arg6[%c1_553, %c5_554, %c4_555, %c0_556] : memref<2x7x22x16xf32, #tpu.memory_space<vmem>>, vector<1x1x16x16xf32>
    %732 = vector.shape_cast %731 : vector<1x1x16x16xf32> to vector<16x16xf32>
    %733 = vector.broadcast %312 : f32 to vector<16x16xf32>
    %734 = arith.mulf %733, %732 : vector<16x16xf32>
    %735 = arith.addf %700, %734 : vector<16x16xf32>
    %c1_557 = arith.constant 1 : index
    %c6_558 = arith.constant 6 : index
    %c4_559 = arith.constant 4 : index
    %c0_560 = arith.constant 0 : index
    %736 = vector.load %arg6[%c1_557, %c6_558, %c4_559, %c0_560] : memref<2x7x22x16xf32, #tpu.memory_space<vmem>>, vector<1x1x16x16xf32>
    %737 = vector.shape_cast %736 : vector<1x1x16x16xf32> to vector<16x16xf32>
    %738 = vector.broadcast %313 : f32 to vector<16x16xf32>
    %739 = arith.mulf %738, %737 : vector<16x16xf32>
    %740 = arith.addf %705, %739 : vector<16x16xf32>
    %c1_561 = arith.constant 1 : index
    %c0_562 = arith.constant 0 : index
    %c5_563 = arith.constant 5 : index
    %c0_564 = arith.constant 0 : index
    %741 = vector.load %arg6[%c1_561, %c0_562, %c5_563, %c0_564] : memref<2x7x22x16xf32, #tpu.memory_space<vmem>>, vector<1x1x16x16xf32>
    %742 = vector.shape_cast %741 : vector<1x1x16x16xf32> to vector<16x16xf32>
    %743 = vector.broadcast %314 : f32 to vector<16x16xf32>
    %744 = arith.mulf %743, %742 : vector<16x16xf32>
    %745 = arith.addf %710, %744 : vector<16x16xf32>
    %c1_565 = arith.constant 1 : index
    %c1_566 = arith.constant 1 : index
    %c5_567 = arith.constant 5 : index
    %c0_568 = arith.constant 0 : index
    %746 = vector.load %arg6[%c1_565, %c1_566, %c5_567, %c0_568] : memref<2x7x22x16xf32, #tpu.memory_space<vmem>>, vector<1x1x16x16xf32>
    %747 = vector.shape_cast %746 : vector<1x1x16x16xf32> to vector<16x16xf32>
    %748 = vector.broadcast %315 : f32 to vector<16x16xf32>
    %749 = arith.mulf %748, %747 : vector<16x16xf32>
    %750 = arith.addf %715, %749 : vector<16x16xf32>
    %c1_569 = arith.constant 1 : index
    %c2_570 = arith.constant 2 : index
    %c5_571 = arith.constant 5 : index
    %c0_572 = arith.constant 0 : index
    %751 = vector.load %arg6[%c1_569, %c2_570, %c5_571, %c0_572] : memref<2x7x22x16xf32, #tpu.memory_space<vmem>>, vector<1x1x16x16xf32>
    %752 = vector.shape_cast %751 : vector<1x1x16x16xf32> to vector<16x16xf32>
    %753 = vector.broadcast %316 : f32 to vector<16x16xf32>
    %754 = arith.mulf %753, %752 : vector<16x16xf32>
    %755 = arith.addf %720, %754 : vector<16x16xf32>
    %c1_573 = arith.constant 1 : index
    %c3_574 = arith.constant 3 : index
    %c5_575 = arith.constant 5 : index
    %c0_576 = arith.constant 0 : index
    %756 = vector.load %arg6[%c1_573, %c3_574, %c5_575, %c0_576] : memref<2x7x22x16xf32, #tpu.memory_space<vmem>>, vector<1x1x16x16xf32>
    %757 = vector.shape_cast %756 : vector<1x1x16x16xf32> to vector<16x16xf32>
    %758 = vector.broadcast %317 : f32 to vector<16x16xf32>
    %759 = arith.mulf %758, %757 : vector<16x16xf32>
    %760 = arith.addf %725, %759 : vector<16x16xf32>
    %c1_577 = arith.constant 1 : index
    %c4_578 = arith.constant 4 : index
    %c5_579 = arith.constant 5 : index
    %c0_580 = arith.constant 0 : index
    %761 = vector.load %arg6[%c1_577, %c4_578, %c5_579, %c0_580] : memref<2x7x22x16xf32, #tpu.memory_space<vmem>>, vector<1x1x16x16xf32>
    %762 = vector.shape_cast %761 : vector<1x1x16x16xf32> to vector<16x16xf32>
    %763 = vector.broadcast %318 : f32 to vector<16x16xf32>
    %764 = arith.mulf %763, %762 : vector<16x16xf32>
    %765 = arith.addf %730, %764 : vector<16x16xf32>
    %c1_581 = arith.constant 1 : index
    %c5_582 = arith.constant 5 : index
    %c5_583 = arith.constant 5 : index
    %c0_584 = arith.constant 0 : index
    %766 = vector.load %arg6[%c1_581, %c5_582, %c5_583, %c0_584] : memref<2x7x22x16xf32, #tpu.memory_space<vmem>>, vector<1x1x16x16xf32>
    %767 = vector.shape_cast %766 : vector<1x1x16x16xf32> to vector<16x16xf32>
    %768 = vector.broadcast %319 : f32 to vector<16x16xf32>
    %769 = arith.mulf %768, %767 : vector<16x16xf32>
    %770 = arith.addf %735, %769 : vector<16x16xf32>
    %c1_585 = arith.constant 1 : index
    %c6_586 = arith.constant 6 : index
    %c5_587 = arith.constant 5 : index
    %c0_588 = arith.constant 0 : index
    %771 = vector.load %arg6[%c1_585, %c6_586, %c5_587, %c0_588] : memref<2x7x22x16xf32, #tpu.memory_space<vmem>>, vector<1x1x16x16xf32>
    %772 = vector.shape_cast %771 : vector<1x1x16x16xf32> to vector<16x16xf32>
    %773 = vector.broadcast %320 : f32 to vector<16x16xf32>
    %774 = arith.mulf %773, %772 : vector<16x16xf32>
    %775 = arith.addf %740, %774 : vector<16x16xf32>
    %c1_589 = arith.constant 1 : index
    %c0_590 = arith.constant 0 : index
    %c6_591 = arith.constant 6 : index
    %c0_592 = arith.constant 0 : index
    %776 = vector.load %arg6[%c1_589, %c0_590, %c6_591, %c0_592] : memref<2x7x22x16xf32, #tpu.memory_space<vmem>>, vector<1x1x16x16xf32>
    %777 = vector.shape_cast %776 : vector<1x1x16x16xf32> to vector<16x16xf32>
    %778 = vector.broadcast %321 : f32 to vector<16x16xf32>
    %779 = arith.mulf %778, %777 : vector<16x16xf32>
    %780 = arith.addf %745, %779 : vector<16x16xf32>
    %c1_593 = arith.constant 1 : index
    %c1_594 = arith.constant 1 : index
    %c6_595 = arith.constant 6 : index
    %c0_596 = arith.constant 0 : index
    %781 = vector.load %arg6[%c1_593, %c1_594, %c6_595, %c0_596] : memref<2x7x22x16xf32, #tpu.memory_space<vmem>>, vector<1x1x16x16xf32>
    %782 = vector.shape_cast %781 : vector<1x1x16x16xf32> to vector<16x16xf32>
    %783 = vector.broadcast %322 : f32 to vector<16x16xf32>
    %784 = arith.mulf %783, %782 : vector<16x16xf32>
    %785 = arith.addf %750, %784 : vector<16x16xf32>
    %c1_597 = arith.constant 1 : index
    %c2_598 = arith.constant 2 : index
    %c6_599 = arith.constant 6 : index
    %c0_600 = arith.constant 0 : index
    %786 = vector.load %arg6[%c1_597, %c2_598, %c6_599, %c0_600] : memref<2x7x22x16xf32, #tpu.memory_space<vmem>>, vector<1x1x16x16xf32>
    %787 = vector.shape_cast %786 : vector<1x1x16x16xf32> to vector<16x16xf32>
    %788 = vector.broadcast %323 : f32 to vector<16x16xf32>
    %789 = arith.mulf %788, %787 : vector<16x16xf32>
    %790 = arith.addf %755, %789 : vector<16x16xf32>
    %c1_601 = arith.constant 1 : index
    %c3_602 = arith.constant 3 : index
    %c6_603 = arith.constant 6 : index
    %c0_604 = arith.constant 0 : index
    %791 = vector.load %arg6[%c1_601, %c3_602, %c6_603, %c0_604] : memref<2x7x22x16xf32, #tpu.memory_space<vmem>>, vector<1x1x16x16xf32>
    %792 = vector.shape_cast %791 : vector<1x1x16x16xf32> to vector<16x16xf32>
    %793 = vector.broadcast %324 : f32 to vector<16x16xf32>
    %794 = arith.mulf %793, %792 : vector<16x16xf32>
    %795 = arith.addf %760, %794 : vector<16x16xf32>
    %c1_605 = arith.constant 1 : index
    %c4_606 = arith.constant 4 : index
    %c6_607 = arith.constant 6 : index
    %c0_608 = arith.constant 0 : index
    %796 = vector.load %arg6[%c1_605, %c4_606, %c6_607, %c0_608] : memref<2x7x22x16xf32, #tpu.memory_space<vmem>>, vector<1x1x16x16xf32>
    %797 = vector.shape_cast %796 : vector<1x1x16x16xf32> to vector<16x16xf32>
    %798 = vector.broadcast %325 : f32 to vector<16x16xf32>
    %799 = arith.mulf %798, %797 : vector<16x16xf32>
    %800 = arith.addf %765, %799 : vector<16x16xf32>
    %c1_609 = arith.constant 1 : index
    %c5_610 = arith.constant 5 : index
    %c6_611 = arith.constant 6 : index
    %c0_612 = arith.constant 0 : index
    %801 = vector.load %arg6[%c1_609, %c5_610, %c6_611, %c0_612] : memref<2x7x22x16xf32, #tpu.memory_space<vmem>>, vector<1x1x16x16xf32>
    %802 = vector.shape_cast %801 : vector<1x1x16x16xf32> to vector<16x16xf32>
    %803 = vector.broadcast %326 : f32 to vector<16x16xf32>
    %804 = arith.mulf %803, %802 : vector<16x16xf32>
    %805 = arith.addf %770, %804 : vector<16x16xf32>
    %c1_613 = arith.constant 1 : index
    %c6_614 = arith.constant 6 : index
    %c6_615 = arith.constant 6 : index
    %c0_616 = arith.constant 0 : index
    %806 = vector.load %arg6[%c1_613, %c6_614, %c6_615, %c0_616] : memref<2x7x22x16xf32, #tpu.memory_space<vmem>>, vector<1x1x16x16xf32>
    %807 = vector.shape_cast %806 : vector<1x1x16x16xf32> to vector<16x16xf32>
    %808 = vector.broadcast %327 : f32 to vector<16x16xf32>
    %809 = arith.mulf %808, %807 : vector<16x16xf32>
    %810 = arith.addf %775, %809 : vector<16x16xf32>
    %811 = arith.addf %780, %785 : vector<16x16xf32>
    %812 = arith.addf %790, %795 : vector<16x16xf32>
    %813 = arith.addf %811, %812 : vector<16x16xf32>
    %814 = arith.addf %800, %805 : vector<16x16xf32>
    %815 = arith.addf %814, %810 : vector<16x16xf32>
    %816 = arith.addf %813, %815 : vector<16x16xf32>
    %c0_617 = arith.constant 0 : index
    %817 = memref.load %arg3[%c0_617] : memref<2xf32, #tpu.memory_space<smem>>
    %818 = vector.broadcast %817 : f32 to vector<16x16xf32>
    %819 = arith.mulf %816, %818 : vector<16x16xf32>
    %c1_618 = arith.constant 1 : index
    %820 = memref.load %arg3[%c1_618] : memref<2xf32, #tpu.memory_space<smem>>
    %821 = vector.broadcast %820 : f32 to vector<16x16xf32>
    %822 = arith.addf %819, %821 : vector<16x16xf32>
    %cst_619 = arith.constant 0.000000e+00 : f32
    %823 = vector.broadcast %cst_619 : f32 to vector<16x16xf32>
    %824 = arith.subf %823, %822 : vector<16x16xf32>
    %825 = math.exp %824 : vector<16x16xf32>
    %cst_620 = arith.constant 1.000000e+00 : f32
    %826 = vector.broadcast %cst_620 : f32 to vector<16x16xf32>
    %827 = arith.addf %826, %825 : vector<16x16xf32>
    %828 = tpu.reciprocal %827 {approx = true} : vector<16x16xf32> -> vector<16x16xf32>
    %829 = vector.extract_strided_slice %828 {offsets = [0, 0], sizes = [1, 16], strides = [1, 1]} : vector<16x16xf32> to vector<1x16xf32>
    %830 = vector.shape_cast %829 : vector<1x16xf32> to vector<16xf32>
    %c0_621 = arith.constant 0 : index
    %c0_622 = arith.constant 0 : index
    %831 = vector.load %arg7[%c0_621, %c0_622] : memref<1x256xf32, #tpu.memory_space<vmem>>, vector<1x16xf32>
    %832 = vector.shape_cast %831 : vector<1x16xf32> to vector<16xf32>
    %833 = vector.shape_cast %830 : vector<16xf32> to vector<1x16xf32>
    tpu.vector_store %arg7[%c0_621, %c0_622], %833 {strides = array<i32>} : memref<1x256xf32, #tpu.memory_space<vmem>>, vector<1x16xf32>,
    %834 = vector.extract_strided_slice %828 {offsets = [1, 0], sizes = [1, 16], strides = [1, 1]} : vector<16x16xf32> to vector<1x16xf32>
    %835 = vector.shape_cast %834 : vector<1x16xf32> to vector<16xf32>
    %c0_623 = arith.constant 0 : index
    %c16_624 = arith.constant 16 : index
    %836 = vector.load %arg7[%c0_623, %c16_624] : memref<1x256xf32, #tpu.memory_space<vmem>>, vector<1x16xf32>
    %837 = vector.shape_cast %836 : vector<1x16xf32> to vector<16xf32>
    %838 = vector.shape_cast %835 : vector<16xf32> to vector<1x16xf32>
    tpu.vector_store %arg7[%c0_623, %c16_624], %838 {strides = array<i32>} : memref<1x256xf32, #tpu.memory_space<vmem>>, vector<1x16xf32>,
    %839 = vector.extract_strided_slice %828 {offsets = [2, 0], sizes = [1, 16], strides = [1, 1]} : vector<16x16xf32> to vector<1x16xf32>
    %840 = vector.shape_cast %839 : vector<1x16xf32> to vector<16xf32>
    %c0_625 = arith.constant 0 : index
    %c32_626 = arith.constant 32 : index
    %841 = vector.load %arg7[%c0_625, %c32_626] : memref<1x256xf32, #tpu.memory_space<vmem>>, vector<1x16xf32>
    %842 = vector.shape_cast %841 : vector<1x16xf32> to vector<16xf32>
    %843 = vector.shape_cast %840 : vector<16xf32> to vector<1x16xf32>
    tpu.vector_store %arg7[%c0_625, %c32_626], %843 {strides = array<i32>} : memref<1x256xf32, #tpu.memory_space<vmem>>, vector<1x16xf32>,
    %844 = vector.extract_strided_slice %828 {offsets = [3, 0], sizes = [1, 16], strides = [1, 1]} : vector<16x16xf32> to vector<1x16xf32>
    %845 = vector.shape_cast %844 : vector<1x16xf32> to vector<16xf32>
    %c0_627 = arith.constant 0 : index
    %c48_628 = arith.constant 48 : index
    %846 = vector.load %arg7[%c0_627, %c48_628] : memref<1x256xf32, #tpu.memory_space<vmem>>, vector<1x16xf32>
    %847 = vector.shape_cast %846 : vector<1x16xf32> to vector<16xf32>
    %848 = vector.shape_cast %845 : vector<16xf32> to vector<1x16xf32>
    tpu.vector_store %arg7[%c0_627, %c48_628], %848 {strides = array<i32>} : memref<1x256xf32, #tpu.memory_space<vmem>>, vector<1x16xf32>,
    %849 = vector.extract_strided_slice %828 {offsets = [4, 0], sizes = [1, 16], strides = [1, 1]} : vector<16x16xf32> to vector<1x16xf32>
    %850 = vector.shape_cast %849 : vector<1x16xf32> to vector<16xf32>
    %c0_629 = arith.constant 0 : index
    %c64_630 = arith.constant 64 : index
    %851 = vector.load %arg7[%c0_629, %c64_630] : memref<1x256xf32, #tpu.memory_space<vmem>>, vector<1x16xf32>
    %852 = vector.shape_cast %851 : vector<1x16xf32> to vector<16xf32>
    %853 = vector.shape_cast %850 : vector<16xf32> to vector<1x16xf32>
    tpu.vector_store %arg7[%c0_629, %c64_630], %853 {strides = array<i32>} : memref<1x256xf32, #tpu.memory_space<vmem>>, vector<1x16xf32>,
    %854 = vector.extract_strided_slice %828 {offsets = [5, 0], sizes = [1, 16], strides = [1, 1]} : vector<16x16xf32> to vector<1x16xf32>
    %855 = vector.shape_cast %854 : vector<1x16xf32> to vector<16xf32>
    %c0_631 = arith.constant 0 : index
    %c80_632 = arith.constant 80 : index
    %856 = vector.load %arg7[%c0_631, %c80_632] : memref<1x256xf32, #tpu.memory_space<vmem>>, vector<1x16xf32>
    %857 = vector.shape_cast %856 : vector<1x16xf32> to vector<16xf32>
    %858 = vector.shape_cast %855 : vector<16xf32> to vector<1x16xf32>
    tpu.vector_store %arg7[%c0_631, %c80_632], %858 {strides = array<i32>} : memref<1x256xf32, #tpu.memory_space<vmem>>, vector<1x16xf32>,
    %859 = vector.extract_strided_slice %828 {offsets = [6, 0], sizes = [1, 16], strides = [1, 1]} : vector<16x16xf32> to vector<1x16xf32>
    %860 = vector.shape_cast %859 : vector<1x16xf32> to vector<16xf32>
    %c0_633 = arith.constant 0 : index
    %c96_634 = arith.constant 96 : index
    %861 = vector.load %arg7[%c0_633, %c96_634] : memref<1x256xf32, #tpu.memory_space<vmem>>, vector<1x16xf32>
    %862 = vector.shape_cast %861 : vector<1x16xf32> to vector<16xf32>
    %863 = vector.shape_cast %860 : vector<16xf32> to vector<1x16xf32>
    tpu.vector_store %arg7[%c0_633, %c96_634], %863 {strides = array<i32>} : memref<1x256xf32, #tpu.memory_space<vmem>>, vector<1x16xf32>,
    %864 = vector.extract_strided_slice %828 {offsets = [7, 0], sizes = [1, 16], strides = [1, 1]} : vector<16x16xf32> to vector<1x16xf32>
    %865 = vector.shape_cast %864 : vector<1x16xf32> to vector<16xf32>
    %c0_635 = arith.constant 0 : index
    %c112 = arith.constant 112 : index
    %866 = vector.load %arg7[%c0_635, %c112] : memref<1x256xf32, #tpu.memory_space<vmem>>, vector<1x16xf32>
    %867 = vector.shape_cast %866 : vector<1x16xf32> to vector<16xf32>
    %868 = vector.shape_cast %865 : vector<16xf32> to vector<1x16xf32>
    tpu.vector_store %arg7[%c0_635, %c112], %868 {strides = array<i32>} : memref<1x256xf32, #tpu.memory_space<vmem>>, vector<1x16xf32>,
    %869 = vector.extract_strided_slice %828 {offsets = [8, 0], sizes = [1, 16], strides = [1, 1]} : vector<16x16xf32> to vector<1x16xf32>
    %870 = vector.shape_cast %869 : vector<1x16xf32> to vector<16xf32>
    %c0_636 = arith.constant 0 : index
    %c128 = arith.constant 128 : index
    %871 = vector.load %arg7[%c0_636, %c128] : memref<1x256xf32, #tpu.memory_space<vmem>>, vector<1x16xf32>
    %872 = vector.shape_cast %871 : vector<1x16xf32> to vector<16xf32>
    %873 = vector.shape_cast %870 : vector<16xf32> to vector<1x16xf32>
    tpu.vector_store %arg7[%c0_636, %c128], %873 {strides = array<i32>} : memref<1x256xf32, #tpu.memory_space<vmem>>, vector<1x16xf32>,
    %874 = vector.extract_strided_slice %828 {offsets = [9, 0], sizes = [1, 16], strides = [1, 1]} : vector<16x16xf32> to vector<1x16xf32>
    %875 = vector.shape_cast %874 : vector<1x16xf32> to vector<16xf32>
    %c0_637 = arith.constant 0 : index
    %c144 = arith.constant 144 : index
    %876 = vector.load %arg7[%c0_637, %c144] : memref<1x256xf32, #tpu.memory_space<vmem>>, vector<1x16xf32>
    %877 = vector.shape_cast %876 : vector<1x16xf32> to vector<16xf32>
    %878 = vector.shape_cast %875 : vector<16xf32> to vector<1x16xf32>
    tpu.vector_store %arg7[%c0_637, %c144], %878 {strides = array<i32>} : memref<1x256xf32, #tpu.memory_space<vmem>>, vector<1x16xf32>,
    %879 = vector.extract_strided_slice %828 {offsets = [10, 0], sizes = [1, 16], strides = [1, 1]} : vector<16x16xf32> to vector<1x16xf32>
    %880 = vector.shape_cast %879 : vector<1x16xf32> to vector<16xf32>
    %c0_638 = arith.constant 0 : index
    %c160 = arith.constant 160 : index
    %881 = vector.load %arg7[%c0_638, %c160] : memref<1x256xf32, #tpu.memory_space<vmem>>, vector<1x16xf32>
    %882 = vector.shape_cast %881 : vector<1x16xf32> to vector<16xf32>
    %883 = vector.shape_cast %880 : vector<16xf32> to vector<1x16xf32>
    tpu.vector_store %arg7[%c0_638, %c160], %883 {strides = array<i32>} : memref<1x256xf32, #tpu.memory_space<vmem>>, vector<1x16xf32>,
    %884 = vector.extract_strided_slice %828 {offsets = [11, 0], sizes = [1, 16], strides = [1, 1]} : vector<16x16xf32> to vector<1x16xf32>
    %885 = vector.shape_cast %884 : vector<1x16xf32> to vector<16xf32>
    %c0_639 = arith.constant 0 : index
    %c176 = arith.constant 176 : index
    %886 = vector.load %arg7[%c0_639, %c176] : memref<1x256xf32, #tpu.memory_space<vmem>>, vector<1x16xf32>
    %887 = vector.shape_cast %886 : vector<1x16xf32> to vector<16xf32>
    %888 = vector.shape_cast %885 : vector<16xf32> to vector<1x16xf32>
    tpu.vector_store %arg7[%c0_639, %c176], %888 {strides = array<i32>} : memref<1x256xf32, #tpu.memory_space<vmem>>, vector<1x16xf32>,
    %889 = vector.extract_strided_slice %828 {offsets = [12, 0], sizes = [1, 16], strides = [1, 1]} : vector<16x16xf32> to vector<1x16xf32>
    %890 = vector.shape_cast %889 : vector<1x16xf32> to vector<16xf32>
    %c0_640 = arith.constant 0 : index
    %c192 = arith.constant 192 : index
    %891 = vector.load %arg7[%c0_640, %c192] : memref<1x256xf32, #tpu.memory_space<vmem>>, vector<1x16xf32>
    %892 = vector.shape_cast %891 : vector<1x16xf32> to vector<16xf32>
    %893 = vector.shape_cast %890 : vector<16xf32> to vector<1x16xf32>
    tpu.vector_store %arg7[%c0_640, %c192], %893 {strides = array<i32>} : memref<1x256xf32, #tpu.memory_space<vmem>>, vector<1x16xf32>,
    %894 = vector.extract_strided_slice %828 {offsets = [13, 0], sizes = [1, 16], strides = [1, 1]} : vector<16x16xf32> to vector<1x16xf32>
    %895 = vector.shape_cast %894 : vector<1x16xf32> to vector<16xf32>
    %c0_641 = arith.constant 0 : index
    %c208 = arith.constant 208 : index
    %896 = vector.load %arg7[%c0_641, %c208] : memref<1x256xf32, #tpu.memory_space<vmem>>, vector<1x16xf32>
    %897 = vector.shape_cast %896 : vector<1x16xf32> to vector<16xf32>
    %898 = vector.shape_cast %895 : vector<16xf32> to vector<1x16xf32>
    tpu.vector_store %arg7[%c0_641, %c208], %898 {strides = array<i32>} : memref<1x256xf32, #tpu.memory_space<vmem>>, vector<1x16xf32>,
    %899 = vector.extract_strided_slice %828 {offsets = [14, 0], sizes = [1, 16], strides = [1, 1]} : vector<16x16xf32> to vector<1x16xf32>
    %900 = vector.shape_cast %899 : vector<1x16xf32> to vector<16xf32>
    %c0_642 = arith.constant 0 : index
    %c224 = arith.constant 224 : index
    %901 = vector.load %arg7[%c0_642, %c224] : memref<1x256xf32, #tpu.memory_space<vmem>>, vector<1x16xf32>
    %902 = vector.shape_cast %901 : vector<1x16xf32> to vector<16xf32>
    %903 = vector.shape_cast %900 : vector<16xf32> to vector<1x16xf32>
    tpu.vector_store %arg7[%c0_642, %c224], %903 {strides = array<i32>} : memref<1x256xf32, #tpu.memory_space<vmem>>, vector<1x16xf32>,
    %904 = vector.extract_strided_slice %828 {offsets = [15, 0], sizes = [1, 16], strides = [1, 1]} : vector<16x16xf32> to vector<1x16xf32>
    %905 = vector.shape_cast %904 : vector<1x16xf32> to vector<16xf32>
    %c0_643 = arith.constant 0 : index
    %c240 = arith.constant 240 : index
    %906 = vector.load %arg7[%c0_643, %c240] : memref<1x256xf32, #tpu.memory_space<vmem>>, vector<1x16xf32>
    %907 = vector.shape_cast %906 : vector<1x16xf32> to vector<16xf32>
    %908 = vector.shape_cast %905 : vector<16xf32> to vector<1x16xf32>
    tpu.vector_store %arg7[%c0_643, %c240], %908 {strides = array<i32>} : memref<1x256xf32, #tpu.memory_space<vmem>>, vector<1x16xf32>,
    %c0_644 = arith.constant 0 : index
    %c0_645 = arith.constant 0 : index
    %c0_646 = arith.constant 0 : index
    %909 = vector.load %arg1[%c0_644, %c0_645, %c0_646] : memref<1x4x256xf32, #tpu.memory_space<vmem>>, vector<1x4x256xf32>
    %910 = vector.shape_cast %909 : vector<1x4x256xf32> to vector<4x256xf32>
    %c0_647 = arith.constant 0 : index
    %c0_648 = arith.constant 0 : index
    %911 = vector.load %arg7[%c0_647, %c0_648] : memref<1x256xf32, #tpu.memory_space<vmem>>, vector<1x256xf32>
    %912 = vector.broadcast %911 : vector<1x256xf32> to vector<4x256xf32>
    %913 = arith.mulf %910, %912 : vector<4x256xf32>
    %c0_649 = arith.constant 0 : index
    %c0_650 = arith.constant 0 : index
    %c0_651 = arith.constant 0 : index
    %914 = vector.load %arg4[%c0_649, %c0_650, %c0_651] : memref<1x4x256xf32, #tpu.memory_space<vmem>>, vector<1x4x256xf32>
    %915 = vector.shape_cast %914 : vector<1x4x256xf32> to vector<4x256xf32>
    %916 = vector.shape_cast %913 : vector<4x256xf32> to vector<1x4x256xf32>
    tpu.vector_store %arg4[%c0_649, %c0_650, %c0_651], %916 {strides = array<i32>} : memref<1x4x256xf32, #tpu.memory_space<vmem>>, vector<1x4x256xf32>,
    return
  }
  func.func @transform_0(%arg0: i32) -> (i32, i32, i32) {
    %c0_i32 = arith.constant 0 : i32
    %c0_i32_0 = arith.constant 0 : i32
    %c0_i32_1 = arith.constant 0 : i32
    return %arg0, %c0_i32, %c0_i32_0 : i32, i32, i32
  }
  func.func @transform_1(%arg0: i32) -> i32 {
    %c0_i32 = arith.constant 0 : i32
    %c0_i32_0 = arith.constant 0 : i32
    return %c0_i32 : i32
  }
  func.func @transform_2(%arg0: i32) -> i32 {
    %c0_i32 = arith.constant 0 : i32
    %c0_i32_0 = arith.constant 0 : i32
    return %c0_i32 : i32
  }
  func.func @transform_3(%arg0: i32) -> (i32, i32, i32) {
    %c0_i32 = arith.constant 0 : i32
    %c0_i32_0 = arith.constant 0 : i32
    %c0_i32_1 = arith.constant 0 : i32
    return %arg0, %c0_i32, %c0_i32_0 : i32, i32, i32
  }
}

</mosaic_0001>

<llo_original>
// kernel: tpu_custom_call.1
$region0: #{tpu_custom_call.1}
  #allocation0 [shape = 'u32[]', space=smem, size = 0x4, offset = 0x4, fixed_abs, tag = 'smem constant byte address 0x4 - core index']
  #allocation1 [shape = 'u32[144,128]{1,0:T(1,128)}', space=vmem, size = 0x12000, scoped, tag = 'internal scratch']
  #allocation2 [shape = 'f32[2,22,22]{2,1,0:T(8,128)}', space=vmem, size = 0x6000, scoped, tag = 'scratch operand']
  #allocation3 [shape = 'f32[2,7,22,16]{3,2,1,0:T(8,128)}', space=vmem, size = 0x2a000, scoped, tag = 'scratch operand']
  #allocation4 [shape = 'f32[1,256]{1,0:T(1,128)}', space=vmem, size = 0x400, scoped, tag = 'scratch operand']
  %s0 = inlined_call_operand.hbm [shape: f32[2,4,256], index: 0, kind: input, shape index: {}]
  %s1 = inlined_call_operand.vmem [shape: f32[98], index: 1, kind: input, shape index: {}]
  %s2 = inlined_call_operand.vmem [shape: f32[2], index: 2, kind: input, shape index: {}]
  %s3 = inlined_call_operand.hbm [shape: f32[2,4,256], index: 3, kind: output, shape index: {}]
  %s4 = sld [smem:[#allocation0]]
  $region57: #{tpu_custom_call.1} parent=0
    _
  %s6 = ssub.s32 1, %s4
  %s7 = scalar_select 0, %s6, %s4
  $region1: #{tpu_custom_call.1} parent=0
    #allocation5 [shape = 'u8[8192]{0}', space=vmem, size = 0x2000, scoped, tag = 'input window, operand 0']
    #allocation6 [shape = 's32[2]{0}', space=sflag, size = 0x8, scoped, tag = 'scoped memory for tpu_custom_call.1']
    #allocation7 [shape = 's32[2]{0}', space=sflag, size = 0x8, scoped, tag = 'scoped memory for tpu_custom_call.1']
    #allocation8 [shape = 's32[2]{0}', space=sflag, size = 0x8, scoped, tag = 'scoped memory for tpu_custom_call.1']
    #allocation9 [shape = 'u8[512]{0}', space=smem, size = 0x200, scoped, tag = 'input window, operand 1, single buffered']
    #allocation10 [shape = 'u8[512]{0}', space=smem, size = 0x200, scoped, tag = 'input window, operand 2, single buffered']
    #allocation11 [shape = 's32[1]{0}', space=sflag, size = 0x4, scoped, tag = 'scoped memory for tpu_custom_call.1']
    #allocation12 [shape = 'u8[8192]{0}', space=vmem, size = 0x2000, scoped, tag = 'output window, operand 0']
    %8 = vsyncpa [#allocation6], 0
    %s9 = scalar_lea.sflag [#allocation6], 1
    %10 = vsyncpa %s9, 0
    %11 = vsyncpa [#allocation8], 0
    %12 = vsyncpa [#allocation11], 0
    %13 = vsyncpa [#allocation7], 0
    %s14 = scalar_lea.sflag [#allocation7], 1
    %15 = vsyncpa %s14, 0
    loop: start=0, step=1, limit=4
    $region2: #{tpu_custom_call.1} parent=1 // loop_pre_header
      _
    $region3: #{tpu_custom_call.1} parent=1 // loop_header
      %s17 = sphi 0, %s21
      %p18 = scmp.ge.s32.totalorder %s17, 4
      %s27 = sphi 0, %s29
      %s30 = sphi 0, %s27
      %s31 = sphi 0, %s30
      %s47 = sphi 0, %s31
      %s51 = sphi 0, %s51
      %s53 = sphi 0, %s51
      %s54 = sphi 0, %s53
      %s68 = sphi 0, %s54
      %s72 = sphi 0, %s72
      %s74 = sphi 0, %s72
      %s75 = sphi 0, %s74
      %s89 = sphi 0, %s75
      %s95 = sphi 0, %s97
      %s98 = sphi 0, %s95
      %s99 = sphi 0, %s98
      %s115 = sphi 0, %s99
    $region4: #{tpu_custom_call.1} parent=1 // loop_header_branch
      %20 = sbr.rel (%p18) target = $region8
    $region5: #{tpu_custom_call.1} parent=1 // loop_body
      %s22 = ssub.s32 %s17, 1
      %s23 = ssub.s32 %s17, 2
      %s24 = sadd.s32 %s17, 1
      %s25 = ssub.s32 %s17, %s24
      %p26 = scmp.eq.s32.totalorder %s25, 0
      %s28 = sadd.s32 %s27, 1
      %s29 = scalar_select %p26, %s27, %s28
      %p32 = pneg %p26
      %p33 = scmp.eq.s32.totalorder %s17, 1
      %p34 = por %p32, %p33
      %p35 = scmp.ne.s32.totalorder %s27, %s30
      %p36 = scmp.eq.s32.totalorder %s17, 0
      %p37 = por %p35, %p36
      %p38 = scmp.ne.s32.totalorder %s27, %s30
      %p39 = scmp.eq.s32.totalorder %s22, 1
      %p40 = por %p38, %p39
      %p41 = scmp.ne.s32.totalorder %s30, %s31
      %p42 = scmp.eq.s32.totalorder %s22, 0
      %p43 = por %p41, %p42
      %p44 = scmp.ne.s32.totalorder %s30, %s31
      %p45 = scmp.eq.s32.totalorder %s23, 1
      %p46 = por %p44, %p45
      %p48 = scmp.ne.s32.totalorder %s31, %s47
      %p49 = scmp.eq.s32.totalorder %s23, 0
      %p50 = por %p48, %p49
      %s52 = sadd.s32 %s51, 1
      %p55 = scmp.eq.s32.totalorder %s17, 1
      %p56 = scmp.ne.s32.totalorder %s51, %s53
      %p57 = scmp.eq.s32.totalorder %s17, 0
      %p58 = por %p56, %p57
      %p59 = scmp.ne.s32.totalorder %s51, %s53
      %p60 = scmp.eq.s32.totalorder %s22, 1
      %p61 = por %p59, %p60
      %p62 = scmp.ne.s32.totalorder %s53, %s54
      %p63 = scmp.eq.s32.totalorder %s22, 0
      %p64 = por %p62, %p63
      %p65 = scmp.ne.s32.totalorder %s53, %s54
      %p66 = scmp.eq.s32.totalorder %s23, 1
      %p67 = por %p65, %p66
      %p69 = scmp.ne.s32.totalorder %s54, %s68
      %p70 = scmp.eq.s32.totalorder %s23, 0
      %p71 = por %p69, %p70
      %s73 = sadd.s32 %s72, 1
      %p76 = scmp.eq.s32.totalorder %s17, 1
      %p77 = scmp.ne.s32.totalorder %s72, %s74
      %p78 = scmp.eq.s32.totalorder %s17, 0
      %p79 = por %p77, %p78
      %p80 = scmp.ne.s32.totalorder %s72, %s74
      %p81 = scmp.eq.s32.totalorder %s22, 1
      %p82 = por %p80, %p81
      %p83 = scmp.ne.s32.totalorder %s74, %s75
      %p84 = scmp.eq.s32.totalorder %s22, 0
      %p85 = por %p83, %p84
      %p86 = scmp.ne.s32.totalorder %s74, %s75
      %p87 = scmp.eq.s32.totalorder %s23, 1
      %p88 = por %p86, %p87
      %p90 = scmp.ne.s32.totalorder %s75, %s89
      %p91 = scmp.eq.s32.totalorder %s23, 0
      %p92 = por %p90, %p91
      %s93 = ssub.s32 %s17, %s24
      %p94 = scmp.eq.s32.totalorder %s93, 0
      %s96 = sadd.s32 %s95, 1
      %s97 = scalar_select %p94, %s95, %s96
      %p100 = pneg %p94
      %p101 = scmp.eq.s32.totalorder %s17, 1
      %p102 = por %p100, %p101
      %p103 = scmp.ne.s32.totalorder %s95, %s98
      %p104 = scmp.eq.s32.totalorder %s17, 0
      %p105 = por %p103, %p104
      %p106 = scmp.ne.s32.totalorder %s95, %s98
      %p107 = scmp.eq.s32.totalorder %s22, 1
      %p108 = por %p106, %p107
      %p109 = scmp.ne.s32.totalorder %s98, %s99
      %p110 = scmp.eq.s32.totalorder %s22, 0
      %p111 = por %p109, %p110
      %p112 = scmp.ne.s32.totalorder %s98, %s99
      %p113 = scmp.eq.s32.totalorder %s23, 1
      %p114 = por %p112, %p113
      %p116 = scmp.ne.s32.totalorder %s99, %s115
      %p117 = scmp.eq.s32.totalorder %s23, 0
      %p118 = por %p116, %p117
      %p119 = scmp.le.s32.totalorder 1, %s17
      %p120 = scmp.lt.s32.totalorder %s17, 3
      %p121 = pnand %p119, %p120
      %p122 = pneg %p121
      // Predicated region
      $region9: #{tpu_custom_call.1} parent=5 // pred_check
        _
      $region10: #{tpu_custom_call.1} parent=5 // pred_check_branch
        %124 = sbr.rel (%p121) target = $region12
      $region11: #{tpu_custom_call.1} parent=5 // pred_region
        %s125 = ssub.s32 %s17, 1
        // Predicated region
        $region13: #{tpu_custom_call.1} parent=11 // pred_check
          %p126 = pneg %p64
        $region14: #{tpu_custom_call.1} parent=11 // pred_check_branch
          %128 = sbr.rel (%p126) target = $region16
        $region15: #{tpu_custom_call.1} parent=11 // pred_region
          %s130 = ssub.s32 16, 16
          %131 = vsyncadd [#allocation8], %s130
          %s133 = sshll.u32 %s1, 4
          %s134 = int_to_ptr.vmem [resolvable:$true] %s133
          %136 = dma.vmem_to_smem %s134, 16, [#allocation9], [#allocation8]
        $region16: #{tpu_custom_call.1} parent=11 // pred_fallthru
          _
        // Predicated region
        $region17: #{tpu_custom_call.1} parent=11 // pred_check
          %p137 = pneg %p85
        $region18: #{tpu_custom_call.1} parent=11 // pred_check_branch
          %139 = sbr.rel (%p137) target = $region20
        $region19: #{tpu_custom_call.1} parent=11 // pred_region
          %s141 = ssub.s32 16, 16
          %142 = vsyncadd [#allocation11], %s141
          %s144 = sshll.u32 %s2, 4
          %s145 = int_to_ptr.vmem [resolvable:$true] %s144
          %147 = dma.vmem_to_smem %s145, 16, [#allocation10], [#allocation11]
        $region20: #{tpu_custom_call.1} parent=11 // pred_fallthru
          _
      $region12: #{tpu_custom_call.1} parent=5 // pred_fallthru
        _
      %p148 = scmp.lt.s32.totalorder %s17, 2
      // Predicated region
      $region21: #{tpu_custom_call.1} parent=5 // pred_check
        %p149 = pneg %p148
      $region22: #{tpu_custom_call.1} parent=5 // pred_check_branch
        %151 = sbr.rel (%p149) target = $region24
      $region23: #{tpu_custom_call.1} parent=5 // pred_region
        // Predicated region
        $region25: #{tpu_custom_call.1} parent=23 // pred_check
          %p152 = pneg %p37
        $region26: #{tpu_custom_call.1} parent=23 // pred_check_branch
          %154 = sbr.rel (%p152) target = $region28
        $region27: #{tpu_custom_call.1} parent=23 // pred_region
          %s155 = sand.u32 %s27, 1
          %s156 = scalar_lea.sflag [#allocation6], %s155
          %s157 = sand.u32 %s27, 1
          %s158 = smul.addr %s157, 8
          %s159 = scalar_lea.vmem [#allocation5], %s158
          %s161 = ssub.s32 128, 128
          %162 = vsyncadd %s156, %s161
          %s163 = smul.addr %s17, 2
          %s164 = smul.addr %s163, 64
          %s165 = scalar_lea.hbm %s0, %s164
          %s167 = sshll.u32 %s159, 4
          %s168 = int_to_ptr.vmem [resolvable:$true] %s167
          %170 = dma.hbm_to_vmem [thread:$0]  %s165, 128, %s168, %s156
        $region28: #{tpu_custom_call.1} parent=23 // pred_fallthru
          _
      $region24: #{tpu_custom_call.1} parent=5 // pred_fallthru
        _
      %p171 = scmp.le.s32.totalorder 1, %s17
      %p172 = scmp.lt.s32.totalorder %s17, 3
      %p173 = pnand %p171, %p172
      %p174 = pneg %p173
      // Predicated region
      $region29: #{tpu_custom_call.1} parent=5 // pred_check
        _
      $region30: #{tpu_custom_call.1} parent=5 // pred_check_branch
        %176 = sbr.rel (%p173) target = $region32
      $region31: #{tpu_custom_call.1} parent=5 // pred_region
        %s177 = ssub.s32 %s17, 1
        %s178 = sand.u32 %s30, 1
        %s179 = scalar_lea.sflag [#allocation6], %s178
        %s180 = sand.u32 %s30, 1
        %s181 = smul.addr %s180, 8
        %s182 = scalar_lea.vmem [#allocation5], %s181
        // Predicated region
        $region33: #{tpu_custom_call.1} parent=31 // pred_check
          %p183 = pneg %p43
        $region34: #{tpu_custom_call.1} parent=31 // pred_check_branch
          %185 = sbr.rel (%p183) target = $region36
        $region35: #{tpu_custom_call.1} parent=31 // pred_region
          %186 = dma.done %s179, 128
        $region36: #{tpu_custom_call.1} parent=31 // pred_fallthru
          _
        // Predicated region
        $region37: #{tpu_custom_call.1} parent=31 // pred_check
          %p187 = pneg %p64
        $region38: #{tpu_custom_call.1} parent=31 // pred_check_branch
          %189 = sbr.rel (%p187) target = $region40
        $region39: #{tpu_custom_call.1} parent=31 // pred_region
          %190 = dma.done [#allocation8], 16
        $region40: #{tpu_custom_call.1} parent=31 // pred_fallthru
          _
        // Predicated region
        $region41: #{tpu_custom_call.1} parent=31 // pred_check
          %p191 = pneg %p85
        $region42: #{tpu_custom_call.1} parent=31 // pred_check_branch
          %193 = sbr.rel (%p191) target = $region44
        $region43: #{tpu_custom_call.1} parent=31 // pred_region
          %194 = dma.done [#allocation11], 16
        $region44: #{tpu_custom_call.1} parent=31 // pred_fallthru
          _
        %195 = sfence
        %s196 = sand.u32 %s30, 1
        %s197 = scalar_lea.sflag [#allocation6], %s196
        %s198 = sand.u32 %s30, 1
        %s199 = smul.addr %s198, 8
        %s200 = scalar_lea.vmem [#allocation5], %s199
        %p201 = pneg %p43
        %p202 = pneg %p40
        %p203 = pneg %p64
        %p204 = pneg %p61
        %p205 = pneg %p85
        %p206 = pneg %p82
        %p207 = pneg %p111
        %p208 = pneg %p108
        %s209 = sand.u32 %s98, 1
        %s210 = scalar_lea.sflag [#allocation7], %s209
        %s211 = sand.u32 %s98, 1
        %s212 = smul.addr %s211, 8
        %s213 = scalar_lea.vmem [#allocation12], %s212
        %v214 = vld [vmem:[%s182] sm:$0xff]
        %v216 = vcombine.high %v214, %v214
        %vm218 = vcmask 1043456
        %v219 = vsel %vm218, %v214, -inf
        %v220 = vrot.slane %v219, 4
        %v221 = vmax.f32 %v219, %v220
        %v222 = vrot.slane %v221, 2
        %v223 = vmax.f32 %v221, %v222
        %v224 = vrot.slane %v223, 1
        %v225 = vmax.f32 %v223, %v224
        %v226 = vsel %vm218, %v216, -inf
        %v227 = vrot.slane %v226, 4
        %v228 = vmax.f32 %v226, %v227
        %v229 = vrot.slane %v228, 2
        %v230 = vmax.f32 %v228, %v229
        %v231 = vrot.slane %v230, 1
        %v232 = vmax.f32 %v230, %v231
        %v233 = vsel %vm218, %v214, 0.0
        %v234 = vrot.slane %v233, 4
        %v235 = vadd.f32 %v233, %v234
        %v236 = vrot.slane %v235, 2
        %v237 = vadd.f32 %v235, %v236
        %v238 = vrot.slane %v237, 1
        %v239 = vadd.f32 %v237, %v238
        %v240 = vsel %vm218, %v216, 0.0
        %v241 = vrot.slane %v240, 4
        %v242 = vadd.f32 %v240, %v241
        %v243 = vrot.slane %v242, 2
        %v244 = vadd.f32 %v242, %v243
        %v245 = vrot.slane %v244, 1
        %v246 = vadd.f32 %v244, %v245
        %v247 = vmul.f32 %v239, 0.25
        %v248 = vmul.f32 %v246, 0.25
        %vm249 = vcmask 174080
        %250 = vst.msk [vmem:[#allocation2] sm:$0x7] %vm249, 0.0
        %251 = vst.msk [vmem:[#allocation2 + $0x13] sm:$0x7] %vm249, 0.0
        %vm252 = vcmask 23552
        %253 = vst.msk [vmem:[#allocation2] sm:$0xff] %vm252, 0.0
        %254 = vst.msk [vmem:[#allocation2 + $0x8] sm:$0xff] %vm252, 0.0
        %vm255 = vcmask 21504
        %256 = vst.msk [vmem:[#allocation2 + $0x10] sm:$0x3f] %vm255, 0.0
        %vm257 = vcmask 179352
        %258 = vst.msk [vmem:[#allocation2] sm:$0xff] %vm257, 0.0
        %259 = vst.msk [vmem:[#allocation2 + $0x8] sm:$0xff] %vm257, 0.0
        %vm260 = vcmask 177304
        %261 = vst.msk [vmem:[#allocation2 + $0x10] sm:$0x3f] %vm260, 0.0
        %s262 = scalar_lea.vmem [#allocation2], 24
        %263 = vst.msk [vmem:[%s262] sm:$0x7] %vm249, 0.0
        %264 = vst.msk [vmem:[%s262 + $0x13] sm:$0x7] %vm249, 0.0
        %265 = vst.msk [vmem:[%s262] sm:$0xff] %vm252, 0.0
        %266 = vst.msk [vmem:[%s262 + $0x8] sm:$0xff] %vm252, 0.0
        %267 = vst.msk [vmem:[%s262 + $0x10] sm:$0x3f] %vm255, 0.0
        %268 = vst.msk [vmem:[%s262] sm:$0xff] %vm257, 0.0
        %269 = vst.msk [vmem:[%s262 + $0x8] sm:$0xff] %vm257, 0.0
        %270 = vst.msk [vmem:[%s262 + $0x10] sm:$0x3f] %vm260, 0.0
        %272 = vrot.lane.b32.xlu0 %v225, 3
        %v273 = vpop.permute.xlu0 %272
        %vm275 = vcmask 147480
        %276 = vst.msk [vmem:[#allocation2 + $0x3] sm:$0x1] %vm275, %v273
        %278 = vrot.lane.b32.xlu0 %v247, 3
        %v279 = vpop.permute.xlu0 %278
        %281 = vst.msk [vmem:[%s262 + $0x3] sm:$0x1] %vm275, %v279
        %282 = vrot.lane.b32.xlu0 %v225, 115
        %v283 = vpop.permute.xlu0 %282
        %285 = vst.msk [vmem:[#allocation2 + $0x4] sm:$0x1] %vm275, %v283
        %286 = vrot.lane.b32.xlu0 %v247, 115
        %v287 = vpop.permute.xlu0 %286
        %289 = vst.msk [vmem:[%s262 + $0x4] sm:$0x1] %vm275, %v287
        %290 = vrot.lane.b32.xlu0 %v225, 99
        %v291 = vpop.permute.xlu0 %290
        %293 = vst.msk [vmem:[#allocation2 + $0x5] sm:$0x1] %vm275, %v291
        %294 = vrot.lane.b32.xlu0 %v247, 99
        %v295 = vpop.permute.xlu0 %294
        %297 = vst.msk [vmem:[%s262 + $0x5] sm:$0x1] %vm275, %v295
        %298 = vrot.lane.b32.xlu0 %v225, 83
        %v299 = vpop.permute.xlu0 %298
        %301 = vst.msk [vmem:[#allocation2 + $0x6] sm:$0x1] %vm275, %v299
        %302 = vrot.lane.b32.xlu0 %v247, 83
        %v303 = vpop.permute.xlu0 %302
        %305 = vst.msk [vmem:[%s262 + $0x6] sm:$0x1] %vm275, %v303
        %306 = vrot.lane.b32.xlu0 %v225, 67
        %v307 = vpop.permute.xlu0 %306
        %309 = vst.msk [vmem:[#allocation2 + $0x7] sm:$0x1] %vm275, %v307
        %310 = vrot.lane.b32.xlu0 %v247, 67
        %v311 = vpop.permute.xlu0 %310
        %313 = vst.msk [vmem:[%s262 + $0x7] sm:$0x1] %vm275, %v311
        %314 = vrot.lane.b32.xlu0 %v225, 51
        %v315 = vpop.permute.xlu0 %314
        %317 = vst.msk [vmem:[#allocation2 + $0x8] sm:$0x1] %vm275, %v315
        %318 = vrot.lane.b32.xlu0 %v247, 51
        %v319 = vpop.permute.xlu0 %318
        %321 = vst.msk [vmem:[%s262 + $0x8] sm:$0x1] %vm275, %v319
        %322 = vrot.lane.b32.xlu0 %v225, 35
        %v323 = vpop.permute.xlu0 %322
        %325 = vst.msk [vmem:[#allocation2 + $0x9] sm:$0x1] %vm275, %v323
        %326 = vrot.lane.b32.xlu0 %v247, 35
        %v327 = vpop.permute.xlu0 %326
        %329 = vst.msk [vmem:[%s262 + $0x9] sm:$0x1] %vm275, %v327
        %330 = vrot.lane.b32.xlu0 %v225, 19
        %v331 = vpop.permute.xlu0 %330
        %333 = vst.msk [vmem:[#allocation2 + $0xa] sm:$0x1] %vm275, %v331
        %334 = vrot.lane.b32.xlu0 %v247, 19
        %v335 = vpop.permute.xlu0 %334
        %337 = vst.msk [vmem:[%s262 + $0xa] sm:$0x1] %vm275, %v335
        %339 = vrot.lane.b32.xlu0 %v232, 3
        %v340 = vpop.permute.xlu0 %339
        %342 = vst.msk [vmem:[#allocation2 + $0xb] sm:$0x1] %vm275, %v340
        %344 = vrot.lane.b32.xlu0 %v248, 3
        %v345 = vpop.permute.xlu0 %344
        %347 = vst.msk [vmem:[%s262 + $0xb] sm:$0x1] %vm275, %v345
        %348 = vrot.lane.b32.xlu0 %v232, 115
        %v349 = vpop.permute.xlu0 %348
        %351 = vst.msk [vmem:[#allocation2 + $0xc] sm:$0x1] %vm275, %v349
        %352 = vrot.lane.b32.xlu0 %v248, 115
        %v353 = vpop.permute.xlu0 %352
        %355 = vst.msk [vmem:[%s262 + $0xc] sm:$0x1] %vm275, %v353
        %356 = vrot.lane.b32.xlu0 %v232, 99
        %v357 = vpop.permute.xlu0 %356
        %359 = vst.msk [vmem:[#allocation2 + $0xd] sm:$0x1] %vm275, %v357
        %360 = vrot.lane.b32.xlu0 %v248, 99
        %v361 = vpop.permute.xlu0 %360
        %363 = vst.msk [vmem:[%s262 + $0xd] sm:$0x1] %vm275, %v361
        %364 = vrot.lane.b32.xlu0 %v232, 83
        %v365 = vpop.permute.xlu0 %364
        %367 = vst.msk [vmem:[#allocation2 + $0xe] sm:$0x1] %vm275, %v365
        %368 = vrot.lane.b32.xlu0 %v248, 83
        %v369 = vpop.permute.xlu0 %368
        %371 = vst.msk [vmem:[%s262 + $0xe] sm:$0x1] %vm275, %v369
        %372 = vrot.lane.b32.xlu0 %v232, 67
        %v373 = vpop.permute.xlu0 %372
        %375 = vst.msk [vmem:[#allocation2 + $0xf] sm:$0x1] %vm275, %v373
        %376 = vrot.lane.b32.xlu0 %v248, 67
        %v377 = vpop.permute.xlu0 %376
        %379 = vst.msk [vmem:[%s262 + $0xf] sm:$0x1] %vm275, %v377
        %380 = vrot.lane.b32.xlu0 %v232, 51
        %v381 = vpop.permute.xlu0 %380
        %383 = vst.msk [vmem:[#allocation2 + $0x10] sm:$0x1] %vm275, %v381
        %384 = vrot.lane.b32.xlu0 %v248, 51
        %v385 = vpop.permute.xlu0 %384
        %387 = vst.msk [vmem:[%s262 + $0x10] sm:$0x1] %vm275, %v385
        %388 = vrot.lane.b32.xlu0 %v232, 35
        %v389 = vpop.permute.xlu0 %388
        %391 = vst.msk [vmem:[#allocation2 + $0x11] sm:$0x1] %vm275, %v389
        %392 = vrot.lane.b32.xlu0 %v248, 35
        %v393 = vpop.permute.xlu0 %392
        %395 = vst.msk [vmem:[%s262 + $0x11] sm:$0x1] %vm275, %v393
        %396 = vrot.lane.b32.xlu0 %v232, 19
        %v397 = vpop.permute.xlu0 %396
        %399 = vst.msk [vmem:[#allocation2 + $0x12] sm:$0x1] %vm275, %v397
        %400 = vrot.lane.b32.xlu0 %v248, 19
        %v401 = vpop.permute.xlu0 %400
        %403 = vst.msk [vmem:[%s262 + $0x12] sm:$0x1] %vm275, %v401
        %v404 = vld [vmem:[#allocation2] sm:$0xff]
        %v405 = vld [vmem:[#allocation2 + $0x8] sm:$0xff]
        %v406 = vld [vmem:[#allocation2 + $0x10] sm:$0x3f]
        %vm407 = vcmask 130048
        %408 = vst.msk [vmem:[#allocation3] sm:$0xff] %vm407, %v404
        %409 = vst.msk [vmem:[#allocation3 + $0x8] sm:$0xff] %vm407, %v405
        %vm410 = vcmask 128000
        %411 = vst.msk [vmem:[#allocation3 + $0x10] sm:$0x3f] %vm410, %v406
        %v412 = vld [vmem:[#allocation2] sm:$0xff]
        %v413 = vld [vmem:[#allocation2 + $0x8] sm:$0xff]
        %v414 = vld [vmem:[#allocation2 + $0x10] sm:$0x3f]
        %418 = vrot.lane.b32.xlu0 %v412, 127
        %v419 = vpop.permute.xlu0 %418
        %420 = vrot.lane.b32.xlu0 %v413, 127
        %v421 = vpop.permute.xlu0 %420
        %422 = vrot.lane.b32.xlu0 %v414, 127
        %v423 = vpop.permute.xlu0 %422
        %s427 = scalar_lea.vmem [#allocation3], 24
        %428 = vst.msk [vmem:[%s427] sm:$0xff] %vm407, %v419
        %429 = vst.msk [vmem:[%s427 + $0x8] sm:$0xff] %vm407, %v421
        %430 = vst.msk [vmem:[%s427 + $0x10] sm:$0x3f] %vm410, %v423
        %v431 = vld [vmem:[#allocation2] sm:$0xff]
        %v432 = vld [vmem:[#allocation2 + $0x8] sm:$0xff]
        %v433 = vld [vmem:[#allocation2 + $0x10] sm:$0x3f]
        %437 = vrot.lane.b32.xlu0 %v431, 126
        %v438 = vpop.permute.xlu0 %437
        %439 = vrot.lane.b32.xlu0 %v432, 126
        %v440 = vpop.permute.xlu0 %439
        %441 = vrot.lane.b32.xlu0 %v433, 126
        %v442 = vpop.permute.xlu0 %441
        %s446 = scalar_lea.vmem [#allocation3], 48
        %447 = vst.msk [vmem:[%s446] sm:$0xff] %vm407, %v438
        %448 = vst.msk [vmem:[%s446 + $0x8] sm:$0xff] %vm407, %v440
        %449 = vst.msk [vmem:[%s446 + $0x10] sm:$0x3f] %vm410, %v442
        %v450 = vld [vmem:[#allocation2] sm:$0xff]
        %v451 = vld [vmem:[#allocation2 + $0x8] sm:$0xff]
        %v452 = vld [vmem:[#allocation2 + $0x10] sm:$0x3f]
        %456 = vrot.lane.b32.xlu0 %v450, 125
        %v457 = vpop.permute.xlu0 %456
        %458 = vrot.lane.b32.xlu0 %v451, 125
        %v459 = vpop.permute.xlu0 %458
        %460 = vrot.lane.b32.xlu0 %v452, 125
        %v461 = vpop.permute.xlu0 %460
        %s465 = scalar_lea.vmem [#allocation3], 72
        %466 = vst.msk [vmem:[%s465] sm:$0xff] %vm407, %v457
        %467 = vst.msk [vmem:[%s465 + $0x8] sm:$0xff] %vm407, %v459
        %468 = vst.msk [vmem:[%s465 + $0x10] sm:$0x3f] %vm410, %v461
        %v469 = vld [vmem:[#allocation2] sm:$0xff]
        %v470 = vld [vmem:[#allocation2 + $0x8] sm:$0xff]
        %v471 = vld [vmem:[#allocation2 + $0x10] sm:$0x3f]
        %475 = vrot.lane.b32.xlu0 %v469, 124
        %v476 = vpop.permute.xlu0 %475
        %477 = vrot.lane.b32.xlu0 %v470, 124
        %v478 = vpop.permute.xlu0 %477
        %479 = vrot.lane.b32.xlu0 %v471, 124
        %v480 = vpop.permute.xlu0 %479
        %s484 = scalar_lea.vmem [#allocation3], 96
        %485 = vst.msk [vmem:[%s484] sm:$0xff] %vm407, %v476
        %486 = vst.msk [vmem:[%s484 + $0x8] sm:$0xff] %vm407, %v478
        %487 = vst.msk [vmem:[%s484 + $0x10] sm:$0x3f] %vm410, %v480
        %v488 = vld [vmem:[#allocation2] sm:$0xff]
        %v489 = vld [vmem:[#allocation2 + $0x8] sm:$0xff]
        %v490 = vld [vmem:[#allocation2 + $0x10] sm:$0x3f]
        %494 = vrot.lane.b32.xlu0 %v488, 123
        %v495 = vpop.permute.xlu0 %494
        %496 = vrot.lane.b32.xlu0 %v489, 123
        %v497 = vpop.permute.xlu0 %496
        %498 = vrot.lane.b32.xlu0 %v490, 123
        %v499 = vpop.permute.xlu0 %498
        %s503 = scalar_lea.vmem [#allocation3], 120
        %504 = vst.msk [vmem:[%s503] sm:$0xff] %vm407, %v495
        %505 = vst.msk [vmem:[%s503 + $0x8] sm:$0xff] %vm407, %v497
        %506 = vst.msk [vmem:[%s503 + $0x10] sm:$0x3f] %vm410, %v499
        %v507 = vld [vmem:[#allocation2] sm:$0xff]
        %v508 = vld [vmem:[#allocation2 + $0x8] sm:$0xff]
        %v509 = vld [vmem:[#allocation2 + $0x10] sm:$0x3f]
        %513 = vrot.lane.b32.xlu0 %v507, 122
        %v514 = vpop.permute.xlu0 %513
        %515 = vrot.lane.b32.xlu0 %v508, 122
        %v516 = vpop.permute.xlu0 %515
        %517 = vrot.lane.b32.xlu0 %v509, 122
        %v518 = vpop.permute.xlu0 %517
        %s522 = scalar_lea.vmem [#allocation3], 144
        %523 = vst.msk [vmem:[%s522] sm:$0xff] %vm407, %v514
        %524 = vst.msk [vmem:[%s522 + $0x8] sm:$0xff] %vm407, %v516
        %525 = vst.msk [vmem:[%s522 + $0x10] sm:$0x3f] %vm410, %v518
        %v526 = vld [vmem:[%s262] sm:$0xff]
        %v527 = vld [vmem:[%s262 + $0x8] sm:$0xff]
        %v528 = vld [vmem:[%s262 + $0x10] sm:$0x3f]
        %s529 = scalar_lea.vmem [#allocation3], 168
        %530 = vst.msk [vmem:[%s529] sm:$0xff] %vm407, %v526
        %531 = vst.msk [vmem:[%s529 + $0x8] sm:$0xff] %vm407, %v527
        %532 = vst.msk [vmem:[%s529 + $0x10] sm:$0x3f] %vm410, %v528
        %v533 = vld [vmem:[%s262] sm:$0xff]
        %v534 = vld [vmem:[%s262 + $0x8] sm:$0xff]
        %v535 = vld [vmem:[%s262 + $0x10] sm:$0x3f]
        %539 = vrot.lane.b32.xlu0 %v533, 127
        %v540 = vpop.permute.xlu0 %539
        %541 = vrot.lane.b32.xlu0 %v534, 127
        %v542 = vpop.permute.xlu0 %541
        %543 = vrot.lane.b32.xlu0 %v535, 127
        %v544 = vpop.permute.xlu0 %543
        %s548 = scalar_lea.vmem [#allocation3], 192
        %549 = vst.msk [vmem:[%s548] sm:$0xff] %vm407, %v540
        %550 = vst.msk [vmem:[%s548 + $0x8] sm:$0xff] %vm407, %v542
        %551 = vst.msk [vmem:[%s548 + $0x10] sm:$0x3f] %vm410, %v544
        %v552 = vld [vmem:[%s262] sm:$0xff]
        %v553 = vld [vmem:[%s262 + $0x8] sm:$0xff]
        %v554 = vld [vmem:[%s262 + $0x10] sm:$0x3f]
        %558 = vrot.lane.b32.xlu0 %v552, 126
        %v559 = vpop.permute.xlu0 %558
        %560 = vrot.lane.b32.xlu0 %v553, 126
        %v561 = vpop.permute.xlu0 %560
        %562 = vrot.lane.b32.xlu0 %v554, 126
        %v563 = vpop.permute.xlu0 %562
        %s567 = scalar_lea.vmem [#allocation3], 216
        %568 = vst.msk [vmem:[%s567] sm:$0xff] %vm407, %v559
        %569 = vst.msk [vmem:[%s567 + $0x8] sm:$0xff] %vm407, %v561
        %570 = vst.msk [vmem:[%s567 + $0x10] sm:$0x3f] %vm410, %v563
        %v571 = vld [vmem:[%s262] sm:$0xff]
        %v572 = vld [vmem:[%s262 + $0x8] sm:$0xff]
        %v573 = vld [vmem:[%s262 + $0x10] sm:$0x3f]
        %577 = vrot.lane.b32.xlu0 %v571, 125
        %v578 = vpop.permute.xlu0 %577
        %579 = vrot.lane.b32.xlu0 %v572, 125
        %v580 = vpop.permute.xlu0 %579
        %581 = vrot.lane.b32.xlu0 %v573, 125
        %v582 = vpop.permute.xlu0 %581
        %s586 = scalar_lea.vmem [#allocation3], 240
        %587 = vst.msk [vmem:[%s586] sm:$0xff] %vm407, %v578
        %588 = vst.msk [vmem:[%s586 + $0x8] sm:$0xff] %vm407, %v580
        %589 = vst.msk [vmem:[%s586 + $0x10] sm:$0x3f] %vm410, %v582
        %v590 = vld [vmem:[%s262] sm:$0xff]
        %v591 = vld [vmem:[%s262 + $0x8] sm:$0xff]
        %v592 = vld [vmem:[%s262 + $0x10] sm:$0x3f]
        %596 = vrot.lane.b32.xlu0 %v590, 124
        %v597 = vpop.permute.xlu0 %596
        %598 = vrot.lane.b32.xlu0 %v591, 124
        %v599 = vpop.permute.xlu0 %598
        %600 = vrot.lane.b32.xlu0 %v592, 124
        %v601 = vpop.permute.xlu0 %600
        %s605 = scalar_lea.vmem [#allocation3], 264
        %606 = vst.msk [vmem:[%s605] sm:$0xff] %vm407, %v597
        %607 = vst.msk [vmem:[%s605 + $0x8] sm:$0xff] %vm407, %v599
        %608 = vst.msk [vmem:[%s605 + $0x10] sm:$0x3f] %vm410, %v601
        %v609 = vld [vmem:[%s262] sm:$0xff]
        %v610 = vld [vmem:[%s262 + $0x8] sm:$0xff]
        %v611 = vld [vmem:[%s262 + $0x10] sm:$0x3f]
        %615 = vrot.lane.b32.xlu0 %v609, 123
        %v616 = vpop.permute.xlu0 %615
        %617 = vrot.lane.b32.xlu0 %v610, 123
        %v618 = vpop.permute.xlu0 %617
        %619 = vrot.lane.b32.xlu0 %v611, 123
        %v620 = vpop.permute.xlu0 %619
        %s624 = scalar_lea.vmem [#allocation3], 288
        %625 = vst.msk [vmem:[%s624] sm:$0xff] %vm407, %v616
        %626 = vst.msk [vmem:[%s624 + $0x8] sm:$0xff] %vm407, %v618
        %627 = vst.msk [vmem:[%s624 + $0x10] sm:$0x3f] %vm410, %v620
        %v628 = vld [vmem:[%s262] sm:$0xff]
        %v629 = vld [vmem:[%s262 + $0x8] sm:$0xff]
        %v630 = vld [vmem:[%s262 + $0x10] sm:$0x3f]
        %634 = vrot.lane.b32.xlu0 %v628, 122
        %v635 = vpop.permute.xlu0 %634
        %636 = vrot.lane.b32.xlu0 %v629, 122
        %v637 = vpop.permute.xlu0 %636
        %638 = vrot.lane.b32.xlu0 %v630, 122
        %v639 = vpop.permute.xlu0 %638
        %s643 = scalar_lea.vmem [#allocation3], 312
        %644 = vst.msk [vmem:[%s643] sm:$0xff] %vm407, %v635
        %645 = vst.msk [vmem:[%s643 + $0x8] sm:$0xff] %vm407, %v637
        %646 = vst.msk [vmem:[%s643 + $0x10] sm:$0x3f] %vm410, %v639
        %s647 = sld [smem:[#allocation9]]
        %s648 = sld [smem:[#allocation9 + $0x1]]
        %s649 = sld [smem:[#allocation9 + $0x2]]
        %s650 = sld [smem:[#allocation9 + $0x3]]
        %s651 = sld [smem:[#allocation9 + $0x4]]
        %s652 = sld [smem:[#allocation9 + $0x5]]
        %s653 = sld [smem:[#allocation9 + $0x6]]
        %s654 = sld [smem:[#allocation9 + $0x7]]
        %s655 = sld [smem:[#allocation9 + $0x8]]
        %s656 = sld [smem:[#allocation9 + $0x9]]
        %s657 = sld [smem:[#allocation9 + $0xa]]
        %s658 = sld [smem:[#allocation9 + $0xb]]
        %s659 = sld [smem:[#allocation9 + $0xc]]
        %s660 = sld [smem:[#allocation9 + $0xd]]
        %s661 = sld [smem:[#allocation9 + $0xe]]
        %s662 = sld [smem:[#allocation9 + $0xf]]
        %s663 = sld [smem:[#allocation9 + $0x10]]
        %s664 = sld [smem:[#allocation9 + $0x11]]
        %s665 = sld [smem:[#allocation9 + $0x12]]
        %s666 = sld [smem:[#allocation9 + $0x13]]
        %s667 = sld [smem:[#allocation9 + $0x14]]
        %s668 = sld [smem:[#allocation9 + $0x15]]
        %s669 = sld [smem:[#allocation9 + $0x16]]
        %s670 = sld [smem:[#allocation9 + $0x17]]
        %s671 = sld [smem:[#allocation9 + $0x18]]
        %s672 = sld [smem:[#allocation9 + $0x19]]
        %s673 = sld [smem:[#allocation9 + $0x1a]]
        %s674 = sld [smem:[#allocation9 + $0x1b]]
        %s675 = sld [smem:[#allocation9 + $0x1c]]
        %s676 = sld [smem:[#allocation9 + $0x1d]]
        %s677 = sld [smem:[#allocation9 + $0x1e]]
        %s678 = sld [smem:[#allocation9 + $0x1f]]
        %s679 = sld [smem:[#allocation9 + $0x20]]
        %s680 = sld [smem:[#allocation9 + $0x21]]
        %s681 = sld [smem:[#allocation9 + $0x22]]
        %s682 = sld [smem:[#allocation9 + $0x23]]
        %s683 = sld [smem:[#allocation9 + $0x24]]
        %s684 = sld [smem:[#allocation9 + $0x25]]
        %s685 = sld [smem:[#allocation9 + $0x26]]
        %s686 = sld [smem:[#allocation9 + $0x27]]
        %s687 = sld [smem:[#allocation9 + $0x28]]
        %s688 = sld [smem:[#allocation9 + $0x29]]
        %s689 = sld [smem:[#allocation9 + $0x2a]]
        %s690 = sld [smem:[#allocation9 + $0x2b]]
        %s691 = sld [smem:[#allocation9 + $0x2c]]
        %s692 = sld [smem:[#allocation9 + $0x2d]]
        %s693 = sld [smem:[#allocation9 + $0x2e]]
        %s694 = sld [smem:[#allocation9 + $0x2f]]
        %s695 = sld [smem:[#allocation9 + $0x30]]
        %s696 = sld [smem:[#allocation9 + $0x31]]
        %s697 = sld [smem:[#allocation9 + $0x32]]
        %s698 = sld [smem:[#allocation9 + $0x33]]
        %s699 = sld [smem:[#allocation9 + $0x34]]
        %s700 = sld [smem:[#allocation9 + $0x35]]
        %s701 = sld [smem:[#allocation9 + $0x36]]
        %s702 = sld [smem:[#allocation9 + $0x37]]
        %s703 = sld [smem:[#allocation9 + $0x38]]
        %s704 = sld [smem:[#allocation9 + $0x39]]
        %s705 = sld [smem:[#allocation9 + $0x3a]]
        %s706 = sld [smem:[#allocation9 + $0x3b]]
        %s707 = sld [smem:[#allocation9 + $0x3c]]
        %s708 = sld [smem:[#allocation9 + $0x3d]]
        %s709 = sld [smem:[#allocation9 + $0x3e]]
        %s710 = sld [smem:[#allocation9 + $0x3f]]
        %s711 = sld [smem:[#allocation9 + $0x40]]
        %s712 = sld [smem:[#allocation9 + $0x41]]
        %s713 = sld [smem:[#allocation9 + $0x42]]
        %s714 = sld [smem:[#allocation9 + $0x43]]
        %s715 = sld [smem:[#allocation9 + $0x44]]
        %s716 = sld [smem:[#allocation9 + $0x45]]
        %s717 = sld [smem:[#allocation9 + $0x46]]
        %s718 = sld [smem:[#allocation9 + $0x47]]
        %s719 = sld [smem:[#allocation9 + $0x48]]
        %s720 = sld [smem:[#allocation9 + $0x49]]
        %s721 = sld [smem:[#allocation9 + $0x4a]]
        %s722 = sld [smem:[#allocation9 + $0x4b]]
        %s723 = sld [smem:[#allocation9 + $0x4c]]
        %s724 = sld [smem:[#allocation9 + $0x4d]]
        %s725 = sld [smem:[#allocation9 + $0x4e]]
        %s726 = sld [smem:[#allocation9 + $0x4f]]
        %s727 = sld [smem:[#allocation9 + $0x50]]
        %s728 = sld [smem:[#allocation9 + $0x51]]
        %s729 = sld [smem:[#allocation9 + $0x52]]
        %s730 = sld [smem:[#allocation9 + $0x53]]
        %s731 = sld [smem:[#allocation9 + $0x54]]
        %s732 = sld [smem:[#allocation9 + $0x55]]
        %s733 = sld [smem:[#allocation9 + $0x56]]
        %s734 = sld [smem:[#allocation9 + $0x57]]
        %s735 = sld [smem:[#allocation9 + $0x58]]
        %s736 = sld [smem:[#allocation9 + $0x59]]
        %s737 = sld [smem:[#allocation9 + $0x5a]]
        %s738 = sld [smem:[#allocation9 + $0x5b]]
        %s739 = sld [smem:[#allocation9 + $0x5c]]
        %s740 = sld [smem:[#allocation9 + $0x5d]]
        %s741 = sld [smem:[#allocation9 + $0x5e]]
        %s742 = sld [smem:[#allocation9 + $0x5f]]
        %s743 = sld [smem:[#allocation9 + $0x60]]
        %s744 = sld [smem:[#allocation9 + $0x61]]
        %v745 = vld [vmem:[#allocation3] sm:$0xff]
        %v746 = vld [vmem:[#allocation3 + $0x8] sm:$0xff]
        %v747 = vstv %s647
        %v748 = vmul.f32 %v747, %v745
        %v749 = vmul.f32 %v747, %v746
        %v750 = vld [vmem:[%s427] sm:$0xff]
        %v751 = vld [vmem:[%s427 + $0x8] sm:$0xff]
        %v752 = vstv %s648
        %v753 = vmul.f32 %v752, %v750
        %v754 = vmul.f32 %v752, %v751
        %v755 = vld [vmem:[%s446] sm:$0xff]
        %v756 = vld [vmem:[%s446 + $0x8] sm:$0xff]
        %v757 = vstv %s649
        %v758 = vmul.f32 %v757, %v755
        %v759 = vmul.f32 %v757, %v756
        %v760 = vld [vmem:[%s465] sm:$0xff]
        %v761 = vld [vmem:[%s465 + $0x8] sm:$0xff]
        %v762 = vstv %s650
        %v763 = vmul.f32 %v762, %v760
        %v764 = vmul.f32 %v762, %v761
        %v765 = vld [vmem:[%s484] sm:$0xff]
        %v766 = vld [vmem:[%s484 + $0x8] sm:$0xff]
        %v767 = vstv %s651
        %v768 = vmul.f32 %v767, %v765
        %v769 = vmul.f32 %v767, %v766
        %v770 = vld [vmem:[%s503] sm:$0xff]
        %v771 = vld [vmem:[%s503 + $0x8] sm:$0xff]
        %v772 = vstv %s652
        %v773 = vmul.f32 %v772, %v770
        %v774 = vmul.f32 %v772, %v771
        %v775 = vld [vmem:[%s522] sm:$0xff]
        %v776 = vld [vmem:[%s522 + $0x8] sm:$0xff]
        %v777 = vstv %s653
        %v778 = vmul.f32 %v777, %v775
        %v779 = vmul.f32 %v777, %v776
        %v780 = vld [vmem:[#allocation3 + $0x1] sm:$0xff]
        %v781 = vld [vmem:[#allocation3 + $0x9] sm:$0xff]
        %v782 = vstv %s654
        %v783 = vmul.f32 %v782, %v780
        %v784 = vmul.f32 %v782, %v781
        %v785 = vadd.f32 %v748, %v783
        %v786 = vadd.f32 %v749, %v784
        %v787 = vld [vmem:[%s427 + $0x1] sm:$0xff]
        %v788 = vld [vmem:[%s427 + $0x9] sm:$0xff]
        %v789 = vstv %s655
        %v790 = vmul.f32 %v789, %v787
        %v791 = vmul.f32 %v789, %v788
        %v792 = vadd.f32 %v753, %v790
        %v793 = vadd.f32 %v754, %v791
        %v794 = vld [vmem:[%s446 + $0x1] sm:$0xff]
        %v795 = vld [vmem:[%s446 + $0x9] sm:$0xff]
        %v796 = vstv %s656
        %v797 = vmul.f32 %v796, %v794
        %v798 = vmul.f32 %v796, %v795
        %v799 = vadd.f32 %v758, %v797
        %v800 = vadd.f32 %v759, %v798
        %v801 = vld [vmem:[%s465 + $0x1] sm:$0xff]
        %v802 = vld [vmem:[%s465 + $0x9] sm:$0xff]
        %v803 = vstv %s657
        %v804 = vmul.f32 %v803, %v801
        %v805 = vmul.f32 %v803, %v802
        %v806 = vadd.f32 %v763, %v804
        %v807 = vadd.f32 %v764, %v805
        %v808 = vld [vmem:[%s484 + $0x1] sm:$0xff]
        %v809 = vld [vmem:[%s484 + $0x9] sm:$0xff]
        %v810 = vstv %s658
        %v811 = vmul.f32 %v810, %v808
        %v812 = vmul.f32 %v810, %v809
        %v813 = vadd.f32 %v768, %v811
        %v814 = vadd.f32 %v769, %v812
        %v815 = vld [vmem:[%s503 + $0x1] sm:$0xff]
        %v816 = vld [vmem:[%s503 + $0x9] sm:$0xff]
        %v817 = vstv %s659
        %v818 = vmul.f32 %v817, %v815
        %v819 = vmul.f32 %v817, %v816
        %v820 = vadd.f32 %v773, %v818
        %v821 = vadd.f32 %v774, %v819
        %v822 = vld [vmem:[%s522 + $0x1] sm:$0xff]
        %v823 = vld [vmem:[%s522 + $0x9] sm:$0xff]
        %v824 = vstv %s660
        %v825 = vmul.f32 %v824, %v822
        %v826 = vmul.f32 %v824, %v823
        %v827 = vadd.f32 %v778, %v825
        %v828 = vadd.f32 %v779, %v826
        %v829 = vld [vmem:[#allocation3 + $0x2] sm:$0xff]
        %v830 = vld [vmem:[#allocation3 + $0xa] sm:$0xff]
        %v831 = vstv %s661
        %v832 = vmul.f32 %v831, %v829
        %v833 = vmul.f32 %v831, %v830
        %v834 = vadd.f32 %v785, %v832
        %v835 = vadd.f32 %v786, %v833
        %v836 = vld [vmem:[%s427 + $0x2] sm:$0xff]
        %v837 = vld [vmem:[%s427 + $0xa] sm:$0xff]
        %v838 = vstv %s662
        %v839 = vmul.f32 %v838, %v836
        %v840 = vmul.f32 %v838, %v837
        %v841 = vadd.f32 %v792, %v839
        %v842 = vadd.f32 %v793, %v840
        %v843 = vld [vmem:[%s446 + $0x2] sm:$0xff]
        %v844 = vld [vmem:[%s446 + $0xa] sm:$0xff]
        %v845 = vstv %s663
        %v846 = vmul.f32 %v845, %v843
        %v847 = vmul.f32 %v845, %v844
        %v848 = vadd.f32 %v799, %v846
        %v849 = vadd.f32 %v800, %v847
        %v850 = vld [vmem:[%s465 + $0x2] sm:$0xff]
        %v851 = vld [vmem:[%s465 + $0xa] sm:$0xff]
        %v852 = vstv %s664
        %v853 = vmul.f32 %v852, %v850
        %v854 = vmul.f32 %v852, %v851
        %v855 = vadd.f32 %v806, %v853
        %v856 = vadd.f32 %v807, %v854
        %v857 = vld [vmem:[%s484 + $0x2] sm:$0xff]
        %v858 = vld [vmem:[%s484 + $0xa] sm:$0xff]
        %v859 = vstv %s665
        %v860 = vmul.f32 %v859, %v857
        %v861 = vmul.f32 %v859, %v858
        %v862 = vadd.f32 %v813, %v860
        %v863 = vadd.f32 %v814, %v861
        %v864 = vld [vmem:[%s503 + $0x2] sm:$0xff]
        %v865 = vld [vmem:[%s503 + $0xa] sm:$0xff]
        %v866 = vstv %s666
        %v867 = vmul.f32 %v866, %v864
        %v868 = vmul.f32 %v866, %v865
        %v869 = vadd.f32 %v820, %v867
        %v870 = vadd.f32 %v821, %v868
        %v871 = vld [vmem:[%s522 + $0x2] sm:$0xff]
        %v872 = vld [vmem:[%s522 + $0xa] sm:$0xff]
        %v873 = vstv %s667
        %v874 = vmul.f32 %v873, %v871
        %v875 = vmul.f32 %v873, %v872
        %v876 = vadd.f32 %v827, %v874
        %v877 = vadd.f32 %v828, %v875
        %v878 = vld [vmem:[#allocation3 + $0x3] sm:$0xff]
        %v879 = vld [vmem:[#allocation3 + $0xb] sm:$0xff]
        %v880 = vstv %s668
        %v881 = vmul.f32 %v880, %v878
        %v882 = vmul.f32 %v880, %v879
        %v883 = vadd.f32 %v834, %v881
        %v884 = vadd.f32 %v835, %v882
        %v885 = vld [vmem:[%s427 + $0x3] sm:$0xff]
        %v886 = vld [vmem:[%s427 + $0xb] sm:$0xff]
        %v887 = vstv %s669
        %v888 = vmul.f32 %v887, %v885
        %v889 = vmul.f32 %v887, %v886
        %v890 = vadd.f32 %v841, %v888
        %v891 = vadd.f32 %v842, %v889
        %v892 = vld [vmem:[%s446 + $0x3] sm:$0xff]
        %v893 = vld [vmem:[%s446 + $0xb] sm:$0xff]
        %v894 = vstv %s670
        %v895 = vmul.f32 %v894, %v892
        %v896 = vmul.f32 %v894, %v893
        %v897 = vadd.f32 %v848, %v895
        %v898 = vadd.f32 %v849, %v896
        %v899 = vld [vmem:[%s465 + $0x3] sm:$0xff]
        %v900 = vld [vmem:[%s465 + $0xb] sm:$0xff]
        %v901 = vstv %s671
        %v902 = vmul.f32 %v901, %v899
        %v903 = vmul.f32 %v901, %v900
        %v904 = vadd.f32 %v855, %v902
        %v905 = vadd.f32 %v856, %v903
        %v906 = vld [vmem:[%s484 + $0x3] sm:$0xff]
        %v907 = vld [vmem:[%s484 + $0xb] sm:$0xff]
        %v908 = vstv %s672
        %v909 = vmul.f32 %v908, %v906
        %v910 = vmul.f32 %v908, %v907
        %v911 = vadd.f32 %v862, %v909
        %v912 = vadd.f32 %v863, %v910
        %v913 = vld [vmem:[%s503 + $0x3] sm:$0xff]
        %v914 = vld [vmem:[%s503 + $0xb] sm:$0xff]
        %v915 = vstv %s673
        %v916 = vmul.f32 %v915, %v913
        %v917 = vmul.f32 %v915, %v914
        %v918 = vadd.f32 %v869, %v916
        %v919 = vadd.f32 %v870, %v917
        %v920 = vld [vmem:[%s522 + $0x3] sm:$0xff]
        %v921 = vld [vmem:[%s522 + $0xb] sm:$0xff]
        %v922 = vstv %s674
        %v923 = vmul.f32 %v922, %v920
        %v924 = vmul.f32 %v922, %v921
        %v925 = vadd.f32 %v876, %v923
        %v926 = vadd.f32 %v877, %v924
        %v927 = vld [vmem:[#allocation3 + $0x4] sm:$0xff]
        %v928 = vld [vmem:[#allocation3 + $0xc] sm:$0xff]
        %v929 = vstv %s675
        %v930 = vmul.f32 %v929, %v927
        %v931 = vmul.f32 %v929, %v928
        %v932 = vadd.f32 %v883, %v930
        %v933 = vadd.f32 %v884, %v931
        %v934 = vld [vmem:[%s427 + $0x4] sm:$0xff]
        %v935 = vld [vmem:[%s427 + $0xc] sm:$0xff]
        %v936 = vstv %s676
        %v937 = vmul.f32 %v936, %v934
        %v938 = vmul.f32 %v936, %v935
        %v939 = vadd.f32 %v890, %v937
        %v940 = vadd.f32 %v891, %v938
        %v941 = vld [vmem:[%s446 + $0x4] sm:$0xff]
        %v942 = vld [vmem:[%s446 + $0xc] sm:$0xff]
        %v943 = vstv %s677
        %v944 = vmul.f32 %v943, %v941
        %v945 = vmul.f32 %v943, %v942
        %v946 = vadd.f32 %v897, %v944
        %v947 = vadd.f32 %v898, %v945
        %v948 = vld [vmem:[%s465 + $0x4] sm:$0xff]
        %v949 = vld [vmem:[%s465 + $0xc] sm:$0xff]
        %v950 = vstv %s678
        %v951 = vmul.f32 %v950, %v948
        %v952 = vmul.f32 %v950, %v949
        %v953 = vadd.f32 %v904, %v951
        %v954 = vadd.f32 %v905, %v952
        %v955 = vld [vmem:[%s484 + $0x4] sm:$0xff]
        %v956 = vld [vmem:[%s484 + $0xc] sm:$0xff]
        %v957 = vstv %s679
        %v958 = vmul.f32 %v957, %v955
        %v959 = vmul.f32 %v957, %v956
        %v960 = vadd.f32 %v911, %v958
        %v961 = vadd.f32 %v912, %v959
        %v962 = vld [vmem:[%s503 + $0x4] sm:$0xff]
        %v963 = vld [vmem:[%s503 + $0xc] sm:$0xff]
        %v964 = vstv %s680
        %v965 = vmul.f32 %v964, %v962
        %v966 = vmul.f32 %v964, %v963
        %v967 = vadd.f32 %v918, %v965
        %v968 = vadd.f32 %v919, %v966
        %v969 = vld [vmem:[%s522 + $0x4] sm:$0xff]
        %v970 = vld [vmem:[%s522 + $0xc] sm:$0xff]
        %v971 = vstv %s681
        %v972 = vmul.f32 %v971, %v969
        %v973 = vmul.f32 %v971, %v970
        %v974 = vadd.f32 %v925, %v972
        %v975 = vadd.f32 %v926, %v973
        %v976 = vld [vmem:[#allocation3 + $0x5] sm:$0xff]
        %v977 = vld [vmem:[#allocation3 + $0xd] sm:$0xff]
        %v978 = vstv %s682
        %v979 = vmul.f32 %v978, %v976
        %v980 = vmul.f32 %v978, %v977
        %v981 = vadd.f32 %v932, %v979
        %v982 = vadd.f32 %v933, %v980
        %v983 = vld [vmem:[%s427 + $0x5] sm:$0xff]
        %v984 = vld [vmem:[%s427 + $0xd] sm:$0xff]
        %v985 = vstv %s683
        %v986 = vmul.f32 %v985, %v983
        %v987 = vmul.f32 %v985, %v984
        %v988 = vadd.f32 %v939, %v986
        %v989 = vadd.f32 %v940, %v987
        %v990 = vld [vmem:[%s446 + $0x5] sm:$0xff]
        %v991 = vld [vmem:[%s446 + $0xd] sm:$0xff]
        %v992 = vstv %s684
        %v993 = vmul.f32 %v992, %v990
        %v994 = vmul.f32 %v992, %v991
        %v995 = vadd.f32 %v946, %v993
        %v996 = vadd.f32 %v947, %v994
        %v997 = vld [vmem:[%s465 + $0x5] sm:$0xff]
        %v998 = vld [vmem:[%s465 + $0xd] sm:$0xff]
        %v999 = vstv %s685
        %v1000 = vmul.f32 %v999, %v997
        %v1001 = vmul.f32 %v999, %v998
        %v1002 = vadd.f32 %v953, %v1000
        %v1003 = vadd.f32 %v954, %v1001
        %v1004 = vld [vmem:[%s484 + $0x5] sm:$0xff]
        %v1005 = vld [vmem:[%s484 + $0xd] sm:$0xff]
        %v1006 = vstv %s686
        %v1007 = vmul.f32 %v1006, %v1004
        %v1008 = vmul.f32 %v1006, %v1005
        %v1009 = vadd.f32 %v960, %v1007
        %v1010 = vadd.f32 %v961, %v1008
        %v1011 = vld [vmem:[%s503 + $0x5] sm:$0xff]
        %v1012 = vld [vmem:[%s503 + $0xd] sm:$0xff]
        %v1013 = vstv %s687
        %v1014 = vmul.f32 %v1013, %v1011
        %v1015 = vmul.f32 %v1013, %v1012
        %v1016 = vadd.f32 %v967, %v1014
        %v1017 = vadd.f32 %v968, %v1015
        %v1018 = vld [vmem:[%s522 + $0x5] sm:$0xff]
        %v1019 = vld [vmem:[%s522 + $0xd] sm:$0xff]
        %v1020 = vstv %s688
        %v1021 = vmul.f32 %v1020, %v1018
        %v1022 = vmul.f32 %v1020, %v1019
        %v1023 = vadd.f32 %v974, %v1021
        %v1024 = vadd.f32 %v975, %v1022
        %v1025 = vld [vmem:[#allocation3 + $0x6] sm:$0xff]
        %v1026 = vld [vmem:[#allocation3 + $0xe] sm:$0xff]
        %v1027 = vstv %s689
        %v1028 = vmul.f32 %v1027, %v1025
        %v1029 = vmul.f32 %v1027, %v1026
        %v1030 = vadd.f32 %v981, %v1028
        %v1031 = vadd.f32 %v982, %v1029
        %v1032 = vld [vmem:[%s427 + $0x6] sm:$0xff]
        %v1033 = vld [vmem:[%s427 + $0xe] sm:$0xff]
        %v1034 = vstv %s690
        %v1035 = vmul.f32 %v1034, %v1032
        %v1036 = vmul.f32 %v1034, %v1033
        %v1037 = vadd.f32 %v988, %v1035
        %v1038 = vadd.f32 %v989, %v1036
        %v1039 = vld [vmem:[%s446 + $0x6] sm:$0xff]
        %v1040 = vld [vmem:[%s446 + $0xe] sm:$0xff]
        %v1041 = vstv %s691
        %v1042 = vmul.f32 %v1041, %v1039
        %v1043 = vmul.f32 %v1041, %v1040
        %v1044 = vadd.f32 %v995, %v1042
        %v1045 = vadd.f32 %v996, %v1043
        %v1046 = vld [vmem:[%s465 + $0x6] sm:$0xff]
        %v1047 = vld [vmem:[%s465 + $0xe] sm:$0xff]
        %v1048 = vstv %s692
        %v1049 = vmul.f32 %v1048, %v1046
        %v1050 = vmul.f32 %v1048, %v1047
        %v1051 = vadd.f32 %v1002, %v1049
        %v1052 = vadd.f32 %v1003, %v1050
        %v1053 = vld [vmem:[%s484 + $0x6] sm:$0xff]
        %v1054 = vld [vmem:[%s484 + $0xe] sm:$0xff]
        %v1055 = vstv %s693
        %v1056 = vmul.f32 %v1055, %v1053
        %v1057 = vmul.f32 %v1055, %v1054
        %v1058 = vadd.f32 %v1009, %v1056
        %v1059 = vadd.f32 %v1010, %v1057
        %v1060 = vld [vmem:[%s503 + $0x6] sm:$0xff]
        %v1061 = vld [vmem:[%s503 + $0xe] sm:$0xff]
        %v1062 = vstv %s694
        %v1063 = vmul.f32 %v1062, %v1060
        %v1064 = vmul.f32 %v1062, %v1061
        %v1065 = vadd.f32 %v1016, %v1063
        %v1066 = vadd.f32 %v1017, %v1064
        %v1067 = vld [vmem:[%s522 + $0x6] sm:$0xff]
        %v1068 = vld [vmem:[%s522 + $0xe] sm:$0xff]
        %v1069 = vstv %s695
        %v1070 = vmul.f32 %v1069, %v1067
        %v1071 = vmul.f32 %v1069, %v1068
        %v1072 = vadd.f32 %v1023, %v1070
        %v1073 = vadd.f32 %v1024, %v1071
        %v1074 = vld [vmem:[%s529] sm:$0xff]
        %v1075 = vld [vmem:[%s529 + $0x8] sm:$0xff]
        %v1076 = vstv %s696
        %v1077 = vmul.f32 %v1076, %v1074
        %v1078 = vmul.f32 %v1076, %v1075
        %v1079 = vadd.f32 %v1030, %v1077
        %v1080 = vadd.f32 %v1031, %v1078
        %v1081 = vld [vmem:[%s548] sm:$0xff]
        %v1082 = vld [vmem:[%s548 + $0x8] sm:$0xff]
        %v1083 = vstv %s697
        %v1084 = vmul.f32 %v1083, %v1081
        %v1085 = vmul.f32 %v1083, %v1082
        %v1086 = vadd.f32 %v1037, %v1084
        %v1087 = vadd.f32 %v1038, %v1085
        %v1088 = vld [vmem:[%s567] sm:$0xff]
        %v1089 = vld [vmem:[%s567 + $0x8] sm:$0xff]
        %v1090 = vstv %s698
        %v1091 = vmul.f32 %v1090, %v1088
        %v1092 = vmul.f32 %v1090, %v1089
        %v1093 = vadd.f32 %v1044, %v1091
        %v1094 = vadd.f32 %v1045, %v1092
        %v1095 = vld [vmem:[%s586] sm:$0xff]
        %v1096 = vld [vmem:[%s586 + $0x8] sm:$0xff]
        %v1097 = vstv %s699
        %v1098 = vmul.f32 %v1097, %v1095
        %v1099 = vmul.f32 %v1097, %v1096
        %v1100 = vadd.f32 %v1051, %v1098
        %v1101 = vadd.f32 %v1052, %v1099
        %v1102 = vld [vmem:[%s605] sm:$0xff]
        %v1103 = vld [vmem:[%s605 + $0x8] sm:$0xff]
        %v1104 = vstv %s700
        %v1105 = vmul.f32 %v1104, %v1102
        %v1106 = vmul.f32 %v1104, %v1103
        %v1107 = vadd.f32 %v1058, %v1105
        %v1108 = vadd.f32 %v1059, %v1106
        %v1109 = vld [vmem:[%s624] sm:$0xff]
        %v1110 = vld [vmem:[%s624 + $0x8] sm:$0xff]
        %v1111 = vstv %s701
        %v1112 = vmul.f32 %v1111, %v1109
        %v1113 = vmul.f32 %v1111, %v1110
        %v1114 = vadd.f32 %v1065, %v1112
        %v1115 = vadd.f32 %v1066, %v1113
        %v1116 = vld [vmem:[%s643] sm:$0xff]
        %v1117 = vld [vmem:[%s643 + $0x8] sm:$0xff]
        %v1118 = vstv %s702
        %v1119 = vmul.f32 %v1118, %v1116
        %v1120 = vmul.f32 %v1118, %v1117
        %v1121 = vadd.f32 %v1072, %v1119
        %v1122 = vadd.f32 %v1073, %v1120
        %v1123 = vld [vmem:[%s529 + $0x1] sm:$0xff]
        %v1124 = vld [vmem:[%s529 + $0x9] sm:$0xff]
        %v1125 = vstv %s703
        %v1126 = vmul.f32 %v1125, %v1123
        %v1127 = vmul.f32 %v1125, %v1124
        %v1128 = vadd.f32 %v1079, %v1126
        %v1129 = vadd.f32 %v1080, %v1127
        %v1130 = vld [vmem:[%s548 + $0x1] sm:$0xff]
        %v1131 = vld [vmem:[%s548 + $0x9] sm:$0xff]
        %v1132 = vstv %s704
        %v1133 = vmul.f32 %v1132, %v1130
        %v1134 = vmul.f32 %v1132, %v1131
        %v1135 = vadd.f32 %v1086, %v1133
        %v1136 = vadd.f32 %v1087, %v1134
        %v1137 = vld [vmem:[%s567 + $0x1] sm:$0xff]
        %v1138 = vld [vmem:[%s567 + $0x9] sm:$0xff]
        %v1139 = vstv %s705
        %v1140 = vmul.f32 %v1139, %v1137
        %v1141 = vmul.f32 %v1139, %v1138
        %v1142 = vadd.f32 %v1093, %v1140
        %v1143 = vadd.f32 %v1094, %v1141
        %v1144 = vld [vmem:[%s586 + $0x1] sm:$0xff]
        %v1145 = vld [vmem:[%s586 + $0x9] sm:$0xff]
        %v1146 = vstv %s706
        %v1147 = vmul.f32 %v1146, %v1144
        %v1148 = vmul.f32 %v1146, %v1145
        %v1149 = vadd.f32 %v1100, %v1147
        %v1150 = vadd.f32 %v1101, %v1148
        %v1151 = vld [vmem:[%s605 + $0x1] sm:$0xff]
        %v1152 = vld [vmem:[%s605 + $0x9] sm:$0xff]
        %v1153 = vstv %s707
        %v1154 = vmul.f32 %v1153, %v1151
        %v1155 = vmul.f32 %v1153, %v1152
        %v1156 = vadd.f32 %v1107, %v1154
        %v1157 = vadd.f32 %v1108, %v1155
        %v1158 = vld [vmem:[%s624 + $0x1] sm:$0xff]
        %v1159 = vld [vmem:[%s624 + $0x9] sm:$0xff]
        %v1160 = vstv %s708
        %v1161 = vmul.f32 %v1160, %v1158
        %v1162 = vmul.f32 %v1160, %v1159
        %v1163 = vadd.f32 %v1114, %v1161
        %v1164 = vadd.f32 %v1115, %v1162
        %v1165 = vld [vmem:[%s643 + $0x1] sm:$0xff]
        %v1166 = vld [vmem:[%s643 + $0x9] sm:$0xff]
        %v1167 = vstv %s709
        %v1168 = vmul.f32 %v1167, %v1165
        %v1169 = vmul.f32 %v1167, %v1166
        %v1170 = vadd.f32 %v1121, %v1168
        %v1171 = vadd.f32 %v1122, %v1169
        %v1172 = vld [vmem:[%s529 + $0x2] sm:$0xff]
        %v1173 = vld [vmem:[%s529 + $0xa] sm:$0xff]
        %v1174 = vstv %s710
        %v1175 = vmul.f32 %v1174, %v1172
        %v1176 = vmul.f32 %v1174, %v1173
        %v1177 = vadd.f32 %v1128, %v1175
        %v1178 = vadd.f32 %v1129, %v1176
        %v1179 = vld [vmem:[%s548 + $0x2] sm:$0xff]
        %v1180 = vld [vmem:[%s548 + $0xa] sm:$0xff]
        %v1181 = vstv %s711
        %v1182 = vmul.f32 %v1181, %v1179
        %v1183 = vmul.f32 %v1181, %v1180
        %v1184 = vadd.f32 %v1135, %v1182
        %v1185 = vadd.f32 %v1136, %v1183
        %v1186 = vld [vmem:[%s567 + $0x2] sm:$0xff]
        %v1187 = vld [vmem:[%s567 + $0xa] sm:$0xff]
        %v1188 = vstv %s712
        %v1189 = vmul.f32 %v1188, %v1186
        %v1190 = vmul.f32 %v1188, %v1187
        %v1191 = vadd.f32 %v1142, %v1189
        %v1192 = vadd.f32 %v1143, %v1190
        %v1193 = vld [vmem:[%s586 + $0x2] sm:$0xff]
        %v1194 = vld [vmem:[%s586 + $0xa] sm:$0xff]
        %v1195 = vstv %s713
        %v1196 = vmul.f32 %v1195, %v1193
        %v1197 = vmul.f32 %v1195, %v1194
        %v1198 = vadd.f32 %v1149, %v1196
        %v1199 = vadd.f32 %v1150, %v1197
        %v1200 = vld [vmem:[%s605 + $0x2] sm:$0xff]
        %v1201 = vld [vmem:[%s605 + $0xa] sm:$0xff]
        %v1202 = vstv %s714
        %v1203 = vmul.f32 %v1202, %v1200
        %v1204 = vmul.f32 %v1202, %v1201
        %v1205 = vadd.f32 %v1156, %v1203
        %v1206 = vadd.f32 %v1157, %v1204
        %v1207 = vld [vmem:[%s624 + $0x2] sm:$0xff]
        %v1208 = vld [vmem:[%s624 + $0xa] sm:$0xff]
        %v1209 = vstv %s715
        %v1210 = vmul.f32 %v1209, %v1207
        %v1211 = vmul.f32 %v1209, %v1208
        %v1212 = vadd.f32 %v1163, %v1210
        %v1213 = vadd.f32 %v1164, %v1211
        %v1214 = vld [vmem:[%s643 + $0x2] sm:$0xff]
        %v1215 = vld [vmem:[%s643 + $0xa] sm:$0xff]
        %v1216 = vstv %s716
        %v1217 = vmul.f32 %v1216, %v1214
        %v1218 = vmul.f32 %v1216, %v1215
        %v1219 = vadd.f32 %v1170, %v1217
        %v1220 = vadd.f32 %v1171, %v1218
        %v1221 = vld [vmem:[%s529 + $0x3] sm:$0xff]
        %v1222 = vld [vmem:[%s529 + $0xb] sm:$0xff]
        %v1223 = vstv %s717
        %v1224 = vmul.f32 %v1223, %v1221
        %v1225 = vmul.f32 %v1223, %v1222
        %v1226 = vadd.f32 %v1177, %v1224
        %v1227 = vadd.f32 %v1178, %v1225
        %v1228 = vld [vmem:[%s548 + $0x3] sm:$0xff]
        %v1229 = vld [vmem:[%s548 + $0xb] sm:$0xff]
        %v1230 = vstv %s718
        %v1231 = vmul.f32 %v1230, %v1228
        %v1232 = vmul.f32 %v1230, %v1229
        %v1233 = vadd.f32 %v1184, %v1231
        %v1234 = vadd.f32 %v1185, %v1232
        %v1235 = vld [vmem:[%s567 + $0x3] sm:$0xff]
        %v1236 = vld [vmem:[%s567 + $0xb] sm:$0xff]
        %v1237 = vstv %s719
        %v1238 = vmul.f32 %v1237, %v1235
        %v1239 = vmul.f32 %v1237, %v1236
        %v1240 = vadd.f32 %v1191, %v1238
        %v1241 = vadd.f32 %v1192, %v1239
        %v1242 = vld [vmem:[%s586 + $0x3] sm:$0xff]
        %v1243 = vld [vmem:[%s586 + $0xb] sm:$0xff]
        %v1244 = vstv %s720
        %v1245 = vmul.f32 %v1244, %v1242
        %v1246 = vmul.f32 %v1244, %v1243
        %v1247 = vadd.f32 %v1198, %v1245
        %v1248 = vadd.f32 %v1199, %v1246
        %v1249 = vld [vmem:[%s605 + $0x3] sm:$0xff]
        %v1250 = vld [vmem:[%s605 + $0xb] sm:$0xff]
        %v1251 = vstv %s721
        %v1252 = vmul.f32 %v1251, %v1249
        %v1253 = vmul.f32 %v1251, %v1250
        %v1254 = vadd.f32 %v1205, %v1252
        %v1255 = vadd.f32 %v1206, %v1253
        %v1256 = vld [vmem:[%s624 + $0x3] sm:$0xff]
        %v1257 = vld [vmem:[%s624 + $0xb] sm:$0xff]
        %v1258 = vstv %s722
        %v1259 = vmul.f32 %v1258, %v1256
        %v1260 = vmul.f32 %v1258, %v1257
        %v1261 = vadd.f32 %v1212, %v1259
        %v1262 = vadd.f32 %v1213, %v1260
        %v1263 = vld [vmem:[%s643 + $0x3] sm:$0xff]
        %v1264 = vld [vmem:[%s643 + $0xb] sm:$0xff]
        %v1265 = vstv %s723
        %v1266 = vmul.f32 %v1265, %v1263
        %v1267 = vmul.f32 %v1265, %v1264
        %v1268 = vadd.f32 %v1219, %v1266
        %v1269 = vadd.f32 %v1220, %v1267
        %v1270 = vld [vmem:[%s529 + $0x4] sm:$0xff]
        %v1271 = vld [vmem:[%s529 + $0xc] sm:$0xff]
        %v1272 = vstv %s724
        %v1273 = vmul.f32 %v1272, %v1270
        %v1274 = vmul.f32 %v1272, %v1271
        %v1275 = vadd.f32 %v1226, %v1273
        %v1276 = vadd.f32 %v1227, %v1274
        %v1277 = vld [vmem:[%s548 + $0x4] sm:$0xff]
        %v1278 = vld [vmem:[%s548 + $0xc] sm:$0xff]
        %v1279 = vstv %s725
        %v1280 = vmul.f32 %v1279, %v1277
        %v1281 = vmul.f32 %v1279, %v1278
        %v1282 = vadd.f32 %v1233, %v1280
        %v1283 = vadd.f32 %v1234, %v1281
        %v1284 = vld [vmem:[%s567 + $0x4] sm:$0xff]
        %v1285 = vld [vmem:[%s567 + $0xc] sm:$0xff]
        %v1286 = vstv %s726
        %v1287 = vmul.f32 %v1286, %v1284
        %v1288 = vmul.f32 %v1286, %v1285
        %v1289 = vadd.f32 %v1240, %v1287
        %v1290 = vadd.f32 %v1241, %v1288
        %v1291 = vld [vmem:[%s586 + $0x4] sm:$0xff]
        %v1292 = vld [vmem:[%s586 + $0xc] sm:$0xff]
        %v1293 = vstv %s727
        %v1294 = vmul.f32 %v1293, %v1291
        %v1295 = vmul.f32 %v1293, %v1292
        %v1296 = vadd.f32 %v1247, %v1294
        %v1297 = vadd.f32 %v1248, %v1295
        %v1298 = vld [vmem:[%s605 + $0x4] sm:$0xff]
        %v1299 = vld [vmem:[%s605 + $0xc] sm:$0xff]
        %v1300 = vstv %s728
        %v1301 = vmul.f32 %v1300, %v1298
        %v1302 = vmul.f32 %v1300, %v1299
        %v1303 = vadd.f32 %v1254, %v1301
        %v1304 = vadd.f32 %v1255, %v1302
        %v1305 = vld [vmem:[%s624 + $0x4] sm:$0xff]
        %v1306 = vld [vmem:[%s624 + $0xc] sm:$0xff]
        %v1307 = vstv %s729
        %v1308 = vmul.f32 %v1307, %v1305
        %v1309 = vmul.f32 %v1307, %v1306
        %v1310 = vadd.f32 %v1261, %v1308
        %v1311 = vadd.f32 %v1262, %v1309
        %v1312 = vld [vmem:[%s643 + $0x4] sm:$0xff]
        %v1313 = vld [vmem:[%s643 + $0xc] sm:$0xff]
        %v1314 = vstv %s730
        %v1315 = vmul.f32 %v1314, %v1312
        %v1316 = vmul.f32 %v1314, %v1313
        %v1317 = vadd.f32 %v1268, %v1315
        %v1318 = vadd.f32 %v1269, %v1316
        %v1319 = vld [vmem:[%s529 + $0x5] sm:$0xff]
        %v1320 = vld [vmem:[%s529 + $0xd] sm:$0xff]
        %v1321 = vstv %s731
        %v1322 = vmul.f32 %v1321, %v1319
        %v1323 = vmul.f32 %v1321, %v1320
        %v1324 = vadd.f32 %v1275, %v1322
        %v1325 = vadd.f32 %v1276, %v1323
        %v1326 = vld [vmem:[%s548 + $0x5] sm:$0xff]
        %v1327 = vld [vmem:[%s548 + $0xd] sm:$0xff]
        %v1328 = vstv %s732
        %v1329 = vmul.f32 %v1328, %v1326
        %v1330 = vmul.f32 %v1328, %v1327
        %v1331 = vadd.f32 %v1282, %v1329
        %v1332 = vadd.f32 %v1283, %v1330
        %v1333 = vld [vmem:[%s567 + $0x5] sm:$0xff]
        %v1334 = vld [vmem:[%s567 + $0xd] sm:$0xff]
        %v1335 = vstv %s733
        %v1336 = vmul.f32 %v1335, %v1333
        %v1337 = vmul.f32 %v1335, %v1334
        %v1338 = vadd.f32 %v1289, %v1336
        %v1339 = vadd.f32 %v1290, %v1337
        %v1340 = vld [vmem:[%s586 + $0x5] sm:$0xff]
        %v1341 = vld [vmem:[%s586 + $0xd] sm:$0xff]
        %v1342 = vstv %s734
        %v1343 = vmul.f32 %v1342, %v1340
        %v1344 = vmul.f32 %v1342, %v1341
        %v1345 = vadd.f32 %v1296, %v1343
        %v1346 = vadd.f32 %v1297, %v1344
        %v1347 = vld [vmem:[%s605 + $0x5] sm:$0xff]
        %v1348 = vld [vmem:[%s605 + $0xd] sm:$0xff]
        %v1349 = vstv %s735
        %v1350 = vmul.f32 %v1349, %v1347
        %v1351 = vmul.f32 %v1349, %v1348
        %v1352 = vadd.f32 %v1303, %v1350
        %v1353 = vadd.f32 %v1304, %v1351
        %v1354 = vld [vmem:[%s624 + $0x5] sm:$0xff]
        %v1355 = vld [vmem:[%s624 + $0xd] sm:$0xff]
        %v1356 = vstv %s736
        %v1357 = vmul.f32 %v1356, %v1354
        %v1358 = vmul.f32 %v1356, %v1355
        %v1359 = vadd.f32 %v1310, %v1357
        %v1360 = vadd.f32 %v1311, %v1358
        %v1361 = vld [vmem:[%s643 + $0x5] sm:$0xff]
        %v1362 = vld [vmem:[%s643 + $0xd] sm:$0xff]
        %v1363 = vstv %s737
        %v1364 = vmul.f32 %v1363, %v1361
        %v1365 = vmul.f32 %v1363, %v1362
        %v1366 = vadd.f32 %v1317, %v1364
        %v1367 = vadd.f32 %v1318, %v1365
        %v1368 = vld [vmem:[%s529 + $0x6] sm:$0xff]
        %v1369 = vld [vmem:[%s529 + $0xe] sm:$0xff]
        %v1370 = vstv %s738
        %v1371 = vmul.f32 %v1370, %v1368
        %v1372 = vmul.f32 %v1370, %v1369
        %v1373 = vadd.f32 %v1324, %v1371
        %v1374 = vadd.f32 %v1325, %v1372
        %v1375 = vld [vmem:[%s548 + $0x6] sm:$0xff]
        %v1376 = vld [vmem:[%s548 + $0xe] sm:$0xff]
        %v1377 = vstv %s739
        %v1378 = vmul.f32 %v1377, %v1375
        %v1379 = vmul.f32 %v1377, %v1376
        %v1380 = vadd.f32 %v1331, %v1378
        %v1381 = vadd.f32 %v1332, %v1379
        %v1382 = vld [vmem:[%s567 + $0x6] sm:$0xff]
        %v1383 = vld [vmem:[%s567 + $0xe] sm:$0xff]
        %v1384 = vstv %s740
        %v1385 = vmul.f32 %v1384, %v1382
        %v1386 = vmul.f32 %v1384, %v1383
        %v1387 = vadd.f32 %v1338, %v1385
        %v1388 = vadd.f32 %v1339, %v1386
        %v1389 = vld [vmem:[%s586 + $0x6] sm:$0xff]
        %v1390 = vld [vmem:[%s586 + $0xe] sm:$0xff]
        %v1391 = vstv %s741
        %v1392 = vmul.f32 %v1391, %v1389
        %v1393 = vmul.f32 %v1391, %v1390
        %v1394 = vadd.f32 %v1345, %v1392
        %v1395 = vadd.f32 %v1346, %v1393
        %v1396 = vld [vmem:[%s605 + $0x6] sm:$0xff]
        %v1397 = vld [vmem:[%s605 + $0xe] sm:$0xff]
        %v1398 = vstv %s742
        %v1399 = vmul.f32 %v1398, %v1396
        %v1400 = vmul.f32 %v1398, %v1397
        %v1401 = vadd.f32 %v1352, %v1399
        %v1402 = vadd.f32 %v1353, %v1400
        %v1403 = vld [vmem:[%s624 + $0x6] sm:$0xff]
        %v1404 = vld [vmem:[%s624 + $0xe] sm:$0xff]
        %v1405 = vstv %s743
        %v1406 = vmul.f32 %v1405, %v1403
        %v1407 = vmul.f32 %v1405, %v1404
        %v1408 = vadd.f32 %v1359, %v1406
        %v1409 = vadd.f32 %v1360, %v1407
        %v1410 = vld [vmem:[%s643 + $0x6] sm:$0xff]
        %v1411 = vld [vmem:[%s643 + $0xe] sm:$0xff]
        %v1412 = vstv %s744
        %v1413 = vmul.f32 %v1412, %v1410
        %v1414 = vmul.f32 %v1412, %v1411
        %v1415 = vadd.f32 %v1366, %v1413
        %v1416 = vadd.f32 %v1367, %v1414
        %v1417 = vadd.f32 %v1373, %v1380
        %v1418 = vadd.f32 %v1374, %v1381
        %v1419 = vadd.f32 %v1387, %v1394
        %v1420 = vadd.f32 %v1388, %v1395
        %v1421 = vadd.f32 %v1417, %v1419
        %v1422 = vadd.f32 %v1418, %v1420
        %v1423 = vadd.f32 %v1401, %v1408
        %v1424 = vadd.f32 %v1402, %v1409
        %v1425 = vadd.f32 %v1423, %v1415
        %v1426 = vadd.f32 %v1424, %v1416
        %v1427 = vadd.f32 %v1421, %v1425
        %v1428 = vadd.f32 %v1422, %v1426
        %s1429 = sld [smem:[#allocation10]]
        %v1430 = vstv %s1429
        %v1431 = vmul.f32 %v1427, %v1430
        %v1432 = vmul.f32 %v1428, %v1430
        %s1433 = sld [smem:[#allocation10 + $0x1]]
        %v1434 = vstv %s1433
        %v1435 = vadd.f32 %v1431, %v1434
        %v1436 = vadd.f32 %v1432, %v1434
        %v1437 = vsub.f32 0.0, %v1435
        %v1438 = vsub.f32 0.0, %v1436
        %v1439 = vmul.f32 %v1437, 1.442695
        %v1440 = vpow.pop %v1439
        %v1441 = vmul.f32 %v1438, 1.442695
        %v1442 = vpow.pop %v1441
        %v1443 = vadd.f32 %v1440, 1.0
        %v1444 = vadd.f32 %v1442, 1.0
        %v1445 = vrcp.pop %v1443
        %v1446 = vrcp.pop %v1444
        %v1447 = vlaneseq
        %vm1448 = vcmp.ge.s32.totalorder %v1447, 0
        %vm1449 = vcmp.lt.s32.totalorder %v1447, 16
        %vm1450 = vmand %vm1448, %vm1449
        %1451 = vst.msk [vmem:[#allocation4] sm:$0x1] %vm1450, %v1445
        %v1454 = vunpack.c.l.s4 1966171168
        %v1455 = vunpack.c.0.s8 %v1454
        %v1456 = vlaneseq
        %v1457 = vshrl.u32 %v1456, 7
        %v1458 = vsub.s32 %v1455, %v1457
        %v1459 = vrot.slane %v1445, %v1458
        %v1460 = vcombine.high %v1459, %v1459
        %v1462 = vunpack.c.l.s4 1966171168
        %v1463 = vunpack.c.0.s8 %v1462
        %v1464 = vlaneseq
        %v1465 = vshrl.u32 %v1464, 7
        %v1466 = vsub.s32 %v1463, %v1465
        %v1467 = vrot.slane %v1459, %v1466
        %v1469 = vunpack.c.l.s4 1966171168
        %v1470 = vunpack.c.0.s8 %v1469
        %v1471 = vlaneseq
        %v1472 = vshrl.u32 %v1471, 7
        %v1473 = vsub.s32 %v1470, %v1472
        %v1474 = vrot.slane %v1460, %v1473
        %1475 = vrot.lane.b32.xlu0 %v1474, 16
        %v1476 = vpop.permute.xlu0 %1475
        %vm1478 = vcmp.ge.s32.totalorder %v1447, 16
        %vm1479 = vcmp.lt.s32.totalorder %v1447, 32
        %vm1480 = vmand %vm1478, %vm1479
        %1481 = vst.msk [vmem:[#allocation4] sm:$0x1] %vm1480, %v1476
        %v1482 = vcombine.high %v1467, %v1467
        %1483 = vrot.lane.b32.xlu0 %v1482, 32
        %v1484 = vpop.permute.xlu0 %1483
        %vm1486 = vcmp.ge.s32.totalorder %v1447, 32
        %vm1487 = vcmp.lt.s32.totalorder %v1447, 48
        %vm1488 = vmand %vm1486, %vm1487
        %1489 = vst.msk [vmem:[#allocation4] sm:$0x1] %vm1488, %v1484
        %v1490 = vcombine.high %v1474, %v1474
        %1491 = vrot.lane.b32.xlu0 %v1490, 48
        %v1492 = vpop.permute.xlu0 %1491
        %vm1494 = vcmp.ge.s32.totalorder %v1447, 48
        %vm1495 = vcmp.lt.s32.totalorder %v1447, 64
        %vm1496 = vmand %vm1494, %vm1495
        %1497 = vst.msk [vmem:[#allocation4] sm:$0x1] %vm1496, %v1492
        %v1498 = vcombine.high %v1445, %v1445
        %v1500 = vunpack.c.l.s4 1966171168
        %v1501 = vunpack.c.0.s8 %v1500
        %v1502 = vlaneseq
        %v1503 = vshrl.u32 %v1502, 7
        %v1504 = vsub.s32 %v1501, %v1503
        %v1505 = vrot.slane %v1498, %v1504
        %v1507 = vunpack.c.l.s4 1966171168
        %v1508 = vunpack.c.0.s8 %v1507
        %v1509 = vlaneseq
        %v1510 = vshrl.u32 %v1509, 7
        %v1511 = vsub.s32 %v1508, %v1510
        %v1512 = vrot.slane %v1505, %v1511
        %1513 = vrot.lane.b32.xlu0 %v1512, 64
        %v1514 = vpop.permute.xlu0 %1513
        %vm1516 = vcmp.ge.s32.totalorder %v1447, 64
        %vm1517 = vcmp.lt.s32.totalorder %v1447, 80
        %vm1518 = vmand %vm1516, %vm1517
        %1519 = vst.msk [vmem:[#allocation4] sm:$0x1] %vm1518, %v1514
        %v1520 = vcombine.high %v1505, %v1505
        %v1522 = vunpack.c.l.s4 1966171168
        %v1523 = vunpack.c.0.s8 %v1522
        %v1524 = vlaneseq
        %v1525 = vshrl.u32 %v1524, 7
        %v1526 = vsub.s32 %v1523, %v1525
        %v1527 = vrot.slane %v1520, %v1526
        %1528 = vrot.lane.b32.xlu0 %v1527, 80
        %v1529 = vpop.permute.xlu0 %1528
        %vm1531 = vcmp.ge.s32.totalorder %v1447, 80
        %vm1532 = vcmp.lt.s32.totalorder %v1447, 96
        %vm1533 = vmand %vm1531, %vm1532
        %1534 = vst.msk [vmem:[#allocation4] sm:$0x1] %vm1533, %v1529
        %v1535 = vcombine.high %v1512, %v1512
        %1536 = vrot.lane.b32.xlu0 %v1535, 96
        %v1537 = vpop.permute.xlu0 %1536
        %vm1539 = vcmp.ge.s32.totalorder %v1447, 96
        %vm1540 = vcmp.lt.s32.totalorder %v1447, 112
        %vm1541 = vmand %vm1539, %vm1540
        %1542 = vst.msk [vmem:[#allocation4] sm:$0x1] %vm1541, %v1537
        %v1543 = vcombine.high %v1527, %v1527
        %1544 = vrot.lane.b32.xlu0 %v1543, 112
        %v1545 = vpop.permute.xlu0 %1544
        %vm1547 = vcmp.ge.s32.totalorder %v1447, 112
        %vm1548 = vcmp.lt.s32.totalorder %v1447, 128
        %vm1549 = vmand %vm1547, %vm1548
        %1550 = vst.msk [vmem:[#allocation4] sm:$0x1] %vm1549, %v1545
        %1551 = vst.msk [vmem:[#allocation4 + $0x1] sm:$0x1] %vm1450, %v1446
        %v1554 = vunpack.c.l.s4 1966171168
        %v1555 = vunpack.c.0.s8 %v1554
        %v1556 = vlaneseq
        %v1557 = vshrl.u32 %v1556, 7
        %v1558 = vsub.s32 %v1555, %v1557
        %v1559 = vrot.slane %v1446, %v1558
        %v1560 = vcombine.high %v1559, %v1559
        %v1562 = vunpack.c.l.s4 1966171168
        %v1563 = vunpack.c.0.s8 %v1562
        %v1564 = vlaneseq
        %v1565 = vshrl.u32 %v1564, 7
        %v1566 = vsub.s32 %v1563, %v1565
        %v1567 = vrot.slane %v1559, %v1566
        %v1569 = vunpack.c.l.s4 1966171168
        %v1570 = vunpack.c.0.s8 %v1569
        %v1571 = vlaneseq
        %v1572 = vshrl.u32 %v1571, 7
        %v1573 = vsub.s32 %v1570, %v1572
        %v1574 = vrot.slane %v1560, %v1573
        %1575 = vrot.lane.b32.xlu0 %v1574, 16
        %v1576 = vpop.permute.xlu0 %1575
        %1578 = vst.msk [vmem:[#allocation4 + $0x1] sm:$0x1] %vm1480, %v1576
        %v1579 = vcombine.high %v1567, %v1567
        %1580 = vrot.lane.b32.xlu0 %v1579, 32
        %v1581 = vpop.permute.xlu0 %1580
        %1583 = vst.msk [vmem:[#allocation4 + $0x1] sm:$0x1] %vm1488, %v1581
        %v1584 = vcombine.high %v1574, %v1574
        %1585 = vrot.lane.b32.xlu0 %v1584, 48
        %v1586 = vpop.permute.xlu0 %1585
        %1588 = vst.msk [vmem:[#allocation4 + $0x1] sm:$0x1] %vm1496, %v1586
        %v1589 = vcombine.high %v1446, %v1446
        %v1591 = vunpack.c.l.s4 1966171168
        %v1592 = vunpack.c.0.s8 %v1591
        %v1593 = vlaneseq
        %v1594 = vshrl.u32 %v1593, 7
        %v1595 = vsub.s32 %v1592, %v1594
        %v1596 = vrot.slane %v1589, %v1595
        %v1598 = vunpack.c.l.s4 1966171168
        %v1599 = vunpack.c.0.s8 %v1598
        %v1600 = vlaneseq
        %v1601 = vshrl.u32 %v1600, 7
        %v1602 = vsub.s32 %v1599, %v1601
        %v1603 = vrot.slane %v1596, %v1602
        %1604 = vrot.lane.b32.xlu0 %v1603, 64
        %v1605 = vpop.permute.xlu0 %1604
        %1607 = vst.msk [vmem:[#allocation4 + $0x1] sm:$0x1] %vm1518, %v1605
        %v1608 = vcombine.high %v1596, %v1596
        %v1610 = vunpack.c.l.s4 1966171168
        %v1611 = vunpack.c.0.s8 %v1610
        %v1612 = vlaneseq
        %v1613 = vshrl.u32 %v1612, 7
        %v1614 = vsub.s32 %v1611, %v1613
        %v1615 = vrot.slane %v1608, %v1614
        %1616 = vrot.lane.b32.xlu0 %v1615, 80
        %v1617 = vpop.permute.xlu0 %1616
        %1619 = vst.msk [vmem:[#allocation4 + $0x1] sm:$0x1] %vm1533, %v1617
        %v1620 = vcombine.high %v1603, %v1603
        %1621 = vrot.lane.b32.xlu0 %v1620, 96
        %v1622 = vpop.permute.xlu0 %1621
        %1624 = vst.msk [vmem:[#allocation4 + $0x1] sm:$0x1] %vm1541, %v1622
        %v1625 = vcombine.high %v1615, %v1615
        %1626 = vrot.lane.b32.xlu0 %v1625, 112
        %v1627 = vpop.permute.xlu0 %1626
        %1629 = vst.msk [vmem:[#allocation4 + $0x1] sm:$0x1] %vm1549, %v1627
        %v1630 = vld [vmem:[%s182] sm:$0xff]
        %v1631 = vld [vmem:[#allocation4] sm:$0x3]
        %v1633 = vlaneseq
        %v1634 = vshrl.u32 %v1633, 7
        %v1635 = vsub.s32 0, %v1634
        %v1636 = vrot.slane %v1631, %v1635
        %v1637 = vlaneseq
        %v1638 = vshrl.u32 %v1637, 7
        %v1639 = vsub.s32 1, %v1638
        %v1640 = vrot.slane %v1631, %v1639
        %v1641 = vcombine.low %v1636, %v1640
        %v1643 = vmul.f32 %v1630, %v1641
        %1644 = vst [vmem:[%s213] sm:$0xff] %v1643
        %s1645 = sand.u32 %s98, 1
        %s1646 = scalar_lea.sflag [#allocation7], %s1645
        %s1647 = sand.u32 %s98, 1
        %s1648 = smul.addr %s1647, 8
        %s1649 = scalar_lea.vmem [#allocation12], %s1648
        // Predicated region
        $region45: #{tpu_custom_call.1} parent=31 // pred_check
          %p1650 = pneg %p108
        $region46: #{tpu_custom_call.1} parent=31 // pred_check_branch
          %1652 = sbr.rel (%p1650) target = $region48
        $region47: #{tpu_custom_call.1} parent=31 // pred_region
          %s1654 = ssub.s32 128, 128
          %1655 = vsyncadd %s1646, %s1654
          %s1656 = smul.addr %s22, 2
          %s1657 = smul.addr %s1656, 64
          %s1658 = scalar_lea.hbm %s3, %s1657
          %s1660 = sshll.u32 %s1649, 4
          %s1661 = int_to_ptr.vmem [resolvable:$true] %s1660
          %1663 = dma.vmem_to_hbm [thread:$0]  %s1661, 128, %s1658, %s1646
        $region48: #{tpu_custom_call.1} parent=31 // pred_fallthru
          _
      $region32: #{tpu_custom_call.1} parent=5 // pred_fallthru
        _
      %p1664 = scmp.le.s32.totalorder 2, %s17
      // Predicated region
      $region49: #{tpu_custom_call.1} parent=5 // pred_check
        %p1665 = pneg %p1664
      $region50: #{tpu_custom_call.1} parent=5 // pred_check_branch
        %1667 = sbr.rel (%p1665) target = $region52
      $region51: #{tpu_custom_call.1} parent=5 // pred_region
        %s1668 = ssub.s32 %s17, 2
        // Predicated region
        $region53: #{tpu_custom_call.1} parent=51 // pred_check
          %p1669 = pneg %p114
        $region54: #{tpu_custom_call.1} parent=51 // pred_check_branch
          %1671 = sbr.rel (%p1669) target = $region56
        $region55: #{tpu_custom_call.1} parent=51 // pred_region
          %s1672 = sand.u32 %s99, 1
          %s1673 = scalar_lea.sflag [#allocation7], %s1672
          %s1674 = sand.u32 %s99, 1
          %s1675 = smul.addr %s1674, 8
          %s1676 = scalar_lea.vmem [#allocation12], %s1675
          %1677 = dma.done %s1673, 128
        $region56: #{tpu_custom_call.1} parent=51 // pred_fallthru
          _
      $region52: #{tpu_custom_call.1} parent=5 // pred_fallthru
        _
    $region6: #{tpu_custom_call.1} parent=1 // loop_footer
      %s21 = sadd.s32 1, %s17
    $region7: #{tpu_custom_call.1} parent=1 // loop_footer_branch
      %16 = sbr.rel target = $region3
    $region8: #{tpu_custom_call.1} parent=1 // loop_exit
      _
    %1678 = vsyncpa [#allocation6], 1
    %s1679 = scalar_lea.sflag [#allocation6], 1
    %1680 = vsyncpa %s1679, 1
    %1681 = vsyncpa [#allocation7], 1
    %s1682 = scalar_lea.sflag [#allocation7], 1
    %1683 = vsyncpa %s1682, 1
    %1684 = vsyncpa [#allocation8], 1
    %s1685 = scalar_lea.sflag [#allocation8], 1
    %1686 = vsyncpa %s1685, 1
    %1687 = vsyncpa [#allocation11], 1

</llo_original>
